<compile_context>
chip_gen: v7x
topology: tpu7x:2x2x1
jax: 0.10.0
libtpu: 0.0.40
codegen_flags: <defaults>
</compile_context>

<pallas_src>
import jax
import jax.numpy as jnp
import numpy as np
from jax.experimental import pallas as pl
from jax.experimental.pallas import tpu as pltpu

EMB_DIM = 384
HID_DIM = 256
LN_EPS = 1e-5


def _round_up(a, m):
    return ((a + m - 1) // m) * m


def cif_kernel(x_ref, w1_ref, w2_ref, p_ref, o_ref):
    # x tile arrives in its HBM dtype (bf16 preferred); MXU operands are bf16,
    # accumulation and the LayerNorm epilogue are f32.
    x = x_ref[...].astype(jnp.bfloat16)

    # Packed params (4, EMB_DIM) f32: rows = [b1 (zero-padded), b2, gamma, beta].
    b1 = p_ref[0:1, 0:HID_DIM]
    b2 = p_ref[1:2, :]
    gamma = p_ref[2:3, :]
    beta = p_ref[3:4, :]

    # Linear(384 -> 256) + ReLU.
    h = jnp.dot(x, w1_ref[...], preferred_element_type=jnp.float32) + b1
    h = jnp.maximum(h, 0.0)

    # Linear(256 -> 384).
    y = jnp.dot(h.astype(jnp.bfloat16), w2_ref[...],
                preferred_element_type=jnp.float32) + b2

    # LayerNorm over the last dim (biased variance, eps=1e-5). Two-pass
    # statistics: no cancellation / negative-variance risk; the extra cross-lane
    # reduction is free since the kernel is HBM-bound. rsqrt goes to the EUP.
    inv_d = jnp.float32(1.0 / EMB_DIM)
    mean = jnp.sum(y, axis=-1, keepdims=True) * inv_d
    yc = y - mean
    var = jnp.sum(yc * yc, axis=-1, keepdims=True) * inv_d
    out = yc * jax.lax.rsqrt(var + LN_EPS) * gamma + beta

    o_ref[...] = out.astype(o_ref.dtype)


def context_isolation_forward(x, w1, b1, w2, b2, gamma, beta, *, tm=1024,
                              out_dtype=None):
    """x: (B, EMB_DIM), ideally bf16 (f32 also works). Returns (B, EMB_DIM)
    in `out_dtype` (defaults to x.dtype).

    tm=1024 keeps large batches at ~86% of HBM roofline; the effective row tile
    is rebalanced so the grid has (near-)equal blocks (>=2 when possible) for
    v7x megacore sharding and no full-size ragged-tail tile.
    """
    B, D = x.shape
    assert D == EMB_DIM
    out_dtype = x.dtype if out_dtype is None else out_dtype

    # --- Balanced row tiles --------------------------------------------------
    padded_b = _round_up(B, 8)
    n_blocks = max(2, pl.cdiv(padded_b, tm))     # >=2 so v7x's two TCs both work
    tm_eff = min(_round_up(pl.cdiv(padded_b, n_blocks), 8), padded_b)
    grid = (pl.cdiv(B, tm_eff),)                 # ragged tail is masked on writeback

    # Weights: bf16 MXU operands (no-op if caller already passes bf16).
    w1_bf = w1 if w1.dtype == jnp.bfloat16 else w1.astype(jnp.bfloat16)
    w2_bf = w2 if w2.dtype == jnp.bfloat16 else w2.astype(jnp.bfloat16)

    # Pack b1 (zero-padded to EMB_DIM), b2, gamma, beta into one (4, EMB_DIM)
    # f32 block: a single grid-invariant input instead of four.
    b1_pad = jnp.zeros((EMB_DIM,), jnp.float32).at[:HID_DIM].set(
        b1.astype(jnp.float32))
    params = jnp.stack([b1_pad,
                        b2.astype(jnp.float32),
                        gamma.astype(jnp.float32),
                        beta.astype(jnp.float32)], axis=0)

    flops = 2 * B * (EMB_DIM * HID_DIM + HID_DIM * EMB_DIM)
    bytes_accessed = (B * EMB_DIM * (x.dtype.itemsize
                                     + np.dtype(out_dtype).itemsize)
                      + 2 * EMB_DIM * HID_DIM * 2    # bf16 weights
                      + 4 * EMB_DIM * 4)             # packed params (f32)
    cost = pl.CostEstimate(flops=flops, transcendentals=B,
                           bytes_accessed=bytes_accessed)

    return pl.pallas_call(
        cif_kernel,
        out_shape=jax.ShapeDtypeStruct((B, EMB_DIM), out_dtype),
        grid_spec=pltpu.PrefetchScalarGridSpec(
            num_scalar_prefetch=0,
            grid=grid,
            in_specs=[
                pl.BlockSpec((tm_eff, EMB_DIM), lambda i: (i, 0)),    # x tile
                pl.BlockSpec((EMB_DIM, HID_DIM), lambda i: (0, 0)),   # w1 (grid-invariant)
                pl.BlockSpec((HID_DIM, EMB_DIM), lambda i: (0, 0)),   # w2 (grid-invariant)
                pl.BlockSpec((4, EMB_DIM), lambda i: (0, 0)),         # packed b1/b2/gamma/beta
            ],
            out_specs=pl.BlockSpec((tm_eff, EMB_DIM), lambda i: (i, 0)),
        ),
        compiler_params=pltpu.CompilerParams(
            dimension_semantics=("parallel",),   # megacore-shardable on v7x
        ),
        cost_estimate=cost,
    )(x, w1_bf, w2_bf, params)


def reference_forward_f32(x, w1, b1, w2, b2, gamma, beta):
    """Pure-JAX f32 reference matching the PyTorch module semantics."""
    h = jnp.maximum(x @ w1 + b1, 0.0)
    y = h @ w2 + b2
    mean = jnp.mean(y, axis=-1, keepdims=True)
    var = jnp.mean((y - mean) ** 2, axis=-1, keepdims=True)
    return (y - mean) / jnp.sqrt(var + LN_EPS) * gamma + beta


def reference_forward_bf16(x_bf, w1_bf, b1, w2_bf, b2, gamma, beta):
    """Reference with the same bf16-operand / f32-accumulate matmul path."""
    h = jnp.dot(x_bf.astype(jnp.bfloat16), w1_bf.astype(jnp.bfloat16),
                preferred_element_type=jnp.float32) + b1
    h = jnp.maximum(h, 0.0)
    y = jnp.dot(h.astype(jnp.bfloat16), w2_bf.astype(jnp.bfloat16),
                preferred_element_type=jnp.float32) + b2
    mean = jnp.mean(y, axis=-1, keepdims=True)
    var = jnp.mean((y - mean) ** 2, axis=-1, keepdims=True)
    return (y - mean) / jnp.sqrt(var + LN_EPS) * gamma + beta


if __name__ == "__main__":
    key = jax.random.PRNGKey(0)
    k_x, k_w1, k_b1, k_w2, k_b2 = jax.random.split(key, 5)

    # Batch chosen so the balanced-tile logic produces a 2-block grid
    # (264+264 rows, ragged/masked tail) — exercises the pipelined path.
    batch = 520

    x_f32 = jax.random.normal(k_x, (batch, EMB_DIM), dtype=jnp.float32)

    # Deterministic parameter init (roughly matching nn.Linear's uniform scale).
    lim1 = 1.0 / (EMB_DIM ** 0.5)
    lim2 = 1.0 / (HID_DIM ** 0.5)
    w1 = jax.random.uniform(k_w1, (EMB_DIM, HID_DIM), jnp.float32, -lim1, lim1)
    b1 = jax.random.uniform(k_b1, (HID_DIM,), jnp.float32, -lim1, lim1)
    w2 = jax.random.uniform(k_w2, (HID_DIM, EMB_DIM), jnp.float32, -lim2, lim2)
    b2 = jax.random.uniform(k_b2, (EMB_DIM,), jnp.float32, -lim2, lim2)
    gamma = jnp.ones((EMB_DIM,), jnp.float32)   # LayerNorm weight init
    beta = jnp.zeros((EMB_DIM,), jnp.float32)   # LayerNorm bias init

    # bf16 activation I/O (halves HBM traffic on this HBM-bound kernel);
    # weight conversion hoisted out of the per-call path.
    x_bf = x_f32.astype(jnp.bfloat16)
    w1_bf = w1.astype(jnp.bfloat16)
    w2_bf = w2.astype(jnp.bfloat16)

    fwd = jax.jit(context_isolation_forward)
    out = jax.block_until_ready(fwd(x_bf, w1_bf, b1, w2_bf, b2, gamma, beta))

    assert out.shape == (batch, EMB_DIM)
    assert out.dtype == jnp.bfloat16
    out_f32 = out.astype(jnp.float32)
    assert jnp.all(jnp.isfinite(out_f32)), "non-finite output"

    # Tight check: reference following the same bf16-in / bf16-matmul /
    # f32-epilogue / bf16-out path.
    ref_bf = reference_forward_bf16(x_bf, w1_bf, b1, w2_bf, b2, gamma, beta)
    ref_bf = ref_bf.astype(jnp.bfloat16).astype(jnp.float32)
    assert jnp.allclose(out_f32, ref_bf, atol=2e-2, rtol=2e-2), \
        "mismatch vs bf16-path reference"

    # Loose check against the pure-f32 PyTorch-equivalent reference (bf16
    # operand/output rounding loosens agreement).
    ref_f32 = reference_forward_f32(x_f32, w1, b1, w2, b2, gamma, beta)
    assert jnp.allclose(out_f32, ref_f32, atol=1e-1, rtol=5e-2), \
        "mismatch vs f32 reference"

    print("KERNEL_OK")
</pallas_src>

<mosaic_0001>
module attributes {stable_mosaic.version = 11 : i64} {
  func.func @cif_kernel(%arg0: i32, %arg1: memref<264x384xbf16, #tpu.memory_space<vmem>>, %arg2: memref<384x256xbf16, #tpu.memory_space<vmem>>, %arg3: memref<256x384xbf16, #tpu.memory_space<vmem>>, %arg4: memref<4x384xf32, #tpu.memory_space<vmem>>, %arg5: memref<264x384xbf16, #tpu.memory_space<vmem>>) attributes {dimension_semantics = [#tpu.dimension_semantics<parallel>], iteration_bounds = array<i64: 2>, scalar_prefetch = 0 : i64, scratch_operands = 0 : i64, tpu.core_type = #tpu.core_type<tc>, window_params = [{transform_indices = @transform_0, window_bounds = array<i64: 264, 384>}, {pipeline_mode = #tpu.pipeline_mode<synchronous>, transform_indices = @transform_1, window_bounds = array<i64: 384, 256>}, {pipeline_mode = #tpu.pipeline_mode<synchronous>, transform_indices = @transform_2, window_bounds = array<i64: 256, 384>}, {pipeline_mode = #tpu.pipeline_mode<synchronous>, transform_indices = @transform_3, window_bounds = array<i64: 4, 384>}, {transform_indices = @transform_4, window_bounds = array<i64: 264, 384>}]} {
    %c0 = arith.constant 0 : index
    %c0_0 = arith.constant 0 : index
    %0 = vector.load %arg1[%c0, %c0_0] : memref<264x384xbf16, #tpu.memory_space<vmem>>, vector<264x384xbf16>
    %c0_1 = arith.constant 0 : index
    %c0_2 = arith.constant 0 : index
    %1 = vector.load %arg4[%c0_1, %c0_2] : memref<4x384xf32, #tpu.memory_space<vmem>>, vector<1x256xf32>
    %c1 = arith.constant 1 : index
    %c0_3 = arith.constant 0 : index
    %2 = vector.load %arg4[%c1, %c0_3] : memref<4x384xf32, #tpu.memory_space<vmem>>, vector<1x384xf32>
    %c2 = arith.constant 2 : index
    %c0_4 = arith.constant 0 : index
    %3 = vector.load %arg4[%c2, %c0_4] : memref<4x384xf32, #tpu.memory_space<vmem>>, vector<1x384xf32>
    %c3 = arith.constant 3 : index
    %c0_5 = arith.constant 0 : index
    %4 = vector.load %arg4[%c3, %c0_5] : memref<4x384xf32, #tpu.memory_space<vmem>>, vector<1x384xf32>
    %c0_6 = arith.constant 0 : index
    %c0_7 = arith.constant 0 : index
    %5 = vector.load %arg2[%c0_6, %c0_7] : memref<384x256xbf16, #tpu.memory_space<vmem>>, vector<384x256xbf16>
    %cst = arith.constant dense<0.000000e+00> : vector<264x256xf32>
    %6 = tpu.matmul %0, %5, %cst {dimension_numbers = #tpu.dot_dimension_numbers<[1], [0], [0], [1], [0, 0, 1, 1], [], []>} : vector<264x384xbf16>, vector<384x256xbf16>, vector<264x256xf32> -> vector<264x256xf32>
    %7 = vector.broadcast %1 : vector<1x256xf32> to vector<264x256xf32>
    %8 = arith.addf %6, %7 : vector<264x256xf32>
    %cst_8 = arith.constant 0.000000e+00 : f32
    %9 = vector.broadcast %cst_8 : f32 to vector<264x256xf32>
    %10 = arith.maximumf %8, %9 : vector<264x256xf32>
    %11 = arith.truncf %10 : vector<264x256xf32> to vector<264x256xbf16>
    %c0_9 = arith.constant 0 : index
    %c0_10 = arith.constant 0 : index
    %12 = vector.load %arg3[%c0_9, %c0_10] : memref<256x384xbf16, #tpu.memory_space<vmem>>, vector<256x384xbf16>
    %cst_11 = arith.constant dense<0.000000e+00> : vector<264x384xf32>
    %13 = tpu.matmul %11, %12, %cst_11 {dimension_numbers = #tpu.dot_dimension_numbers<[1], [0], [0], [1], [0, 0, 1, 1], [], []>} : vector<264x256xbf16>, vector<256x384xbf16>, vector<264x384xf32> -> vector<264x384xf32>
    %14 = vector.broadcast %2 : vector<1x384xf32> to vector<264x384xf32>
    %15 = arith.addf %13, %14 : vector<264x384xf32>
    %cst_12 = arith.constant dense<0.000000e+00> : vector<264xf32>
    %16 = vector.multi_reduction <add>, %15, %cst_12 [1] : vector<264x384xf32> to vector<264xf32>
    %17 = vector.shape_cast %16 : vector<264xf32> to vector<264x1xf32>
    %cst_13 = arith.constant 0.00260416674 : f32
    %18 = vector.broadcast %cst_13 : f32 to vector<264x1xf32>
    %19 = arith.mulf %17, %18 : vector<264x1xf32>
    %20 = vector.broadcast %19 : vector<264x1xf32> to vector<264x384xf32>
    %21 = arith.subf %15, %20 : vector<264x384xf32>
    %22 = arith.mulf %21, %21 : vector<264x384xf32>
    %cst_14 = arith.constant dense<0.000000e+00> : vector<264xf32>
    %23 = vector.multi_reduction <add>, %22, %cst_14 [1] : vector<264x384xf32> to vector<264xf32>
    %24 = vector.shape_cast %23 : vector<264xf32> to vector<264x1xf32>
    %cst_15 = arith.constant 0.00260416674 : f32
    %25 = vector.broadcast %cst_15 : f32 to vector<264x1xf32>
    %26 = arith.mulf %24, %25 : vector<264x1xf32>
    %cst_16 = arith.constant 9.99999974E-6 : f32
    %27 = vector.broadcast %cst_16 : f32 to vector<264x1xf32>
    %28 = arith.addf %26, %27 : vector<264x1xf32>
    %29 = math.rsqrt %28 : vector<264x1xf32>
    %30 = vector.broadcast %29 : vector<264x1xf32> to vector<264x384xf32>
    %31 = arith.mulf %21, %30 : vector<264x384xf32>
    %32 = vector.broadcast %3 : vector<1x384xf32> to vector<264x384xf32>
    %33 = arith.mulf %31, %32 : vector<264x384xf32>
    %34 = vector.broadcast %4 : vector<1x384xf32> to vector<264x384xf32>
    %35 = arith.addf %33, %34 : vector<264x384xf32>
    %36 = arith.truncf %35 : vector<264x384xf32> to vector<264x384xbf16>
    %c0_17 = arith.constant 0 : index
    %c0_18 = arith.constant 0 : index
    %37 = vector.load %arg5[%c0_17, %c0_18] : memref<264x384xbf16, #tpu.memory_space<vmem>>, vector<264x384xbf16>
    tpu.vector_store %arg5[%c0_17, %c0_18], %36 {strides = array<i32>} : memref<264x384xbf16, #tpu.memory_space<vmem>>, vector<264x384xbf16>,
    return
  }
  func.func @transform_0(%arg0: i32) -> (i32, i32) {
    %c0_i32 = arith.constant 0 : i32
    %c0_i32_0 = arith.constant 0 : i32
    return %arg0, %c0_i32 : i32, i32
  }
  func.func @transform_1(%arg0: i32) -> (i32, i32) {
    %c0_i32 = arith.constant 0 : i32
    %c0_i32_0 = arith.constant 0 : i32
    %c0_i32_1 = arith.constant 0 : i32
    return %c0_i32, %c0_i32_0 : i32, i32
  }
  func.func @transform_2(%arg0: i32) -> (i32, i32) {
    %c0_i32 = arith.constant 0 : i32
    %c0_i32_0 = arith.constant 0 : i32
    %c0_i32_1 = arith.constant 0 : i32
    return %c0_i32, %c0_i32_0 : i32, i32
  }
  func.func @transform_3(%arg0: i32) -> (i32, i32) {
    %c0_i32 = arith.constant 0 : i32
    %c0_i32_0 = arith.constant 0 : i32
    %c0_i32_1 = arith.constant 0 : i32
    return %c0_i32, %c0_i32_0 : i32, i32
  }
  func.func @transform_4(%arg0: i32) -> (i32, i32) {
    %c0_i32 = arith.constant 0 : i32
    %c0_i32_0 = arith.constant 0 : i32
    return %arg0, %c0_i32 : i32, i32
  }
}

</mosaic_0001>

<llo_original>
// kernel: context_isolation_forward.1
$region0: #{context_isolation_forward.1}
  #allocation0 [shape = 'u32[]', space=smem, size = 0x4, offset = 0x4, fixed_abs, tag = 'smem constant byte address 0x4 - core index']
  #allocation1 [shape = 'u32[144,128]{1,0:T(1,128)}', space=vmem, size = 0x12000, scoped, tag = 'internal scratch']
  %s0 = inlined_call_operand.hbm [shape: bf16[520,384], index: 0, kind: input, shape index: {}]
  %s1 = inlined_call_operand.hbm [shape: bf16[384,256], index: 1, kind: input, shape index: {}]
  %s2 = inlined_call_operand.hbm [shape: bf16[256,384], index: 2, kind: input, shape index: {}]
  %s3 = inlined_call_operand.vmem [shape: f32[4,384], index: 3, kind: input, shape index: {}]
  %s4 = inlined_call_operand.hbm [shape: bf16[520,384], index: 4, kind: output, shape index: {}]
  %s5 = sld [smem:[#allocation0]]
  $region61: #{context_isolation_forward.1} parent=0
    _
  %s7 = ssub.s32 1, %s5
  %s8 = scalar_select 0, %s7, %s5
  $region1: #{context_isolation_forward.1} parent=0
    #allocation2 [shape = 'u8[405504]{0}', space=vmem, size = 0x63000, scoped, tag = 'input window, operand 0']
    #allocation3 [shape = 's32[2]{0}', space=sflag, size = 0x8, scoped, tag = 'scoped memory for context_isolation_forward.1']
    #allocation4 [shape = 's32[2]{0}', space=sflag, size = 0x8, scoped, tag = 'scoped memory for context_isolation_forward.1']
    #allocation5 [shape = 'u8[196608]{0}', space=vmem, size = 0x30000, scoped, tag = 'input window, operand 1, single buffered']
    #allocation6 [shape = 's32[1]{0}', space=sflag, size = 0x4, scoped, tag = 'scoped memory for context_isolation_forward.1']
    #allocation7 [shape = 'u8[196608]{0}', space=vmem, size = 0x30000, scoped, tag = 'input window, operand 2, single buffered']
    #allocation8 [shape = 'u8[405504]{0}', space=vmem, size = 0x63000, scoped, tag = 'output window, operand 0']
    %9 = vsyncpa [#allocation3], 0
    %s10 = scalar_lea.sflag [#allocation3], 1
    %11 = vsyncpa %s10, 0
    %12 = vsyncpa [#allocation6], 0
    %13 = vsyncpa [#allocation4], 0
    %s14 = scalar_lea.sflag [#allocation4], 1
    %15 = vsyncpa %s14, 0
    loop: start=0, step=1, limit=4
    $region2: #{context_isolation_forward.1} parent=1 // loop_pre_header
      _
    $region3: #{context_isolation_forward.1} parent=1 // loop_header
      %s17 = sphi 0, %s21
      %p18 = scmp.ge.s32.totalorder %s17, 4
      %s27 = sphi 0, %s29
      %s30 = sphi 0, %s27
      %s31 = sphi 0, %s30
      %s47 = sphi 0, %s31
      %s51 = sphi 0, %s51
      %s53 = sphi 0, %s51
      %s54 = sphi 0, %s53
      %s68 = sphi 0, %s54
      %s72 = sphi 0, %s72
      %s74 = sphi 0, %s72
      %s75 = sphi 0, %s74
      %s89 = sphi 0, %s75
      %s93 = sphi 0, %s93
      %s95 = sphi 0, %s93
      %s96 = sphi 0, %s95
      %s110 = sphi 0, %s96
      %s116 = sphi 0, %s118
      %s119 = sphi 0, %s116
      %s120 = sphi 0, %s119
      %s136 = sphi 0, %s120
    $region4: #{context_isolation_forward.1} parent=1 // loop_header_branch
      %20 = sbr.rel (%p18) target = $region8
    $region5: #{context_isolation_forward.1} parent=1 // loop_body
      %s22 = ssub.s32 %s17, 1
      %s23 = ssub.s32 %s17, 2
      %s24 = sadd.s32 %s17, 1
      %s25 = ssub.s32 %s17, %s24
      %p26 = scmp.eq.s32.totalorder %s25, 0
      %s28 = sadd.s32 %s27, 1
      %s29 = scalar_select %p26, %s27, %s28
      %p32 = pneg %p26
      %p33 = scmp.eq.s32.totalorder %s17, 1
      %p34 = por %p32, %p33
      %p35 = scmp.ne.s32.totalorder %s27, %s30
      %p36 = scmp.eq.s32.totalorder %s17, 0
      %p37 = por %p35, %p36
      %p38 = scmp.ne.s32.totalorder %s27, %s30
      %p39 = scmp.eq.s32.totalorder %s22, 1
      %p40 = por %p38, %p39
      %p41 = scmp.ne.s32.totalorder %s30, %s31
      %p42 = scmp.eq.s32.totalorder %s22, 0
      %p43 = por %p41, %p42
      %p44 = scmp.ne.s32.totalorder %s30, %s31
      %p45 = scmp.eq.s32.totalorder %s23, 1
      %p46 = por %p44, %p45
      %p48 = scmp.ne.s32.totalorder %s31, %s47
      %p49 = scmp.eq.s32.totalorder %s23, 0
      %p50 = por %p48, %p49
      %s52 = sadd.s32 %s51, 1
      %p55 = scmp.eq.s32.totalorder %s17, 1
      %p56 = scmp.ne.s32.totalorder %s51, %s53
      %p57 = scmp.eq.s32.totalorder %s17, 0
      %p58 = por %p56, %p57
      %p59 = scmp.ne.s32.totalorder %s51, %s53
      %p60 = scmp.eq.s32.totalorder %s22, 1
      %p61 = por %p59, %p60
      %p62 = scmp.ne.s32.totalorder %s53, %s54
      %p63 = scmp.eq.s32.totalorder %s22, 0
      %p64 = por %p62, %p63
      %p65 = scmp.ne.s32.totalorder %s53, %s54
      %p66 = scmp.eq.s32.totalorder %s23, 1
      %p67 = por %p65, %p66
      %p69 = scmp.ne.s32.totalorder %s54, %s68
      %p70 = scmp.eq.s32.totalorder %s23, 0
      %p71 = por %p69, %p70
      %s73 = sadd.s32 %s72, 1
      %p76 = scmp.eq.s32.totalorder %s17, 1
      %p77 = scmp.ne.s32.totalorder %s72, %s74
      %p78 = scmp.eq.s32.totalorder %s17, 0
      %p79 = por %p77, %p78
      %p80 = scmp.ne.s32.totalorder %s72, %s74
      %p81 = scmp.eq.s32.totalorder %s22, 1
      %p82 = por %p80, %p81
      %p83 = scmp.ne.s32.totalorder %s74, %s75
      %p84 = scmp.eq.s32.totalorder %s22, 0
      %p85 = por %p83, %p84
      %p86 = scmp.ne.s32.totalorder %s74, %s75
      %p87 = scmp.eq.s32.totalorder %s23, 1
      %p88 = por %p86, %p87
      %p90 = scmp.ne.s32.totalorder %s75, %s89
      %p91 = scmp.eq.s32.totalorder %s23, 0
      %p92 = por %p90, %p91
      %s94 = sadd.s32 %s93, 1
      %p97 = scmp.eq.s32.totalorder %s17, 1
      %p98 = scmp.ne.s32.totalorder %s93, %s95
      %p99 = scmp.eq.s32.totalorder %s17, 0
      %p100 = por %p98, %p99
      %p101 = scmp.ne.s32.totalorder %s93, %s95
      %p102 = scmp.eq.s32.totalorder %s22, 1
      %p103 = por %p101, %p102
      %p104 = scmp.ne.s32.totalorder %s95, %s96
      %p105 = scmp.eq.s32.totalorder %s22, 0
      %p106 = por %p104, %p105
      %p107 = scmp.ne.s32.totalorder %s95, %s96
      %p108 = scmp.eq.s32.totalorder %s23, 1
      %p109 = por %p107, %p108
      %p111 = scmp.ne.s32.totalorder %s96, %s110
      %p112 = scmp.eq.s32.totalorder %s23, 0
      %p113 = por %p111, %p112
      %s114 = ssub.s32 %s17, %s24
      %p115 = scmp.eq.s32.totalorder %s114, 0
      %s117 = sadd.s32 %s116, 1
      %s118 = scalar_select %p115, %s116, %s117
      %p121 = pneg %p115
      %p122 = scmp.eq.s32.totalorder %s17, 1
      %p123 = por %p121, %p122
      %p124 = scmp.ne.s32.totalorder %s116, %s119
      %p125 = scmp.eq.s32.totalorder %s17, 0
      %p126 = por %p124, %p125
      %p127 = scmp.ne.s32.totalorder %s116, %s119
      %p128 = scmp.eq.s32.totalorder %s22, 1
      %p129 = por %p127, %p128
      %p130 = scmp.ne.s32.totalorder %s119, %s120
      %p131 = scmp.eq.s32.totalorder %s22, 0
      %p132 = por %p130, %p131
      %p133 = scmp.ne.s32.totalorder %s119, %s120
      %p134 = scmp.eq.s32.totalorder %s23, 1
      %p135 = por %p133, %p134
      %p137 = scmp.ne.s32.totalorder %s120, %s136
      %p138 = scmp.eq.s32.totalorder %s23, 0
      %p139 = por %p137, %p138
      %p140 = scmp.le.s32.totalorder 1, %s17
      %p141 = scmp.lt.s32.totalorder %s17, 3
      %p142 = pnand %p140, %p141
      %p143 = pneg %p142
      // Predicated region
      $region9: #{context_isolation_forward.1} parent=5 // pred_check
        _
      $region10: #{context_isolation_forward.1} parent=5 // pred_check_branch
        %145 = sbr.rel (%p142) target = $region12
      $region11: #{context_isolation_forward.1} parent=5 // pred_region
        %s146 = ssub.s32 %s17, 1
        // Predicated region
        $region13: #{context_isolation_forward.1} parent=11 // pred_check
          %p147 = pneg %p64
        $region14: #{context_isolation_forward.1} parent=11 // pred_check_branch
          %149 = sbr.rel (%p147) target = $region16
        $region15: #{context_isolation_forward.1} parent=11 // pred_region
          %s151 = ssub.s32 6144, 6144
          %152 = vsyncadd [#allocation6], %s151
          %s153 = sshll.u32 [#allocation5], 4
          %s154 = int_to_ptr.vmem [resolvable:$true] %s153
          %159 = dma.hbm_to_vmem [thread:$0]  %s1, 6144, %s154, [#allocation6], 128, 128, 8
        $region16: #{context_isolation_forward.1} parent=11 // pred_fallthru
          _
        // Predicated region
        $region17: #{context_isolation_forward.1} parent=11 // pred_check
          %p160 = pneg %p85
        $region18: #{context_isolation_forward.1} parent=11 // pred_check_branch
          %162 = sbr.rel (%p160) target = $region20
        $region19: #{context_isolation_forward.1} parent=11 // pred_region
          %s164 = ssub.s32 6144, 6144
          %165 = vsyncadd [#allocation6], %s164
          %s166 = sshll.u32 [#allocation7], 4
          %s167 = int_to_ptr.vmem [resolvable:$true] %s166
          %172 = dma.hbm_to_vmem [thread:$0]  %s2, 6144, %s167, [#allocation6], 192, 192, 12
        $region20: #{context_isolation_forward.1} parent=11 // pred_fallthru
          _
        // Predicated region
        $region21: #{context_isolation_forward.1} parent=11 // pred_check
          %p173 = pneg %p106
        $region22: #{context_isolation_forward.1} parent=11 // pred_check_branch
          %175 = sbr.rel (%p173) target = $region24
        $region23: #{context_isolation_forward.1} parent=11 // pred_region
          _
        $region24: #{context_isolation_forward.1} parent=11 // pred_fallthru
          _
      $region12: #{context_isolation_forward.1} parent=5 // pred_fallthru
        _
      %p176 = scmp.lt.s32.totalorder %s17, 2
      // Predicated region
      $region25: #{context_isolation_forward.1} parent=5 // pred_check
        %p177 = pneg %p176
      $region26: #{context_isolation_forward.1} parent=5 // pred_check_branch
        %179 = sbr.rel (%p177) target = $region28
      $region27: #{context_isolation_forward.1} parent=5 // pred_region
        // Predicated region
        $region29: #{context_isolation_forward.1} parent=27 // pred_check
          %p180 = pneg %p37
        $region30: #{context_isolation_forward.1} parent=27 // pred_check_branch
          %182 = sbr.rel (%p180) target = $region32
        $region31: #{context_isolation_forward.1} parent=27 // pred_region
          %s183 = sand.u32 %s27, 1
          %s184 = scalar_lea.sflag [#allocation3], %s183
          %s185 = sand.u32 %s27, 1
          %s186 = smul.addr %s185, 396
          %s187 = scalar_lea.vmem [#allocation2], %s186
          %s188 = smul.u32 33, %s17
          %s189 = ssub.s32 65, %s188
          %p190 = scmp.lt.s32.totalorder %s189, 33
          %s191 = scalar_select %p190, %s189, 33
          %s192 = smul.u32 64, %s191
          %s193 = smul.u32 %s192, 3
          %s195 = ssub.s32 6336, %s193
          %196 = vsyncadd %s184, %s195
          %p197 = scmp.ne.s32.totalorder 0, %s193
          %s198 = smul.addr %s188, 3
          %s199 = smul.addr %s198, 64
          %s200 = scalar_lea.hbm %s0, %s199
          %s201 = smul.u32 12, %s191
          %s202 = sshll.u32 %s187, 4
          %s203 = int_to_ptr.vmem [resolvable:$true] %s202
          %s204 = sshll.u32 %s201, 4
          %208 = dma.hbm_to_vmem [thread:$0]  (%p197), %s200, %s204, %s203, %s184, 192, 192, 12
        $region32: #{context_isolation_forward.1} parent=27 // pred_fallthru
          _
      $region28: #{context_isolation_forward.1} parent=5 // pred_fallthru
        _
      %p209 = scmp.le.s32.totalorder 1, %s17
      %p210 = scmp.lt.s32.totalorder %s17, 3
      %p211 = pnand %p209, %p210
      %p212 = pneg %p211
      // Predicated region
      $region33: #{context_isolation_forward.1} parent=5 // pred_check
        _
      $region34: #{context_isolation_forward.1} parent=5 // pred_check_branch
        %214 = sbr.rel (%p211) target = $region36
      $region35: #{context_isolation_forward.1} parent=5 // pred_region
        %s215 = ssub.s32 %s17, 1
        %s216 = sand.u32 %s30, 1
        %s217 = scalar_lea.sflag [#allocation3], %s216
        %s218 = sand.u32 %s30, 1
        %s219 = smul.addr %s218, 396
        %s220 = scalar_lea.vmem [#allocation2], %s219
        // Predicated region
        $region37: #{context_isolation_forward.1} parent=35 // pred_check
          %p221 = pneg %p43
        $region38: #{context_isolation_forward.1} parent=35 // pred_check_branch
          %223 = sbr.rel (%p221) target = $region40
        $region39: #{context_isolation_forward.1} parent=35 // pred_region
          %224 = dma.done %s217, 6336
        $region40: #{context_isolation_forward.1} parent=35 // pred_fallthru
          _
        // Predicated region
        $region41: #{context_isolation_forward.1} parent=35 // pred_check
          %p225 = pneg %p64
        $region42: #{context_isolation_forward.1} parent=35 // pred_check_branch
          %227 = sbr.rel (%p225) target = $region44
        $region43: #{context_isolation_forward.1} parent=35 // pred_region
          %228 = dma.done [#allocation6], 6144
        $region44: #{context_isolation_forward.1} parent=35 // pred_fallthru
          _
        // Predicated region
        $region45: #{context_isolation_forward.1} parent=35 // pred_check
          %p229 = pneg %p85
        $region46: #{context_isolation_forward.1} parent=35 // pred_check_branch
          %231 = sbr.rel (%p229) target = $region48
        $region47: #{context_isolation_forward.1} parent=35 // pred_region
          %232 = dma.done [#allocation6], 6144
        $region48: #{context_isolation_forward.1} parent=35 // pred_fallthru
          _
        %s233 = sand.u32 %s30, 1
        %s234 = scalar_lea.sflag [#allocation3], %s233
        %s235 = sand.u32 %s30, 1
        %s236 = smul.addr %s235, 396
        %s237 = scalar_lea.vmem [#allocation2], %s236
        %p238 = pneg %p43
        %p239 = pneg %p40
        %p240 = pneg %p64
        %p241 = pneg %p61
        %p242 = pneg %p85
        %p243 = pneg %p82
        %p244 = pneg %p106
        %p245 = pneg %p103
        %p246 = pneg %p132
        %p247 = pneg %p129
        %s248 = sand.u32 %s119, 1
        %s249 = scalar_lea.sflag [#allocation4], %s248
        %s250 = sand.u32 %s119, 1
        %s251 = smul.addr %s250, 396
        %s252 = scalar_lea.vmem [#allocation8], %s251
        %s253 = smul.u32 33, %s22
        %s254 = ssub.s32 65, %s253
        %p255 = scmp.lt.s32.totalorder %s254, 33
        %s256 = scalar_select %p255, %s254, 33
        %s257 = smul.u32 64, %s256
        %s258 = smul.u32 %s257, 3
        %s259 = smul.u32 33, %s22
        %s260 = ssub.s32 65, %s259
        %p261 = scmp.lt.s32.totalorder %s260, 33
        %s262 = scalar_select %p261, %s260, 33
        %s263 = smul.u32 64, %s262
        %s264 = smul.u32 %s263, 3
        %v266 = vld [vmem:[%s220] sm:$0xff]
        %v267 = vld [vmem:[%s220 + $0x8] sm:$0xf]
        %v268 = vld [vmem:[%s220 + $0xc] sm:$0xff]
        %v269 = vld [vmem:[%s220 + $0x14] sm:$0xf]
        %v270 = vld [vmem:[%s220 + $0x18] sm:$0xff]
        %v271 = vld [vmem:[%s220 + $0x20] sm:$0xf]
        %v272 = vld [vmem:[%s220 + $0x24] sm:$0xff]
        %v273 = vld [vmem:[%s220 + $0x2c] sm:$0xf]
        %v274 = vld [vmem:[%s220 + $0x30] sm:$0xff]
        %v275 = vld [vmem:[%s220 + $0x38] sm:$0xf]
        %v276 = vld [vmem:[%s220 + $0x3c] sm:$0xff]
        %v277 = vld [vmem:[%s220 + $0x44] sm:$0xf]
        %v278 = vld [vmem:[%s220 + $0x48] sm:$0xff]
        %v279 = vld [vmem:[%s220 + $0x50] sm:$0xf]
        %v280 = vld [vmem:[%s220 + $0x54] sm:$0xff]
        %v281 = vld [vmem:[%s220 + $0x5c] sm:$0xf]
        %v282 = vld [vmem:[%s220 + $0x60] sm:$0xff]
        %v283 = vld [vmem:[%s220 + $0x68] sm:$0xf]
        %v284 = vld [vmem:[%s220 + $0x6c] sm:$0xff]
        %v285 = vld [vmem:[%s220 + $0x74] sm:$0xf]
        %v286 = vld [vmem:[%s220 + $0x78] sm:$0xff]
        %v287 = vld [vmem:[%s220 + $0x80] sm:$0xf]
        %v288 = vld [vmem:[%s220 + $0x84] sm:$0xff]
        %v289 = vld [vmem:[%s220 + $0x8c] sm:$0xf]
        %v290 = vld [vmem:[%s220 + $0x90] sm:$0xff]
        %v291 = vld [vmem:[%s220 + $0x98] sm:$0xf]
        %v292 = vld [vmem:[%s220 + $0x9c] sm:$0xff]
        %v293 = vld [vmem:[%s220 + $0xa4] sm:$0xf]
        %v294 = vld [vmem:[%s220 + $0xa8] sm:$0xff]
        %v295 = vld [vmem:[%s220 + $0xb0] sm:$0xf]
        %v296 = vld [vmem:[%s220 + $0xb4] sm:$0xff]
        %v297 = vld [vmem:[%s220 + $0xbc] sm:$0xf]
        %v298 = vld [vmem:[%s220 + $0xc0] sm:$0xff]
        %v299 = vld [vmem:[%s220 + $0xc8] sm:$0xf]
        %v300 = vld [vmem:[%s220 + $0xcc] sm:$0xff]
        %v301 = vld [vmem:[%s220 + $0xd4] sm:$0xf]
        %v302 = vld [vmem:[%s220 + $0xd8] sm:$0xff]
        %v303 = vld [vmem:[%s220 + $0xe0] sm:$0xf]
        %v304 = vld [vmem:[%s220 + $0xe4] sm:$0xff]
        %v305 = vld [vmem:[%s220 + $0xec] sm:$0xf]
        %v306 = vld [vmem:[%s220 + $0xf0] sm:$0xff]
        %v307 = vld [vmem:[%s220 + $0xf8] sm:$0xf]
        %v308 = vld [vmem:[%s220 + $0xfc] sm:$0xff]
        %v309 = vld [vmem:[%s220 + $0x104] sm:$0xf]
        %v310 = vld [vmem:[%s220 + $0x108] sm:$0xff]
        %v311 = vld [vmem:[%s220 + $0x110] sm:$0xf]
        %v312 = vld [vmem:[%s220 + $0x114] sm:$0xff]
        %v313 = vld [vmem:[%s220 + $0x11c] sm:$0xf]
        %v314 = vld [vmem:[%s220 + $0x120] sm:$0xff]
        %v315 = vld [vmem:[%s220 + $0x128] sm:$0xf]
        %v316 = vld [vmem:[%s220 + $0x12c] sm:$0xff]
        %v317 = vld [vmem:[%s220 + $0x134] sm:$0xf]
        %v318 = vld [vmem:[%s220 + $0x138] sm:$0xff]
        %v319 = vld [vmem:[%s220 + $0x140] sm:$0xf]
        %v320 = vld [vmem:[%s220 + $0x144] sm:$0xff]
        %v321 = vld [vmem:[%s220 + $0x14c] sm:$0xf]
        %v322 = vld [vmem:[%s220 + $0x150] sm:$0xff]
        %v323 = vld [vmem:[%s220 + $0x158] sm:$0xf]
        %v324 = vld [vmem:[%s220 + $0x15c] sm:$0xff]
        %v325 = vld [vmem:[%s220 + $0x164] sm:$0xf]
        %v326 = vld [vmem:[%s220 + $0x168] sm:$0xff]
        %v327 = vld [vmem:[%s220 + $0x170] sm:$0xf]
        %v328 = vld [vmem:[%s220 + $0x174] sm:$0xff]
        %v329 = vld [vmem:[%s220 + $0x17c] sm:$0xf]
        %v330 = vld [vmem:[%s220 + $0x180] sm:$0xff]
        %v331 = vld [vmem:[%s220 + $0x188] sm:$0xf]
        %v332 = vld [vmem:[%s3] ss:$4 sm:$0x3]
        %s333 = scalar_lea.vmem %s3, 1
        %v334 = vld [vmem:[%s333] ss:$4 sm:$0x7]
        %s335 = scalar_lea.vmem %s3, 2
        %v336 = vld [vmem:[%s335] ss:$4 sm:$0x7]
        %s337 = scalar_lea.vmem %s3, 3
        %v338 = vld [vmem:[%s337] ss:$4 sm:$0x7]
        %v339 = vld [vmem:[#allocation5] sm:$0xff]
        %v340 = vld [vmem:[#allocation5 + $0x8] sm:$0xff]
        %v341 = vld [vmem:[#allocation5 + $0x10] sm:$0xff]
        %v342 = vld [vmem:[#allocation5 + $0x18] sm:$0xff]
        %v343 = vld [vmem:[#allocation5 + $0x20] sm:$0xff]
        %v344 = vld [vmem:[#allocation5 + $0x28] sm:$0xff]
        %v345 = vld [vmem:[#allocation5 + $0x30] sm:$0xff]
        %v346 = vld [vmem:[#allocation5 + $0x38] sm:$0xff]
        %v347 = vld [vmem:[#allocation5 + $0x40] sm:$0xff]
        %v348 = vld [vmem:[#allocation5 + $0x48] sm:$0xff]
        %v349 = vld [vmem:[#allocation5 + $0x50] sm:$0xff]
        %v350 = vld [vmem:[#allocation5 + $0x58] sm:$0xff]
        %v351 = vld [vmem:[#allocation5 + $0x60] sm:$0xff]
        %v352 = vld [vmem:[#allocation5 + $0x68] sm:$0xff]
        %v353 = vld [vmem:[#allocation5 + $0x70] sm:$0xff]
        %v354 = vld [vmem:[#allocation5 + $0x78] sm:$0xff]
        %v355 = vld [vmem:[#allocation5 + $0x80] sm:$0xff]
        %v356 = vld [vmem:[#allocation5 + $0x88] sm:$0xff]
        %v357 = vld [vmem:[#allocation5 + $0x90] sm:$0xff]
        %v358 = vld [vmem:[#allocation5 + $0x98] sm:$0xff]
        %v359 = vld [vmem:[#allocation5 + $0xa0] sm:$0xff]
        %v360 = vld [vmem:[#allocation5 + $0xa8] sm:$0xff]
        %v361 = vld [vmem:[#allocation5 + $0xb0] sm:$0xff]
        %v362 = vld [vmem:[#allocation5 + $0xb8] sm:$0xff]
        %v363 = vld [vmem:[#allocation5 + $0xc0] sm:$0xff]
        %v364 = vld [vmem:[#allocation5 + $0xc8] sm:$0xff]
        %v365 = vld [vmem:[#allocation5 + $0xd0] sm:$0xff]
        %v366 = vld [vmem:[#allocation5 + $0xd8] sm:$0xff]
        %v367 = vld [vmem:[#allocation5 + $0xe0] sm:$0xff]
        %v368 = vld [vmem:[#allocation5 + $0xe8] sm:$0xff]
        %v369 = vld [vmem:[#allocation5 + $0xf0] sm:$0xff]
        %v370 = vld [vmem:[#allocation5 + $0xf8] sm:$0xff]
        %v371 = vld [vmem:[#allocation5 + $0x100] sm:$0xff]
        %v372 = vld [vmem:[#allocation5 + $0x108] sm:$0xff]
        %v373 = vld [vmem:[#allocation5 + $0x110] sm:$0xff]
        %v374 = vld [vmem:[#allocation5 + $0x118] sm:$0xff]
        %v375 = vld [vmem:[#allocation5 + $0x120] sm:$0xff]
        %v376 = vld [vmem:[#allocation5 + $0x128] sm:$0xff]
        %v377 = vld [vmem:[#allocation5 + $0x130] sm:$0xff]
        %v378 = vld [vmem:[#allocation5 + $0x138] sm:$0xff]
        %v379 = vld [vmem:[#allocation5 + $0x140] sm:$0xff]
        %v380 = vld [vmem:[#allocation5 + $0x148] sm:$0xff]
        %v381 = vld [vmem:[#allocation5 + $0x150] sm:$0xff]
        %v382 = vld [vmem:[#allocation5 + $0x158] sm:$0xff]
        %v383 = vld [vmem:[#allocation5 + $0x160] sm:$0xff]
        %v384 = vld [vmem:[#allocation5 + $0x168] sm:$0xff]
        %v385 = vld [vmem:[#allocation5 + $0x170] sm:$0xff]
        %v386 = vld [vmem:[#allocation5 + $0x178] sm:$0xff]
        %v388 = vlaneseq
        %v389 = vshrl.u32 %v388, 7
        %v390 = vsub.s32 0, %v389
        %v391 = vrot.slane %v332, %v390
        %v392 = vlaneseq
        %v393 = vshrl.u32 %v392, 7
        %v394 = vsub.s32 1, %v393
        %v395 = vrot.slane %v332, %v394
        %v464 = vunpack.c.l.b16 %v266
        %v465 = vunpack.c.h.b16 %v266
        %v466 = vunpack.c.l.b16 %v267
        %v467 = vunpack.c.l.b16 %v268
        %v468 = vunpack.c.h.b16 %v268
        %v469 = vunpack.c.l.b16 %v269
        %v470 = vunpack.c.l.b16 %v270
        %v471 = vunpack.c.h.b16 %v270
        %v472 = vunpack.c.l.b16 %v271
        %v473 = vunpack.c.l.b16 %v272
        %v474 = vunpack.c.h.b16 %v272
        %v475 = vunpack.c.l.b16 %v273
        %v476 = vunpack.c.l.b16 %v274
        %v477 = vunpack.c.h.b16 %v274
        %v478 = vunpack.c.l.b16 %v275
        %v479 = vunpack.c.l.b16 %v276
        %v480 = vunpack.c.h.b16 %v276
        %v481 = vunpack.c.l.b16 %v277
        %v482 = vunpack.c.l.b16 %v278
        %v483 = vunpack.c.h.b16 %v278
        %v484 = vunpack.c.l.b16 %v279
        %v485 = vunpack.c.l.b16 %v280
        %v486 = vunpack.c.h.b16 %v280
        %v487 = vunpack.c.l.b16 %v281
        %v488 = vunpack.c.l.b16 %v282
        %v489 = vunpack.c.h.b16 %v282
        %v490 = vunpack.c.l.b16 %v283
        %v491 = vunpack.c.l.b16 %v284
        %v492 = vunpack.c.h.b16 %v284
        %v493 = vunpack.c.l.b16 %v285
        %v494 = vunpack.c.l.b16 %v286
        %v495 = vunpack.c.h.b16 %v286
        %v496 = vunpack.c.l.b16 %v287
        %v497 = vunpack.c.l.b16 %v288
        %v498 = vunpack.c.h.b16 %v288
        %v499 = vunpack.c.l.b16 %v289
        %v500 = vunpack.c.l.b16 %v290
        %v501 = vunpack.c.h.b16 %v290
        %v502 = vunpack.c.l.b16 %v291
        %v503 = vunpack.c.l.b16 %v292
        %v504 = vunpack.c.h.b16 %v292
        %v505 = vunpack.c.l.b16 %v293
        %v506 = vunpack.c.l.b16 %v294
        %v507 = vunpack.c.h.b16 %v294
        %v508 = vunpack.c.l.b16 %v295
        %v509 = vunpack.c.l.b16 %v296
        %v510 = vunpack.c.h.b16 %v296
        %v511 = vunpack.c.l.b16 %v297
        %v512 = vunpack.c.l.b16 %v298
        %v513 = vunpack.c.h.b16 %v298
        %v514 = vunpack.c.l.b16 %v299
        %v515 = vunpack.c.l.b16 %v300
        %v516 = vunpack.c.h.b16 %v300
        %v517 = vunpack.c.l.b16 %v301
        %v518 = vunpack.c.l.b16 %v302
        %v519 = vunpack.c.h.b16 %v302
        %v520 = vunpack.c.l.b16 %v303
        %v521 = vunpack.c.l.b16 %v304
        %v522 = vunpack.c.h.b16 %v304
        %v523 = vunpack.c.l.b16 %v305
        %v524 = vunpack.c.l.b16 %v306
        %v525 = vunpack.c.h.b16 %v306
        %v526 = vunpack.c.l.b16 %v307
        %v527 = vunpack.c.l.b16 %v308
        %v528 = vunpack.c.h.b16 %v308
        %v529 = vunpack.c.l.b16 %v309
        %v530 = vunpack.c.l.b16 %v310
        %v531 = vunpack.c.h.b16 %v310
        %v532 = vunpack.c.l.b16 %v311
        %v533 = vunpack.c.l.b16 %v312
        %v534 = vunpack.c.h.b16 %v312
        %v535 = vunpack.c.l.b16 %v313
        %v536 = vunpack.c.l.b16 %v314
        %v537 = vunpack.c.h.b16 %v314
        %v538 = vunpack.c.l.b16 %v315
        %v539 = vunpack.c.l.b16 %v316
        %v540 = vunpack.c.h.b16 %v316
        %v541 = vunpack.c.l.b16 %v317
        %v542 = vunpack.c.l.b16 %v318
        %v543 = vunpack.c.h.b16 %v318
        %v544 = vunpack.c.l.b16 %v319
        %v545 = vunpack.c.l.b16 %v320
        %v546 = vunpack.c.h.b16 %v320
        %v547 = vunpack.c.l.b16 %v321
        %v548 = vunpack.c.l.b16 %v322
        %v549 = vunpack.c.h.b16 %v322
        %v550 = vunpack.c.l.b16 %v323
        %v551 = vunpack.c.l.b16 %v324
        %v552 = vunpack.c.h.b16 %v324
        %v553 = vunpack.c.l.b16 %v325
        %v554 = vunpack.c.l.b16 %v326
        %v555 = vunpack.c.h.b16 %v326
        %v556 = vunpack.c.l.b16 %v327
        %v557 = vunpack.c.l.b16 %v328
        %v558 = vunpack.c.h.b16 %v328
        %v559 = vunpack.c.l.b16 %v329
        %v560 = vunpack.c.l.b16 %v330
        %v561 = vunpack.c.h.b16 %v330
        %v562 = vunpack.c.l.b16 %v331
        %v563 = vpack.c.b16 %v467, %v464
        %v564 = vpack.c.b16 %v468, %v465
        %v565 = vpack.c.b16 %v469, %v466
        %v566 = vpack.c.b16 %v473, %v470
        %v567 = vpack.c.b16 %v474, %v471
        %v568 = vpack.c.b16 %v475, %v472
        %v569 = vpack.c.b16 %v479, %v476
        %v570 = vpack.c.b16 %v480, %v477
        %v571 = vpack.c.b16 %v481, %v478
        %v572 = vpack.c.b16 %v485, %v482
        %v573 = vpack.c.b16 %v486, %v483
        %v574 = vpack.c.b16 %v487, %v484
        %v575 = vpack.c.b16 %v491, %v488
        %v576 = vpack.c.b16 %v492, %v489
        %v577 = vpack.c.b16 %v493, %v490
        %v578 = vpack.c.b16 %v497, %v494
        %v579 = vpack.c.b16 %v498, %v495
        %v580 = vpack.c.b16 %v499, %v496
        %v581 = vpack.c.b16 %v503, %v500
        %v582 = vpack.c.b16 %v504, %v501
        %v583 = vpack.c.b16 %v505, %v502
        %v584 = vpack.c.b16 %v509, %v506
        %v585 = vpack.c.b16 %v510, %v507
        %v586 = vpack.c.b16 %v511, %v508
        %v587 = vpack.c.b16 %v515, %v512
        %v588 = vpack.c.b16 %v516, %v513
        %v589 = vpack.c.b16 %v517, %v514
        %v590 = vpack.c.b16 %v521, %v518
        %v591 = vpack.c.b16 %v522, %v519
        %v592 = vpack.c.b16 %v523, %v520
        %v593 = vpack.c.b16 %v527, %v524
        %v594 = vpack.c.b16 %v528, %v525
        %v595 = vpack.c.b16 %v529, %v526
        %v596 = vpack.c.b16 %v533, %v530
        %v597 = vpack.c.b16 %v534, %v531
        %v598 = vpack.c.b16 %v535, %v532
        %v599 = vpack.c.b16 %v539, %v536
        %v600 = vpack.c.b16 %v540, %v537
        %v601 = vpack.c.b16 %v541, %v538
        %v602 = vpack.c.b16 %v545, %v542
        %v603 = vpack.c.b16 %v546, %v543
        %v604 = vpack.c.b16 %v547, %v544
        %v605 = vpack.c.b16 %v551, %v548
        %v606 = vpack.c.b16 %v552, %v549
        %v607 = vpack.c.b16 %v553, %v550
        %v608 = vpack.c.b16 %v557, %v554
        %v609 = vpack.c.b16 %v558, %v555
        %v610 = vpack.c.b16 %v559, %v556
        %v611 = vpack.c.b16 %v560, %v560
        %v612 = vpack.c.b16 %v561, %v561
        %v613 = vpack.c.b16 %v562, %v562
        %v713 = vunpack.c.l.b16 %v339
        %v714 = vunpack.c.h.b16 %v339
        %v715 = vunpack.c.l.b16 %v340
        %v716 = vunpack.c.h.b16 %v340
        %v717 = vunpack.c.l.b16 %v341
        %v718 = vunpack.c.h.b16 %v341
        %v719 = vunpack.c.l.b16 %v342
        %v720 = vunpack.c.h.b16 %v342
        %v721 = vunpack.c.l.b16 %v343
        %v722 = vunpack.c.h.b16 %v343
        %v723 = vunpack.c.l.b16 %v344
        %v724 = vunpack.c.h.b16 %v344
        %v725 = vunpack.c.l.b16 %v345
        %v726 = vunpack.c.h.b16 %v345
        %v727 = vunpack.c.l.b16 %v346
        %v728 = vunpack.c.h.b16 %v346
        %v729 = vunpack.c.l.b16 %v347
        %v730 = vunpack.c.h.b16 %v347
        %v731 = vunpack.c.l.b16 %v348
        %v732 = vunpack.c.h.b16 %v348
        %v733 = vunpack.c.l.b16 %v349
        %v734 = vunpack.c.h.b16 %v349
        %v735 = vunpack.c.l.b16 %v350
        %v736 = vunpack.c.h.b16 %v350
        %v737 = vunpack.c.l.b16 %v351
        %v738 = vunpack.c.h.b16 %v351
        %v739 = vunpack.c.l.b16 %v352
        %v740 = vunpack.c.h.b16 %v352
        %v741 = vunpack.c.l.b16 %v353
        %v742 = vunpack.c.h.b16 %v353
        %v743 = vunpack.c.l.b16 %v354
        %v744 = vunpack.c.h.b16 %v354
        %v745 = vunpack.c.l.b16 %v355
        %v746 = vunpack.c.h.b16 %v355
        %v747 = vunpack.c.l.b16 %v356
        %v748 = vunpack.c.h.b16 %v356
        %v749 = vunpack.c.l.b16 %v357
        %v750 = vunpack.c.h.b16 %v357
        %v751 = vunpack.c.l.b16 %v358
        %v752 = vunpack.c.h.b16 %v358
        %v753 = vunpack.c.l.b16 %v359
        %v754 = vunpack.c.h.b16 %v359
        %v755 = vunpack.c.l.b16 %v360
        %v756 = vunpack.c.h.b16 %v360
        %v757 = vunpack.c.l.b16 %v361
        %v758 = vunpack.c.h.b16 %v361
        %v759 = vunpack.c.l.b16 %v362
        %v760 = vunpack.c.h.b16 %v362
        %v761 = vunpack.c.l.b16 %v363
        %v762 = vunpack.c.h.b16 %v363
        %v763 = vunpack.c.l.b16 %v364
        %v764 = vunpack.c.h.b16 %v364
        %v765 = vunpack.c.l.b16 %v365
        %v766 = vunpack.c.h.b16 %v365
        %v767 = vunpack.c.l.b16 %v366
        %v768 = vunpack.c.h.b16 %v366
        %v769 = vunpack.c.l.b16 %v367
        %v770 = vunpack.c.h.b16 %v367
        %v771 = vunpack.c.l.b16 %v368
        %v772 = vunpack.c.h.b16 %v368
        %v773 = vunpack.c.l.b16 %v369
        %v774 = vunpack.c.h.b16 %v369
        %v775 = vunpack.c.l.b16 %v370
        %v776 = vunpack.c.h.b16 %v370
        %v777 = vunpack.c.l.b16 %v371
        %v778 = vunpack.c.h.b16 %v371
        %v779 = vunpack.c.l.b16 %v372
        %v780 = vunpack.c.h.b16 %v372
        %v781 = vunpack.c.l.b16 %v373
        %v782 = vunpack.c.h.b16 %v373
        %v783 = vunpack.c.l.b16 %v374
        %v784 = vunpack.c.h.b16 %v374
        %v785 = vunpack.c.l.b16 %v375
        %v786 = vunpack.c.h.b16 %v375
        %v787 = vunpack.c.l.b16 %v376
        %v788 = vunpack.c.h.b16 %v376
        %v789 = vunpack.c.l.b16 %v377
        %v790 = vunpack.c.h.b16 %v377
        %v791 = vunpack.c.l.b16 %v378
        %v792 = vunpack.c.h.b16 %v378
        %v793 = vunpack.c.l.b16 %v379
        %v794 = vunpack.c.h.b16 %v379
        %v795 = vunpack.c.l.b16 %v380
        %v796 = vunpack.c.h.b16 %v380
        %v797 = vunpack.c.l.b16 %v381
        %v798 = vunpack.c.h.b16 %v381
        %v799 = vunpack.c.l.b16 %v382
        %v800 = vunpack.c.h.b16 %v382
        %v801 = vunpack.c.l.b16 %v383
        %v802 = vunpack.c.h.b16 %v383
        %v803 = vunpack.c.l.b16 %v384
        %v804 = vunpack.c.h.b16 %v384
        %v805 = vunpack.c.l.b16 %v385
        %v806 = vunpack.c.h.b16 %v385
        %v807 = vunpack.c.l.b16 %v386
        %v808 = vunpack.c.h.b16 %v386
        %v809 = vpack.c.b16 %v715, %v713
        %v810 = vpack.c.b16 %v716, %v714
        %v811 = vpack.c.b16 %v719, %v717
        %v812 = vpack.c.b16 %v720, %v718
        %v813 = vpack.c.b16 %v723, %v721
        %v814 = vpack.c.b16 %v724, %v722
        %v815 = vpack.c.b16 %v727, %v725
        %v816 = vpack.c.b16 %v728, %v726
        %v817 = vpack.c.b16 %v731, %v729
        %v818 = vpack.c.b16 %v732, %v730
        %v819 = vpack.c.b16 %v735, %v733
        %v820 = vpack.c.b16 %v736, %v734
        %v821 = vpack.c.b16 %v739, %v737
        %v822 = vpack.c.b16 %v740, %v738
        %v823 = vpack.c.b16 %v743, %v741
        %v824 = vpack.c.b16 %v744, %v742
        %v825 = vpack.c.b16 %v747, %v745
        %v826 = vpack.c.b16 %v748, %v746
        %v827 = vpack.c.b16 %v751, %v749
        %v828 = vpack.c.b16 %v752, %v750
        %v829 = vpack.c.b16 %v755, %v753
        %v830 = vpack.c.b16 %v756, %v754
        %v831 = vpack.c.b16 %v759, %v757
        %v832 = vpack.c.b16 %v760, %v758
        %v833 = vpack.c.b16 %v763, %v761
        %v834 = vpack.c.b16 %v764, %v762
        %v835 = vpack.c.b16 %v767, %v765
        %v836 = vpack.c.b16 %v768, %v766
        %v837 = vpack.c.b16 %v771, %v769
        %v838 = vpack.c.b16 %v772, %v770
        %v839 = vpack.c.b16 %v775, %v773
        %v840 = vpack.c.b16 %v776, %v774
        %v841 = vpack.c.b16 %v779, %v777
        %v842 = vpack.c.b16 %v780, %v778
        %v843 = vpack.c.b16 %v783, %v781
        %v844 = vpack.c.b16 %v784, %v782
        %v845 = vpack.c.b16 %v787, %v785
        %v846 = vpack.c.b16 %v788, %v786
        %v847 = vpack.c.b16 %v791, %v789
        %v848 = vpack.c.b16 %v792, %v790
        %v849 = vpack.c.b16 %v795, %v793
        %v850 = vpack.c.b16 %v796, %v794
        %v851 = vpack.c.b16 %v799, %v797
        %v852 = vpack.c.b16 %v800, %v798
        %v853 = vpack.c.b16 %v803, %v801
        %v854 = vpack.c.b16 %v804, %v802
        %v855 = vpack.c.b16 %v807, %v805
        %v856 = vpack.c.b16 %v808, %v806
        %905 = vmatprep.subr.bf16.mxu0 %v810
        %906 = vmatpush1.bf16.msra.mxu0 %v809
        %907 = vmatprep.subr.bf16.mxu0 %v812
        %908 = vmatpush1.bf16.msra.mxu0 %v811
        %909 = vmatprep.subr.bf16.mxu0 %v814
        %910 = vmatpush1.bf16.msra.mxu0 %v813
        %911 = vmatprep.subr.bf16.mxu0 %v816
        %912 = vmatpush1.bf16.msra.mxu0 %v815
        %913 = vmatprep.subr.bf16.mxu0 %v818
        %914 = vmatpush1.bf16.msra.mxu0 %v817
        %915 = vmatprep.subr.bf16.mxu0 %v820
        %916 = vmatpush1.bf16.msra.mxu0 %v819
        %917 = vmatprep.subr.bf16.mxu0 %v822
        %918 = vmatpush1.bf16.msra.mxu0 %v821
        %919 = vmatprep.subr.bf16.mxu0 %v824
        %920 = vmatpush1.bf16.msra.mxu0 %v823
        %921 = vmatprep.subr.bf16.mxu0 %v826
        %922 = vmatpush1.bf16.msra.mxu0 %v825
        %923 = vmatprep.subr.bf16.mxu0 %v828
        %924 = vmatpush1.bf16.msra.mxu0 %v827
        %925 = vmatprep.subr.bf16.mxu0 %v830
        %926 = vmatpush1.bf16.msra.mxu0 %v829
        %927 = vmatprep.subr.bf16.mxu0 %v832
        %928 = vmatpush1.bf16.msra.mxu0 %v831
        %929 = vmatprep.subr.bf16.mxu0 %v834
        %930 = vmatpush1.bf16.msra.mxu0 %v833
        %931 = vmatprep.subr.bf16.mxu0 %v836
        %932 = vmatpush1.bf16.msra.mxu0 %v835
        %933 = vmatprep.subr.bf16.mxu0 %v838
        %934 = vmatpush1.bf16.msra.mxu0 %v837
        %935 = vmatprep.subr.bf16.mxu0 %v840
        %936 = vmatpush1.bf16.msra.mxu0 %v839
        %937 = vmatprep.mubr.bf16.mxu0 %v564
        %938 = vmatmul.mubr.bf16.gmra.mrb[0].mxu0 %v563
        %v939 = vpop.f32.mrb[0].mxu0
        %v940 = vadd.f32 %v391, %v939
        %v941 = vpop.f32.mrb[0].mxu0
        %v942 = vadd.f32 %v395, %v941
        %v943 = vpop.f32.mrb[0].mxu0
        %v944 = vadd.f32 %v391, %v943
        %v945 = vpop.f32.mrb[0].mxu0
        %v946 = vadd.f32 %v395, %v945
        %947 = vmatprep.mubr.bf16.mxu0 %v567
        %948 = vmatmul.mubr.bf16.gmra.mrb[0].mxu0 %v566
        %v949 = vpop.f32.mrb[0].mxu0
        %v950 = vadd.f32 %v391, %v949
        %v951 = vpop.f32.mrb[0].mxu0
        %v952 = vadd.f32 %v395, %v951
        %v953 = vpop.f32.mrb[0].mxu0
        %v954 = vadd.f32 %v391, %v953
        %v955 = vpop.f32.mrb[0].mxu0
        %v956 = vadd.f32 %v395, %v955
        %957 = vmatprep.mubr.bf16.mxu0 %v570
        %958 = vmatmul.mubr.bf16.gmra.mrb[0].mxu0 %v569
        %v959 = vpop.f32.mrb[0].mxu0
        %v960 = vadd.f32 %v391, %v959
        %v961 = vpop.f32.mrb[0].mxu0
        %v962 = vadd.f32 %v395, %v961
        %v963 = vpop.f32.mrb[0].mxu0
        %v964 = vadd.f32 %v391, %v963
        %v965 = vpop.f32.mrb[0].mxu0
        %v966 = vadd.f32 %v395, %v965
        %967 = vmatprep.mubr.bf16.mxu0 %v573
        %968 = vmatmul.mubr.bf16.gmra.mrb[0].mxu0 %v572
        %v969 = vpop.f32.mrb[0].mxu0
        %v970 = vadd.f32 %v391, %v969
        %v971 = vpop.f32.mrb[0].mxu0
        %v972 = vadd.f32 %v395, %v971
        %v973 = vpop.f32.mrb[0].mxu0
        %v974 = vadd.f32 %v391, %v973
        %v975 = vpop.f32.mrb[0].mxu0
        %v976 = vadd.f32 %v395, %v975
        %977 = vmatprep.mubr.bf16.mxu0 %v576
        %978 = vmatmul.mubr.bf16.gmra.mrb[0].mxu0 %v575
        %v979 = vpop.f32.mrb[0].mxu0
        %v980 = vadd.f32 %v391, %v979
        %v981 = vpop.f32.mrb[0].mxu0
        %v982 = vadd.f32 %v395, %v981
        %v983 = vpop.f32.mrb[0].mxu0
        %v984 = vadd.f32 %v391, %v983
        %v985 = vpop.f32.mrb[0].mxu0
        %v986 = vadd.f32 %v395, %v985
        %987 = vmatprep.mubr.bf16.mxu0 %v579
        %988 = vmatmul.mubr.bf16.gmra.mrb[0].mxu0 %v578
        %v989 = vpop.f32.mrb[0].mxu0
        %v990 = vadd.f32 %v391, %v989
        %v991 = vpop.f32.mrb[0].mxu0
        %v992 = vadd.f32 %v395, %v991
        %v993 = vpop.f32.mrb[0].mxu0
        %v994 = vadd.f32 %v391, %v993
        %v995 = vpop.f32.mrb[0].mxu0
        %v996 = vadd.f32 %v395, %v995
        %997 = vmatprep.mubr.bf16.mxu0 %v582
        %998 = vmatmul.mubr.bf16.gmra.mrb[0].mxu0 %v581
        %v999 = vpop.f32.mrb[0].mxu0
        %v1000 = vadd.f32 %v391, %v999
        %v1001 = vpop.f32.mrb[0].mxu0
        %v1002 = vadd.f32 %v395, %v1001
        %v1003 = vpop.f32.mrb[0].mxu0
        %v1004 = vadd.f32 %v391, %v1003
        %v1005 = vpop.f32.mrb[0].mxu0
        %v1006 = vadd.f32 %v395, %v1005
        %1007 = vmatprep.mubr.bf16.mxu0 %v585
        %1008 = vmatmul.mubr.bf16.gmra.mrb[0].mxu0 %v584
        %v1009 = vpop.f32.mrb[0].mxu0
        %v1010 = vadd.f32 %v391, %v1009
        %v1011 = vpop.f32.mrb[0].mxu0
        %v1012 = vadd.f32 %v395, %v1011
        %v1013 = vpop.f32.mrb[0].mxu0
        %v1014 = vadd.f32 %v391, %v1013
        %v1015 = vpop.f32.mrb[0].mxu0
        %v1016 = vadd.f32 %v395, %v1015
        %1017 = vmatprep.mubr.bf16.mxu0 %v588
        %1018 = vmatmul.mubr.bf16.gmra.mrb[0].mxu0 %v587
        %v1019 = vpop.f32.mrb[0].mxu0
        %v1020 = vadd.f32 %v391, %v1019
        %v1021 = vpop.f32.mrb[0].mxu0
        %v1022 = vadd.f32 %v395, %v1021
        %v1023 = vpop.f32.mrb[0].mxu0
        %v1024 = vadd.f32 %v391, %v1023
        %v1025 = vpop.f32.mrb[0].mxu0
        %v1026 = vadd.f32 %v395, %v1025
        %1027 = vmatprep.mubr.bf16.mxu0 %v591
        %1028 = vmatmul.mubr.bf16.gmra.mrb[0].mxu0 %v590
        %v1029 = vpop.f32.mrb[0].mxu0
        %v1030 = vadd.f32 %v391, %v1029
        %v1031 = vpop.f32.mrb[0].mxu0
        %v1032 = vadd.f32 %v395, %v1031
        %v1033 = vpop.f32.mrb[0].mxu0
        %v1034 = vadd.f32 %v391, %v1033
        %v1035 = vpop.f32.mrb[0].mxu0
        %v1036 = vadd.f32 %v395, %v1035
        %1037 = vmatprep.mubr.bf16.mxu0 %v594
        %1038 = vmatmul.mubr.bf16.gmra.mrb[0].mxu0 %v593
        %v1039 = vpop.f32.mrb[0].mxu0
        %v1040 = vadd.f32 %v391, %v1039
        %v1041 = vpop.f32.mrb[0].mxu0
        %v1042 = vadd.f32 %v395, %v1041
        %v1043 = vpop.f32.mrb[0].mxu0
        %v1044 = vadd.f32 %v391, %v1043
        %v1045 = vpop.f32.mrb[0].mxu0
        %v1046 = vadd.f32 %v395, %v1045
        %1047 = vmatprep.mubr.bf16.mxu0 %v597
        %1048 = vmatmul.mubr.bf16.gmra.mrb[0].mxu0 %v596
        %v1049 = vpop.f32.mrb[0].mxu0
        %v1050 = vadd.f32 %v391, %v1049
        %v1051 = vpop.f32.mrb[0].mxu0
        %v1052 = vadd.f32 %v395, %v1051
        %v1053 = vpop.f32.mrb[0].mxu0
        %v1054 = vadd.f32 %v391, %v1053
        %v1055 = vpop.f32.mrb[0].mxu0
        %v1056 = vadd.f32 %v395, %v1055
        %1057 = vmatprep.mubr.bf16.mxu0 %v600
        %1058 = vmatmul.mubr.bf16.gmra.mrb[0].mxu0 %v599
        %v1059 = vpop.f32.mrb[0].mxu0
        %v1060 = vadd.f32 %v391, %v1059
        %v1061 = vpop.f32.mrb[0].mxu0
        %v1062 = vadd.f32 %v395, %v1061
        %v1063 = vpop.f32.mrb[0].mxu0
        %v1064 = vadd.f32 %v391, %v1063
        %v1065 = vpop.f32.mrb[0].mxu0
        %v1066 = vadd.f32 %v395, %v1065
        %1067 = vmatprep.mubr.bf16.mxu0 %v603
        %1068 = vmatmul.mubr.bf16.gmra.mrb[0].mxu0 %v602
        %v1069 = vpop.f32.mrb[0].mxu0
        %v1070 = vadd.f32 %v391, %v1069
        %v1071 = vpop.f32.mrb[0].mxu0
        %v1072 = vadd.f32 %v395, %v1071
        %v1073 = vpop.f32.mrb[0].mxu0
        %v1074 = vadd.f32 %v391, %v1073
        %v1075 = vpop.f32.mrb[0].mxu0
        %v1076 = vadd.f32 %v395, %v1075
        %1077 = vmatprep.mubr.bf16.mxu0 %v606
        %1078 = vmatmul.mubr.bf16.gmra.mrb[0].mxu0 %v605
        %v1079 = vpop.f32.mrb[0].mxu0
        %v1080 = vadd.f32 %v391, %v1079
        %v1081 = vpop.f32.mrb[0].mxu0
        %v1082 = vadd.f32 %v395, %v1081
        %v1083 = vpop.f32.mrb[0].mxu0
        %v1084 = vadd.f32 %v391, %v1083
        %v1085 = vpop.f32.mrb[0].mxu0
        %v1086 = vadd.f32 %v395, %v1085
        %1087 = vmatprep.mubr.bf16.mxu0 %v609
        %1088 = vmatmul.mubr.bf16.gmra.mrb[0].mxu0 %v608
        %v1089 = vpop.f32.mrb[0].mxu0
        %v1090 = vadd.f32 %v391, %v1089
        %v1091 = vpop.f32.mrb[0].mxu0
        %v1092 = vadd.f32 %v395, %v1091
        %v1093 = vpop.f32.mrb[0].mxu0
        %v1094 = vadd.f32 %v391, %v1093
        %v1095 = vpop.f32.mrb[0].mxu0
        %v1096 = vadd.f32 %v395, %v1095
        %1097 = vmatprep.mubr.bf16.mxu0 %v612
        %1098 = vmatmul.mubr.bf16.gmra.mrb[0].mxu0 %v611
        %v1099 = vpop.f32.mrb[0].mxu0
        %v1100 = vadd.f32 %v391, %v1099
        %v1101 = vpop.f32.mrb[0].mxu0
        %v1102 = vadd.f32 %v395, %v1101
        %v1103 = vpop.f32.mrb[0].mxu0
        %v1104 = vpop.f32.mrb[0].mxu0
        %1105 = vdwg.mxu0
        %1106 = vmatprep.subr.bf16.mxu0 %v842
        %1107 = vmatpush1.bf16.msra.mxu0 %v841
        %1108 = vmatprep.subr.bf16.mxu0 %v844
        %1109 = vmatpush1.bf16.msra.mxu0 %v843
        %1110 = vmatprep.subr.bf16.mxu0 %v846
        %1111 = vmatpush1.bf16.msra.mxu0 %v845
        %1112 = vmatprep.subr.bf16.mxu0 %v848
        %1113 = vmatpush1.bf16.msra.mxu0 %v847
        %1114 = vmatprep.subr.bf16.mxu0 %v850
        %1115 = vmatpush1.bf16.msra.mxu0 %v849
        %1116 = vmatprep.subr.bf16.mxu0 %v852
        %1117 = vmatpush1.bf16.msra.mxu0 %v851
        %1118 = vmatprep.subr.bf16.mxu0 %v854
        %1119 = vmatpush1.bf16.msra.mxu0 %v853
        %1120 = vmatprep.subr.bf16.mxu0 %v856
        %1121 = vmatpush1.bf16.msra.mxu0 %v855
        %1122 = vmatprep.subr.bf16.mxu0 0
        %1123 = vmatpush1.bf16.msra.mxu0 0
        %1124 = vmatprep.subr.bf16.mxu0 0
        %1125 = vmatpush1.bf16.msra.mxu0 0
        %1126 = vmatprep.subr.bf16.mxu0 0
        %1127 = vmatpush1.bf16.msra.mxu0 0
        %1128 = vmatprep.subr.bf16.mxu0 0
        %1129 = vmatpush1.bf16.msra.mxu0 0
        %1130 = vmatprep.subr.bf16.mxu0 0
        %1131 = vmatpush1.bf16.msra.mxu0 0
        %1132 = vmatprep.subr.bf16.mxu0 0
        %1133 = vmatpush1.bf16.msra.mxu0 0
        %1134 = vmatprep.subr.bf16.mxu0 0
        %1135 = vmatpush1.bf16.msra.mxu0 0
        %1136 = vmatprep.subr.bf16.mxu0 0
        %1137 = vmatpush1.bf16.msra.mxu0 0
        %1138 = vmatprep.mubr.bf16.mxu0 0
        %1139 = vmatmul.mubr.bf16.gmra.mrb[0].mxu0 %v565
        %v1140 = vpop.f32.mrb[0].mxu0
        %v1141 = vadd.f32 %v940, %v1140
        %v1142 = vpop.f32.mrb[0].mxu0
        %v1143 = vadd.f32 %v942, %v1142
        %v1144 = vpop.f32.mrb[0].mxu0
        %v1145 = vadd.f32 %v944, %v1144
        %v1146 = vpop.f32.mrb[0].mxu0
        %v1147 = vadd.f32 %v946, %v1146
        %1148 = vmatprep.mubr.bf16.mxu0 0
        %1149 = vmatmul.mubr.bf16.gmra.mrb[0].mxu0 %v568
        %v1150 = vpop.f32.mrb[0].mxu0
        %v1151 = vadd.f32 %v950, %v1150
        %v1152 = vpop.f32.mrb[0].mxu0
        %v1153 = vadd.f32 %v952, %v1152
        %v1154 = vpop.f32.mrb[0].mxu0
        %v1155 = vadd.f32 %v954, %v1154
        %v1156 = vpop.f32.mrb[0].mxu0
        %v1157 = vadd.f32 %v956, %v1156
        %1158 = vmatprep.mubr.bf16.mxu0 0
        %1159 = vmatmul.mubr.bf16.gmra.mrb[0].mxu0 %v571
        %v1160 = vpop.f32.mrb[0].mxu0
        %v1161 = vadd.f32 %v960, %v1160
        %v1162 = vpop.f32.mrb[0].mxu0
        %v1163 = vadd.f32 %v962, %v1162
        %v1164 = vpop.f32.mrb[0].mxu0
        %v1165 = vadd.f32 %v964, %v1164
        %v1166 = vpop.f32.mrb[0].mxu0
        %v1167 = vadd.f32 %v966, %v1166
        %1168 = vmatprep.mubr.bf16.mxu0 0
        %1169 = vmatmul.mubr.bf16.gmra.mrb[0].mxu0 %v574
        %v1170 = vpop.f32.mrb[0].mxu0
        %v1171 = vadd.f32 %v970, %v1170
        %v1172 = vpop.f32.mrb[0].mxu0
        %v1173 = vadd.f32 %v972, %v1172
        %v1174 = vpop.f32.mrb[0].mxu0
        %v1175 = vadd.f32 %v974, %v1174
        %v1176 = vpop.f32.mrb[0].mxu0
        %v1177 = vadd.f32 %v976, %v1176
        %1178 = vmatprep.mubr.bf16.mxu0 0
        %1179 = vmatmul.mubr.bf16.gmra.mrb[0].mxu0 %v577
        %v1180 = vpop.f32.mrb[0].mxu0
        %v1181 = vadd.f32 %v980, %v1180
        %v1182 = vpop.f32.mrb[0].mxu0
        %v1183 = vadd.f32 %v982, %v1182
        %v1184 = vpop.f32.mrb[0].mxu0
        %v1185 = vadd.f32 %v984, %v1184
        %v1186 = vpop.f32.mrb[0].mxu0
        %v1187 = vadd.f32 %v986, %v1186
        %1188 = vmatprep.mubr.bf16.mxu0 0
        %1189 = vmatmul.mubr.bf16.gmra.mrb[0].mxu0 %v580
        %v1190 = vpop.f32.mrb[0].mxu0
        %v1191 = vadd.f32 %v990, %v1190
        %v1192 = vpop.f32.mrb[0].mxu0
        %v1193 = vadd.f32 %v992, %v1192
        %v1194 = vpop.f32.mrb[0].mxu0
        %v1195 = vadd.f32 %v994, %v1194
        %v1196 = vpop.f32.mrb[0].mxu0
        %v1197 = vadd.f32 %v996, %v1196
        %1198 = vmatprep.mubr.bf16.mxu0 0
        %1199 = vmatmul.mubr.bf16.gmra.mrb[0].mxu0 %v583
        %v1200 = vpop.f32.mrb[0].mxu0
        %v1201 = vadd.f32 %v1000, %v1200
        %v1202 = vpop.f32.mrb[0].mxu0
        %v1203 = vadd.f32 %v1002, %v1202
        %v1204 = vpop.f32.mrb[0].mxu0
        %v1205 = vadd.f32 %v1004, %v1204
        %v1206 = vpop.f32.mrb[0].mxu0
        %v1207 = vadd.f32 %v1006, %v1206
        %1208 = vmatprep.mubr.bf16.mxu0 0
        %1209 = vmatmul.mubr.bf16.gmra.mrb[0].mxu0 %v586
        %v1210 = vpop.f32.mrb[0].mxu0
        %v1211 = vadd.f32 %v1010, %v1210
        %v1212 = vpop.f32.mrb[0].mxu0
        %v1213 = vadd.f32 %v1012, %v1212
        %v1214 = vpop.f32.mrb[0].mxu0
        %v1215 = vadd.f32 %v1014, %v1214
        %v1216 = vpop.f32.mrb[0].mxu0
        %v1217 = vadd.f32 %v1016, %v1216
        %1218 = vmatprep.mubr.bf16.mxu0 0
        %1219 = vmatmul.mubr.bf16.gmra.mrb[0].mxu0 %v589
        %v1220 = vpop.f32.mrb[0].mxu0
        %v1221 = vadd.f32 %v1020, %v1220
        %v1222 = vpop.f32.mrb[0].mxu0
        %v1223 = vadd.f32 %v1022, %v1222
        %v1224 = vpop.f32.mrb[0].mxu0
        %v1225 = vadd.f32 %v1024, %v1224
        %v1226 = vpop.f32.mrb[0].mxu0
        %v1227 = vadd.f32 %v1026, %v1226
        %1228 = vmatprep.mubr.bf16.mxu0 0
        %1229 = vmatmul.mubr.bf16.gmra.mrb[0].mxu0 %v592
        %v1230 = vpop.f32.mrb[0].mxu0
        %v1231 = vadd.f32 %v1030, %v1230
        %v1232 = vpop.f32.mrb[0].mxu0
        %v1233 = vadd.f32 %v1032, %v1232
        %v1234 = vpop.f32.mrb[0].mxu0
        %v1235 = vadd.f32 %v1034, %v1234
        %v1236 = vpop.f32.mrb[0].mxu0
        %v1237 = vadd.f32 %v1036, %v1236
        %1238 = vmatprep.mubr.bf16.mxu0 0
        %1239 = vmatmul.mubr.bf16.gmra.mrb[0].mxu0 %v595
        %v1240 = vpop.f32.mrb[0].mxu0
        %v1241 = vadd.f32 %v1040, %v1240
        %v1242 = vpop.f32.mrb[0].mxu0
        %v1243 = vadd.f32 %v1042, %v1242
        %v1244 = vpop.f32.mrb[0].mxu0
        %v1245 = vadd.f32 %v1044, %v1244
        %v1246 = vpop.f32.mrb[0].mxu0
        %v1247 = vadd.f32 %v1046, %v1246
        %1248 = vmatprep.mubr.bf16.mxu0 0
        %1249 = vmatmul.mubr.bf16.gmra.mrb[0].mxu0 %v598
        %v1250 = vpop.f32.mrb[0].mxu0
        %v1251 = vadd.f32 %v1050, %v1250
        %v1252 = vpop.f32.mrb[0].mxu0
        %v1253 = vadd.f32 %v1052, %v1252
        %v1254 = vpop.f32.mrb[0].mxu0
        %v1255 = vadd.f32 %v1054, %v1254
        %v1256 = vpop.f32.mrb[0].mxu0
        %v1257 = vadd.f32 %v1056, %v1256
        %1258 = vmatprep.mubr.bf16.mxu0 0
        %1259 = vmatmul.mubr.bf16.gmra.mrb[0].mxu0 %v601
        %v1260 = vpop.f32.mrb[0].mxu0
        %v1261 = vadd.f32 %v1060, %v1260
        %v1262 = vpop.f32.mrb[0].mxu0
        %v1263 = vadd.f32 %v1062, %v1262
        %v1264 = vpop.f32.mrb[0].mxu0
        %v1265 = vadd.f32 %v1064, %v1264
        %v1266 = vpop.f32.mrb[0].mxu0
        %v1267 = vadd.f32 %v1066, %v1266
        %1268 = vmatprep.mubr.bf16.mxu0 0
        %1269 = vmatmul.mubr.bf16.gmra.mrb[0].mxu0 %v604
        %v1270 = vpop.f32.mrb[0].mxu0
        %v1271 = vadd.f32 %v1070, %v1270
        %v1272 = vpop.f32.mrb[0].mxu0
        %v1273 = vadd.f32 %v1072, %v1272
        %v1274 = vpop.f32.mrb[0].mxu0
        %v1275 = vadd.f32 %v1074, %v1274
        %v1276 = vpop.f32.mrb[0].mxu0
        %v1277 = vadd.f32 %v1076, %v1276
        %1278 = vmatprep.mubr.bf16.mxu0 0
        %1279 = vmatmul.mubr.bf16.gmra.mrb[0].mxu0 %v607
        %v1280 = vpop.f32.mrb[0].mxu0
        %v1281 = vadd.f32 %v1080, %v1280
        %v1282 = vpop.f32.mrb[0].mxu0
        %v1283 = vadd.f32 %v1082, %v1282
        %v1284 = vpop.f32.mrb[0].mxu0
        %v1285 = vadd.f32 %v1084, %v1284
        %v1286 = vpop.f32.mrb[0].mxu0
        %v1287 = vadd.f32 %v1086, %v1286
        %1288 = vmatprep.mubr.bf16.mxu0 0
        %1289 = vmatmul.mubr.bf16.gmra.mrb[0].mxu0 %v610
        %v1290 = vpop.f32.mrb[0].mxu0
        %v1291 = vadd.f32 %v1090, %v1290
        %v1292 = vpop.f32.mrb[0].mxu0
        %v1293 = vadd.f32 %v1092, %v1292
        %v1294 = vpop.f32.mrb[0].mxu0
        %v1295 = vadd.f32 %v1094, %v1294
        %v1296 = vpop.f32.mrb[0].mxu0
        %v1297 = vadd.f32 %v1096, %v1296
        %1298 = vmatprep.mubr.bf16.mxu0 0
        %1299 = vmatmul.mubr.bf16.gmra.mrb[0].mxu0 %v613
        %v1300 = vpop.f32.mrb[0].mxu0
        %v1301 = vadd.f32 %v1100, %v1300
        %v1302 = vpop.f32.mrb[0].mxu0
        %v1303 = vadd.f32 %v1102, %v1302
        %v1304 = vpop.f32.mrb[0].mxu0
        %v1305 = vpop.f32.mrb[0].mxu0
        %1306 = vdwg.mxu0
        %v1307 = vmax.f32 %v1141, 0.0
        %v1308 = vmax.f32 %v1143, 0.0
        %v1309 = vmax.f32 %v1145, 0.0
        %v1310 = vmax.f32 %v1147, 0.0
        %v1311 = vmax.f32 %v1151, 0.0
        %v1312 = vmax.f32 %v1153, 0.0
        %v1313 = vmax.f32 %v1155, 0.0
        %v1314 = vmax.f32 %v1157, 0.0
        %v1315 = vmax.f32 %v1161, 0.0
        %v1316 = vmax.f32 %v1163, 0.0
        %v1317 = vmax.f32 %v1165, 0.0
        %v1318 = vmax.f32 %v1167, 0.0
        %v1319 = vmax.f32 %v1171, 0.0
        %v1320 = vmax.f32 %v1173, 0.0
        %v1321 = vmax.f32 %v1175, 0.0
        %v1322 = vmax.f32 %v1177, 0.0
        %v1323 = vmax.f32 %v1181, 0.0
        %v1324 = vmax.f32 %v1183, 0.0
        %v1325 = vmax.f32 %v1185, 0.0
        %v1326 = vmax.f32 %v1187, 0.0
        %v1327 = vmax.f32 %v1191, 0.0
        %v1328 = vmax.f32 %v1193, 0.0
        %v1329 = vmax.f32 %v1195, 0.0
        %v1330 = vmax.f32 %v1197, 0.0
        %v1331 = vmax.f32 %v1201, 0.0
        %v1332 = vmax.f32 %v1203, 0.0
        %v1333 = vmax.f32 %v1205, 0.0
        %v1334 = vmax.f32 %v1207, 0.0
        %v1335 = vmax.f32 %v1211, 0.0
        %v1336 = vmax.f32 %v1213, 0.0
        %v1337 = vmax.f32 %v1215, 0.0
        %v1338 = vmax.f32 %v1217, 0.0
        %v1339 = vmax.f32 %v1221, 0.0
        %v1340 = vmax.f32 %v1223, 0.0
        %v1341 = vmax.f32 %v1225, 0.0
        %v1342 = vmax.f32 %v1227, 0.0
        %v1343 = vmax.f32 %v1231, 0.0
        %v1344 = vmax.f32 %v1233, 0.0
        %v1345 = vmax.f32 %v1235, 0.0
        %v1346 = vmax.f32 %v1237, 0.0
        %v1347 = vmax.f32 %v1241, 0.0
        %v1348 = vmax.f32 %v1243, 0.0
        %v1349 = vmax.f32 %v1245, 0.0
        %v1350 = vmax.f32 %v1247, 0.0
        %v1351 = vmax.f32 %v1251, 0.0
        %v1352 = vmax.f32 %v1253, 0.0
        %v1353 = vmax.f32 %v1255, 0.0
        %v1354 = vmax.f32 %v1257, 0.0
        %v1355 = vmax.f32 %v1261, 0.0
        %v1356 = vmax.f32 %v1263, 0.0
        %v1357 = vmax.f32 %v1265, 0.0
        %v1358 = vmax.f32 %v1267, 0.0
        %v1359 = vmax.f32 %v1271, 0.0
        %v1360 = vmax.f32 %v1273, 0.0
        %v1361 = vmax.f32 %v1275, 0.0
        %v1362 = vmax.f32 %v1277, 0.0
        %v1363 = vmax.f32 %v1281, 0.0
        %v1364 = vmax.f32 %v1283, 0.0
        %v1365 = vmax.f32 %v1285, 0.0
        %v1366 = vmax.f32 %v1287, 0.0
        %v1367 = vmax.f32 %v1291, 0.0
        %v1368 = vmax.f32 %v1293, 0.0
        %v1369 = vmax.f32 %v1295, 0.0
        %v1370 = vmax.f32 %v1297, 0.0
        %v1371 = vmax.f32 %v1301, 0.0
        %v1372 = vmax.f32 %v1303, 0.0
        %v1373 = vpack.c.bf16 %v1309, %v1307
        %v1374 = vpack.c.bf16 %v1310, %v1308
        %v1375 = vpack.c.bf16 %v1313, %v1311
        %v1376 = vpack.c.bf16 %v1314, %v1312
        %v1377 = vpack.c.bf16 %v1317, %v1315
        %v1378 = vpack.c.bf16 %v1318, %v1316
        %v1379 = vpack.c.bf16 %v1321, %v1319
        %v1380 = vpack.c.bf16 %v1322, %v1320
        %v1381 = vpack.c.bf16 %v1325, %v1323
        %v1382 = vpack.c.bf16 %v1326, %v1324
        %v1383 = vpack.c.bf16 %v1329, %v1327
        %v1384 = vpack.c.bf16 %v1330, %v1328
        %v1385 = vpack.c.bf16 %v1333, %v1331
        %v1386 = vpack.c.bf16 %v1334, %v1332
        %v1387 = vpack.c.bf16 %v1337, %v1335
        %v1388 = vpack.c.bf16 %v1338, %v1336
        %v1389 = vpack.c.bf16 %v1341, %v1339
        %v1390 = vpack.c.bf16 %v1342, %v1340
        %v1391 = vpack.c.bf16 %v1345, %v1343
        %v1392 = vpack.c.bf16 %v1346, %v1344
        %v1393 = vpack.c.bf16 %v1349, %v1347
        %v1394 = vpack.c.bf16 %v1350, %v1348
        %v1395 = vpack.c.bf16 %v1353, %v1351
        %v1396 = vpack.c.bf16 %v1354, %v1352
        %v1397 = vpack.c.bf16 %v1357, %v1355
        %v1398 = vpack.c.bf16 %v1358, %v1356
        %v1399 = vpack.c.bf16 %v1361, %v1359
        %v1400 = vpack.c.bf16 %v1362, %v1360
        %v1401 = vpack.c.bf16 %v1365, %v1363
        %v1402 = vpack.c.bf16 %v1366, %v1364
        %v1403 = vpack.c.bf16 %v1369, %v1367
        %v1404 = vpack.c.bf16 %v1370, %v1368
        %v1405 = vpack.c.bf16 %v1371, %v1371
        %v1406 = vpack.c.bf16 %v1372, %v1372
        %v1407 = vld [vmem:[#allocation7] sm:$0xff]
        %v1408 = vld [vmem:[#allocation7 + $0x8] sm:$0xf]
        %v1409 = vld [vmem:[#allocation7 + $0xc] sm:$0xff]
        %v1410 = vld [vmem:[#allocation7 + $0x14] sm:$0xf]
        %v1411 = vld [vmem:[#allocation7 + $0x18] sm:$0xff]
        %v1412 = vld [vmem:[#allocation7 + $0x20] sm:$0xf]
        %v1413 = vld [vmem:[#allocation7 + $0x24] sm:$0xff]
        %v1414 = vld [vmem:[#allocation7 + $0x2c] sm:$0xf]
        %v1415 = vld [vmem:[#allocation7 + $0x30] sm:$0xff]
        %v1416 = vld [vmem:[#allocation7 + $0x38] sm:$0xf]
        %v1417 = vld [vmem:[#allocation7 + $0x3c] sm:$0xff]
        %v1418 = vld [vmem:[#allocation7 + $0x44] sm:$0xf]
        %v1419 = vld [vmem:[#allocation7 + $0x48] sm:$0xff]
        %v1420 = vld [vmem:[#allocation7 + $0x50] sm:$0xf]
        %v1421 = vld [vmem:[#allocation7 + $0x54] sm:$0xff]
        %v1422 = vld [vmem:[#allocation7 + $0x5c] sm:$0xf]
        %v1423 = vld [vmem:[#allocation7 + $0x60] sm:$0xff]
        %v1424 = vld [vmem:[#allocation7 + $0x68] sm:$0xf]
        %v1425 = vld [vmem:[#allocation7 + $0x6c] sm:$0xff]
        %v1426 = vld [vmem:[#allocation7 + $0x74] sm:$0xf]
        %v1427 = vld [vmem:[#allocation7 + $0x78] sm:$0xff]
        %v1428 = vld [vmem:[#allocation7 + $0x80] sm:$0xf]
        %v1429 = vld [vmem:[#allocation7 + $0x84] sm:$0xff]
        %v1430 = vld [vmem:[#allocation7 + $0x8c] sm:$0xf]
        %v1431 = vld [vmem:[#allocation7 + $0x90] sm:$0xff]
        %v1432 = vld [vmem:[#allocation7 + $0x98] sm:$0xf]
        %v1433 = vld [vmem:[#allocation7 + $0x9c] sm:$0xff]
        %v1434 = vld [vmem:[#allocation7 + $0xa4] sm:$0xf]
        %v1435 = vld [vmem:[#allocation7 + $0xa8] sm:$0xff]
        %v1436 = vld [vmem:[#allocation7 + $0xb0] sm:$0xf]
        %v1437 = vld [vmem:[#allocation7 + $0xb4] sm:$0xff]
        %v1438 = vld [vmem:[#allocation7 + $0xbc] sm:$0xf]
        %v1439 = vld [vmem:[#allocation7 + $0xc0] sm:$0xff]
        %v1440 = vld [vmem:[#allocation7 + $0xc8] sm:$0xf]
        %v1441 = vld [vmem:[#allocation7 + $0xcc] sm:$0xff]
        %v1442 = vld [vmem:[#allocation7 + $0xd4] sm:$0xf]
        %v1443 = vld [vmem:[#allocation7 + $0xd8] sm:$0xff]
        %v1444 = vld [vmem:[#allocation7 + $0xe0] sm:$0xf]
        %v1445 = vld [vmem:[#allocation7 + $0xe4] sm:$0xff]
        %v1446 = vld [vmem:[#allocation7 + $0xec] sm:$0xf]
        %v1447 = vld [vmem:[#allocation7 + $0xf0] sm:$0xff]
        %v1448 = vld [vmem:[#allocation7 + $0xf8] sm:$0xf]
        %v1449 = vld [vmem:[#allocation7 + $0xfc] sm:$0xff]
        %v1450 = vld [vmem:[#allocation7 + $0x104] sm:$0xf]
        %v1451 = vld [vmem:[#allocation7 + $0x108] sm:$0xff]
        %v1452 = vld [vmem:[#allocation7 + $0x110] sm:$0xf]
        %v1453 = vld [vmem:[#allocation7 + $0x114] sm:$0xff]
        %v1454 = vld [vmem:[#allocation7 + $0x11c] sm:$0xf]
        %v1455 = vld [vmem:[#allocation7 + $0x120] sm:$0xff]
        %v1456 = vld [vmem:[#allocation7 + $0x128] sm:$0xf]
        %v1457 = vld [vmem:[#allocation7 + $0x12c] sm:$0xff]
        %v1458 = vld [vmem:[#allocation7 + $0x134] sm:$0xf]
        %v1459 = vld [vmem:[#allocation7 + $0x138] sm:$0xff]
        %v1460 = vld [vmem:[#allocation7 + $0x140] sm:$0xf]
        %v1461 = vld [vmem:[#allocation7 + $0x144] sm:$0xff]
        %v1462 = vld [vmem:[#allocation7 + $0x14c] sm:$0xf]
        %v1463 = vld [vmem:[#allocation7 + $0x150] sm:$0xff]
        %v1464 = vld [vmem:[#allocation7 + $0x158] sm:$0xf]
        %v1465 = vld [vmem:[#allocation7 + $0x15c] sm:$0xff]
        %v1466 = vld [vmem:[#allocation7 + $0x164] sm:$0xf]
        %v1467 = vld [vmem:[#allocation7 + $0x168] sm:$0xff]
        %v1468 = vld [vmem:[#allocation7 + $0x170] sm:$0xf]
        %v1469 = vld [vmem:[#allocation7 + $0x174] sm:$0xff]
        %v1470 = vld [vmem:[#allocation7 + $0x17c] sm:$0xf]
        %v1472 = vlaneseq
        %v1473 = vshrl.u32 %v1472, 7
        %v1474 = vsub.s32 0, %v1473
        %v1475 = vrot.slane %v334, %v1474
        %v1476 = vlaneseq
        %v1477 = vshrl.u32 %v1476, 7
        %v1478 = vsub.s32 1, %v1477
        %v1479 = vrot.slane %v334, %v1478
        %v1480 = vlaneseq
        %v1481 = vshrl.u32 %v1480, 7
        %v1482 = vsub.s32 2, %v1481
        %v1483 = vrot.slane %v334, %v1482
        %v1551 = vunpack.c.l.b16 %v1407
        %v1552 = vunpack.c.h.b16 %v1407
        %v1553 = vunpack.c.l.b16 %v1408
        %v1554 = vunpack.c.l.b16 %v1409
        %v1555 = vunpack.c.h.b16 %v1409
        %v1556 = vunpack.c.l.b16 %v1410
        %v1557 = vunpack.c.l.b16 %v1411
        %v1558 = vunpack.c.h.b16 %v1411
        %v1559 = vunpack.c.l.b16 %v1412
        %v1560 = vunpack.c.l.b16 %v1413
        %v1561 = vunpack.c.h.b16 %v1413
        %v1562 = vunpack.c.l.b16 %v1414
        %v1563 = vunpack.c.l.b16 %v1415
        %v1564 = vunpack.c.h.b16 %v1415
        %v1565 = vunpack.c.l.b16 %v1416
        %v1566 = vunpack.c.l.b16 %v1417
        %v1567 = vunpack.c.h.b16 %v1417
        %v1568 = vunpack.c.l.b16 %v1418
        %v1569 = vunpack.c.l.b16 %v1419
        %v1570 = vunpack.c.h.b16 %v1419
        %v1571 = vunpack.c.l.b16 %v1420
        %v1572 = vunpack.c.l.b16 %v1421
        %v1573 = vunpack.c.h.b16 %v1421
        %v1574 = vunpack.c.l.b16 %v1422
        %v1575 = vunpack.c.l.b16 %v1423
        %v1576 = vunpack.c.h.b16 %v1423
        %v1577 = vunpack.c.l.b16 %v1424
        %v1578 = vunpack.c.l.b16 %v1425
        %v1579 = vunpack.c.h.b16 %v1425
        %v1580 = vunpack.c.l.b16 %v1426
        %v1581 = vunpack.c.l.b16 %v1427
        %v1582 = vunpack.c.h.b16 %v1427
        %v1583 = vunpack.c.l.b16 %v1428
        %v1584 = vunpack.c.l.b16 %v1429
        %v1585 = vunpack.c.h.b16 %v1429
        %v1586 = vunpack.c.l.b16 %v1430
        %v1587 = vunpack.c.l.b16 %v1431
        %v1588 = vunpack.c.h.b16 %v1431
        %v1589 = vunpack.c.l.b16 %v1432
        %v1590 = vunpack.c.l.b16 %v1433
        %v1591 = vunpack.c.h.b16 %v1433
        %v1592 = vunpack.c.l.b16 %v1434
        %v1593 = vunpack.c.l.b16 %v1435
        %v1594 = vunpack.c.h.b16 %v1435
        %v1595 = vunpack.c.l.b16 %v1436
        %v1596 = vunpack.c.l.b16 %v1437
        %v1597 = vunpack.c.h.b16 %v1437
        %v1598 = vunpack.c.l.b16 %v1438
        %v1599 = vunpack.c.l.b16 %v1439
        %v1600 = vunpack.c.h.b16 %v1439
        %v1601 = vunpack.c.l.b16 %v1440
        %v1602 = vunpack.c.l.b16 %v1441
        %v1603 = vunpack.c.h.b16 %v1441
        %v1604 = vunpack.c.l.b16 %v1442
        %v1605 = vunpack.c.l.b16 %v1443
        %v1606 = vunpack.c.h.b16 %v1443
        %v1607 = vunpack.c.l.b16 %v1444
        %v1608 = vunpack.c.l.b16 %v1445
        %v1609 = vunpack.c.h.b16 %v1445
        %v1610 = vunpack.c.l.b16 %v1446
        %v1611 = vunpack.c.l.b16 %v1447
        %v1612 = vunpack.c.h.b16 %v1447
        %v1613 = vunpack.c.l.b16 %v1448
        %v1614 = vunpack.c.l.b16 %v1449
        %v1615 = vunpack.c.h.b16 %v1449
        %v1616 = vunpack.c.l.b16 %v1450
        %v1617 = vunpack.c.l.b16 %v1451
        %v1618 = vunpack.c.h.b16 %v1451
        %v1619 = vunpack.c.l.b16 %v1452
        %v1620 = vunpack.c.l.b16 %v1453
        %v1621 = vunpack.c.h.b16 %v1453
        %v1622 = vunpack.c.l.b16 %v1454
        %v1623 = vunpack.c.l.b16 %v1455
        %v1624 = vunpack.c.h.b16 %v1455
        %v1625 = vunpack.c.l.b16 %v1456
        %v1626 = vunpack.c.l.b16 %v1457
        %v1627 = vunpack.c.h.b16 %v1457
        %v1628 = vunpack.c.l.b16 %v1458
        %v1629 = vunpack.c.l.b16 %v1459
        %v1630 = vunpack.c.h.b16 %v1459
        %v1631 = vunpack.c.l.b16 %v1460
        %v1632 = vunpack.c.l.b16 %v1461
        %v1633 = vunpack.c.h.b16 %v1461
        %v1634 = vunpack.c.l.b16 %v1462
        %v1635 = vunpack.c.l.b16 %v1463
        %v1636 = vunpack.c.h.b16 %v1463
        %v1637 = vunpack.c.l.b16 %v1464
        %v1638 = vunpack.c.l.b16 %v1465
        %v1639 = vunpack.c.h.b16 %v1465
        %v1640 = vunpack.c.l.b16 %v1466
        %v1641 = vunpack.c.l.b16 %v1467
        %v1642 = vunpack.c.h.b16 %v1467
        %v1643 = vunpack.c.l.b16 %v1468
        %v1644 = vunpack.c.l.b16 %v1469
        %v1645 = vunpack.c.h.b16 %v1469
        %v1646 = vunpack.c.l.b16 %v1470
        %v1647 = vpack.c.b16 %v1554, %v1551
        %v1648 = vpack.c.b16 %v1555, %v1552
        %v1649 = vpack.c.b16 %v1556, %v1553
        %v1650 = vpack.c.b16 %v1560, %v1557
        %v1651 = vpack.c.b16 %v1561, %v1558
        %v1652 = vpack.c.b16 %v1562, %v1559
        %v1653 = vpack.c.b16 %v1566, %v1563
        %v1654 = vpack.c.b16 %v1567, %v1564
        %v1655 = vpack.c.b16 %v1568, %v1565
        %v1656 = vpack.c.b16 %v1572, %v1569
        %v1657 = vpack.c.b16 %v1573, %v1570
        %v1658 = vpack.c.b16 %v1574, %v1571
        %v1659 = vpack.c.b16 %v1578, %v1575
        %v1660 = vpack.c.b16 %v1579, %v1576
        %v1661 = vpack.c.b16 %v1580, %v1577
        %v1662 = vpack.c.b16 %v1584, %v1581
        %v1663 = vpack.c.b16 %v1585, %v1582
        %v1664 = vpack.c.b16 %v1586, %v1583
        %v1665 = vpack.c.b16 %v1590, %v1587
        %v1666 = vpack.c.b16 %v1591, %v1588
        %v1667 = vpack.c.b16 %v1592, %v1589
        %v1668 = vpack.c.b16 %v1596, %v1593
        %v1669 = vpack.c.b16 %v1597, %v1594
        %v1670 = vpack.c.b16 %v1598, %v1595
        %v1671 = vpack.c.b16 %v1602, %v1599
        %v1672 = vpack.c.b16 %v1603, %v1600
        %v1673 = vpack.c.b16 %v1604, %v1601
        %v1674 = vpack.c.b16 %v1608, %v1605
        %v1675 = vpack.c.b16 %v1609, %v1606
        %v1676 = vpack.c.b16 %v1610, %v1607
        %v1677 = vpack.c.b16 %v1614, %v1611
        %v1678 = vpack.c.b16 %v1615, %v1612
        %v1679 = vpack.c.b16 %v1616, %v1613
        %v1680 = vpack.c.b16 %v1620, %v1617
        %v1681 = vpack.c.b16 %v1621, %v1618
        %v1682 = vpack.c.b16 %v1622, %v1619
        %v1683 = vpack.c.b16 %v1626, %v1623
        %v1684 = vpack.c.b16 %v1627, %v1624
        %v1685 = vpack.c.b16 %v1628, %v1625
        %v1686 = vpack.c.b16 %v1632, %v1629
        %v1687 = vpack.c.b16 %v1633, %v1630
        %v1688 = vpack.c.b16 %v1634, %v1631
        %v1689 = vpack.c.b16 %v1638, %v1635
        %v1690 = vpack.c.b16 %v1639, %v1636
        %v1691 = vpack.c.b16 %v1640, %v1637
        %v1692 = vpack.c.b16 %v1644, %v1641
        %v1693 = vpack.c.b16 %v1645, %v1642
        %v1694 = vpack.c.b16 %v1646, %v1643
        %1743 = vmatprep.subr.bf16.mxu0 %v1648
        %1744 = vmatpush1.bf16.msra.mxu0 %v1647
        %1745 = vmatprep.subr.bf16.mxu0 %v1651
        %1746 = vmatpush1.bf16.msra.mxu0 %v1650
        %1747 = vmatprep.subr.bf16.mxu0 %v1654
        %1748 = vmatpush1.bf16.msra.mxu0 %v1653
        %1749 = vmatprep.subr.bf16.mxu0 %v1657
        %1750 = vmatpush1.bf16.msra.mxu0 %v1656
        %1751 = vmatprep.subr.bf16.mxu0 %v1660
        %1752 = vmatpush1.bf16.msra.mxu0 %v1659
        %1753 = vmatprep.subr.bf16.mxu0 %v1663
        %1754 = vmatpush1.bf16.msra.mxu0 %v1662
        %1755 = vmatprep.subr.bf16.mxu0 %v1666
        %1756 = vmatpush1.bf16.msra.mxu0 %v1665
        %1757 = vmatprep.subr.bf16.mxu0 %v1669
        %1758 = vmatpush1.bf16.msra.mxu0 %v1668
        %1759 = vmatprep.subr.bf16.mxu0 %v1672
        %1760 = vmatpush1.bf16.msra.mxu0 %v1671
        %1761 = vmatprep.subr.bf16.mxu0 %v1675
        %1762 = vmatpush1.bf16.msra.mxu0 %v1674
        %1763 = vmatprep.subr.bf16.mxu0 %v1678
        %1764 = vmatpush1.bf16.msra.mxu0 %v1677
        %1765 = vmatprep.subr.bf16.mxu0 %v1681
        %1766 = vmatpush1.bf16.msra.mxu0 %v1680
        %1767 = vmatprep.subr.bf16.mxu0 %v1684
        %1768 = vmatpush1.bf16.msra.mxu0 %v1683
        %1769 = vmatprep.subr.bf16.mxu0 %v1687
        %1770 = vmatpush1.bf16.msra.mxu0 %v1686
        %1771 = vmatprep.subr.bf16.mxu0 %v1690
        %1772 = vmatpush1.bf16.msra.mxu0 %v1689
        %1773 = vmatprep.subr.bf16.mxu0 %v1693
        %1774 = vmatpush1.bf16.msra.mxu0 %v1692
        %1775 = vmatprep.mubr.bf16.mxu0 %v1374
        %1776 = vmatmul.mubr.bf16.gmra.mrb[0].mxu0 %v1373
        %v1777 = vpop.f32.mrb[0].mxu0
        %v1778 = vadd.f32 %v1475, %v1777
        %v1779 = vpop.f32.mrb[0].mxu0
        %v1780 = vadd.f32 %v1479, %v1779
        %v1781 = vpop.f32.mrb[0].mxu0
        %v1782 = vadd.f32 %v1475, %v1781
        %v1783 = vpop.f32.mrb[0].mxu0
        %v1784 = vadd.f32 %v1479, %v1783
        %1785 = vmatprep.mubr.bf16.mxu0 %v1376
        %1786 = vmatmul.mubr.bf16.gmra.mrb[0].mxu0 %v1375
        %v1787 = vpop.f32.mrb[0].mxu0
        %v1788 = vadd.f32 %v1475, %v1787
        %v1789 = vpop.f32.mrb[0].mxu0
        %v1790 = vadd.f32 %v1479, %v1789
        %v1791 = vpop.f32.mrb[0].mxu0
        %v1792 = vadd.f32 %v1475, %v1791
        %v1793 = vpop.f32.mrb[0].mxu0
        %v1794 = vadd.f32 %v1479, %v1793
        %1795 = vmatprep.mubr.bf16.mxu0 %v1378
        %1796 = vmatmul.mubr.bf16.gmra.mrb[0].mxu0 %v1377
        %v1797 = vpop.f32.mrb[0].mxu0
        %v1798 = vadd.f32 %v1475, %v1797
        %v1799 = vpop.f32.mrb[0].mxu0
        %v1800 = vadd.f32 %v1479, %v1799
        %v1801 = vpop.f32.mrb[0].mxu0
        %v1802 = vadd.f32 %v1475, %v1801
        %v1803 = vpop.f32.mrb[0].mxu0
        %v1804 = vadd.f32 %v1479, %v1803
        %1805 = vmatprep.mubr.bf16.mxu0 %v1380
        %1806 = vmatmul.mubr.bf16.gmra.mrb[0].mxu0 %v1379
        %v1807 = vpop.f32.mrb[0].mxu0
        %v1808 = vadd.f32 %v1475, %v1807
        %v1809 = vpop.f32.mrb[0].mxu0
        %v1810 = vadd.f32 %v1479, %v1809
        %v1811 = vpop.f32.mrb[0].mxu0
        %v1812 = vadd.f32 %v1475, %v1811
        %v1813 = vpop.f32.mrb[0].mxu0
        %v1814 = vadd.f32 %v1479, %v1813
        %1815 = vmatprep.mubr.bf16.mxu0 %v1382
        %1816 = vmatmul.mubr.bf16.gmra.mrb[0].mxu0 %v1381
        %v1817 = vpop.f32.mrb[0].mxu0
        %v1818 = vadd.f32 %v1475, %v1817
        %v1819 = vpop.f32.mrb[0].mxu0
        %v1820 = vadd.f32 %v1479, %v1819
        %v1821 = vpop.f32.mrb[0].mxu0
        %v1822 = vadd.f32 %v1475, %v1821
        %v1823 = vpop.f32.mrb[0].mxu0
        %v1824 = vadd.f32 %v1479, %v1823
        %1825 = vmatprep.mubr.bf16.mxu0 %v1384
        %1826 = vmatmul.mubr.bf16.gmra.mrb[0].mxu0 %v1383
        %v1827 = vpop.f32.mrb[0].mxu0
        %v1828 = vadd.f32 %v1475, %v1827
        %v1829 = vpop.f32.mrb[0].mxu0
        %v1830 = vadd.f32 %v1479, %v1829
        %v1831 = vpop.f32.mrb[0].mxu0
        %v1832 = vadd.f32 %v1475, %v1831
        %v1833 = vpop.f32.mrb[0].mxu0
        %v1834 = vadd.f32 %v1479, %v1833
        %1835 = vmatprep.mubr.bf16.mxu0 %v1386
        %1836 = vmatmul.mubr.bf16.gmra.mrb[0].mxu0 %v1385
        %v1837 = vpop.f32.mrb[0].mxu0
        %v1838 = vadd.f32 %v1475, %v1837
        %v1839 = vpop.f32.mrb[0].mxu0
        %v1840 = vadd.f32 %v1479, %v1839
        %v1841 = vpop.f32.mrb[0].mxu0
        %v1842 = vadd.f32 %v1475, %v1841
        %v1843 = vpop.f32.mrb[0].mxu0
        %v1844 = vadd.f32 %v1479, %v1843
        %1845 = vmatprep.mubr.bf16.mxu0 %v1388
        %1846 = vmatmul.mubr.bf16.gmra.mrb[0].mxu0 %v1387
        %v1847 = vpop.f32.mrb[0].mxu0
        %v1848 = vadd.f32 %v1475, %v1847
        %v1849 = vpop.f32.mrb[0].mxu0
        %v1850 = vadd.f32 %v1479, %v1849
        %v1851 = vpop.f32.mrb[0].mxu0
        %v1852 = vadd.f32 %v1475, %v1851
        %v1853 = vpop.f32.mrb[0].mxu0
        %v1854 = vadd.f32 %v1479, %v1853
        %1855 = vmatprep.mubr.bf16.mxu0 %v1390
        %1856 = vmatmul.mubr.bf16.gmra.mrb[0].mxu0 %v1389
        %v1857 = vpop.f32.mrb[0].mxu0
        %v1858 = vadd.f32 %v1475, %v1857
        %v1859 = vpop.f32.mrb[0].mxu0
        %v1860 = vadd.f32 %v1479, %v1859
        %v1861 = vpop.f32.mrb[0].mxu0
        %v1862 = vadd.f32 %v1475, %v1861
        %v1863 = vpop.f32.mrb[0].mxu0
        %v1864 = vadd.f32 %v1479, %v1863
        %1865 = vmatprep.mubr.bf16.mxu0 %v1392
        %1866 = vmatmul.mubr.bf16.gmra.mrb[0].mxu0 %v1391
        %v1867 = vpop.f32.mrb[0].mxu0
        %v1868 = vadd.f32 %v1475, %v1867
        %v1869 = vpop.f32.mrb[0].mxu0
        %v1870 = vadd.f32 %v1479, %v1869
        %v1871 = vpop.f32.mrb[0].mxu0
        %v1872 = vadd.f32 %v1475, %v1871
        %v1873 = vpop.f32.mrb[0].mxu0
        %v1874 = vadd.f32 %v1479, %v1873
        %1875 = vmatprep.mubr.bf16.mxu0 %v1394
        %1876 = vmatmul.mubr.bf16.gmra.mrb[0].mxu0 %v1393
        %v1877 = vpop.f32.mrb[0].mxu0
        %v1878 = vadd.f32 %v1475, %v1877
        %v1879 = vpop.f32.mrb[0].mxu0
        %v1880 = vadd.f32 %v1479, %v1879
        %v1881 = vpop.f32.mrb[0].mxu0
        %v1882 = vadd.f32 %v1475, %v1881
        %v1883 = vpop.f32.mrb[0].mxu0
        %v1884 = vadd.f32 %v1479, %v1883
        %1885 = vmatprep.mubr.bf16.mxu0 %v1396
        %1886 = vmatmul.mubr.bf16.gmra.mrb[0].mxu0 %v1395
        %v1887 = vpop.f32.mrb[0].mxu0
        %v1888 = vadd.f32 %v1475, %v1887
        %v1889 = vpop.f32.mrb[0].mxu0
        %v1890 = vadd.f32 %v1479, %v1889
        %v1891 = vpop.f32.mrb[0].mxu0
        %v1892 = vadd.f32 %v1475, %v1891
        %v1893 = vpop.f32.mrb[0].mxu0
        %v1894 = vadd.f32 %v1479, %v1893
        %1895 = vmatprep.mubr.bf16.mxu0 %v1398
        %1896 = vmatmul.mubr.bf16.gmra.mrb[0].mxu0 %v1397
        %v1897 = vpop.f32.mrb[0].mxu0
        %v1898 = vadd.f32 %v1475, %v1897
        %v1899 = vpop.f32.mrb[0].mxu0
        %v1900 = vadd.f32 %v1479, %v1899
        %v1901 = vpop.f32.mrb[0].mxu0
        %v1902 = vadd.f32 %v1475, %v1901
        %v1903 = vpop.f32.mrb[0].mxu0
        %v1904 = vadd.f32 %v1479, %v1903
        %1905 = vmatprep.mubr.bf16.mxu0 %v1400
        %1906 = vmatmul.mubr.bf16.gmra.mrb[0].mxu0 %v1399
        %v1907 = vpop.f32.mrb[0].mxu0
        %v1908 = vadd.f32 %v1475, %v1907
        %v1909 = vpop.f32.mrb[0].mxu0
        %v1910 = vadd.f32 %v1479, %v1909
        %v1911 = vpop.f32.mrb[0].mxu0
        %v1912 = vadd.f32 %v1475, %v1911
        %v1913 = vpop.f32.mrb[0].mxu0
        %v1914 = vadd.f32 %v1479, %v1913
        %1915 = vmatprep.mubr.bf16.mxu0 %v1402
        %1916 = vmatmul.mubr.bf16.gmra.mrb[0].mxu0 %v1401
        %v1917 = vpop.f32.mrb[0].mxu0
        %v1918 = vadd.f32 %v1475, %v1917
        %v1919 = vpop.f32.mrb[0].mxu0
        %v1920 = vadd.f32 %v1479, %v1919
        %v1921 = vpop.f32.mrb[0].mxu0
        %v1922 = vadd.f32 %v1475, %v1921
        %v1923 = vpop.f32.mrb[0].mxu0
        %v1924 = vadd.f32 %v1479, %v1923
        %1925 = vmatprep.mubr.bf16.mxu0 %v1404
        %1926 = vmatmul.mubr.bf16.gmra.mrb[0].mxu0 %v1403
        %v1927 = vpop.f32.mrb[0].mxu0
        %v1928 = vadd.f32 %v1475, %v1927
        %v1929 = vpop.f32.mrb[0].mxu0
        %v1930 = vadd.f32 %v1479, %v1929
        %v1931 = vpop.f32.mrb[0].mxu0
        %v1932 = vadd.f32 %v1475, %v1931
        %v1933 = vpop.f32.mrb[0].mxu0
        %v1934 = vadd.f32 %v1479, %v1933
        %1935 = vmatprep.mubr.bf16.mxu0 %v1406
        %1936 = vmatmul.mubr.bf16.gmra.mrb[0].mxu0 %v1405
        %v1937 = vpop.f32.mrb[0].mxu0
        %v1938 = vadd.f32 %v1475, %v1937
        %v1939 = vpop.f32.mrb[0].mxu0
        %v1940 = vadd.f32 %v1479, %v1939
        %v1941 = vpop.f32.mrb[0].mxu0
        %v1942 = vpop.f32.mrb[0].mxu0
        %1943 = vdwg.mxu0
        %1944 = vmatprep.subr.bf16.mxu0 0
        %1945 = vmatpush1.bf16.msra.mxu0 %v1649
        %1946 = vmatprep.subr.bf16.mxu0 0
        %1947 = vmatpush1.bf16.msra.mxu0 %v1652
        %1948 = vmatprep.subr.bf16.mxu0 0
        %1949 = vmatpush1.bf16.msra.mxu0 %v1655
        %1950 = vmatprep.subr.bf16.mxu0 0
        %1951 = vmatpush1.bf16.msra.mxu0 %v1658
        %1952 = vmatprep.subr.bf16.mxu0 0
        %1953 = vmatpush1.bf16.msra.mxu0 %v1661
        %1954 = vmatprep.subr.bf16.mxu0 0
        %1955 = vmatpush1.bf16.msra.mxu0 %v1664
        %1956 = vmatprep.subr.bf16.mxu0 0
        %1957 = vmatpush1.bf16.msra.mxu0 %v1667
        %1958 = vmatprep.subr.bf16.mxu0 0
        %1959 = vmatpush1.bf16.msra.mxu0 %v1670
        %1960 = vmatprep.subr.bf16.mxu0 0
        %1961 = vmatpush1.bf16.msra.mxu0 %v1673
        %1962 = vmatprep.subr.bf16.mxu0 0
        %1963 = vmatpush1.bf16.msra.mxu0 %v1676
        %1964 = vmatprep.subr.bf16.mxu0 0
        %1965 = vmatpush1.bf16.msra.mxu0 %v1679
        %1966 = vmatprep.subr.bf16.mxu0 0
        %1967 = vmatpush1.bf16.msra.mxu0 %v1682
        %1968 = vmatprep.subr.bf16.mxu0 0
        %1969 = vmatpush1.bf16.msra.mxu0 %v1685
        %1970 = vmatprep.subr.bf16.mxu0 0
        %1971 = vmatpush1.bf16.msra.mxu0 %v1688
        %1972 = vmatprep.subr.bf16.mxu0 0
        %1973 = vmatpush1.bf16.msra.mxu0 %v1691
        %1974 = vmatprep.subr.bf16.mxu0 0
        %1975 = vmatpush1.bf16.msra.mxu0 %v1694
        %1976 = vmatprep.mubr.bf16.mxu0 %v1374
        %1977 = vmatmul.mubr.bf16.gmra.mrb[0].mxu0 %v1373
        %v1978 = vpop.f32.mrb[0].mxu0
        %v1979 = vadd.f32 %v1483, %v1978
        %v1980 = vpop.f32.mrb[0].mxu0
        %v1981 = vpop.f32.mrb[0].mxu0
        %v1982 = vadd.f32 %v1483, %v1981
        %v1983 = vpop.f32.mrb[0].mxu0
        %1984 = vmatprep.mubr.bf16.mxu0 %v1376
        %1985 = vmatmul.mubr.bf16.gmra.mrb[0].mxu0 %v1375
        %v1986 = vpop.f32.mrb[0].mxu0
        %v1987 = vadd.f32 %v1483, %v1986
        %v1988 = vpop.f32.mrb[0].mxu0
        %v1989 = vpop.f32.mrb[0].mxu0
        %v1990 = vadd.f32 %v1483, %v1989
        %v1991 = vpop.f32.mrb[0].mxu0
        %1992 = vmatprep.mubr.bf16.mxu0 %v1378
        %1993 = vmatmul.mubr.bf16.gmra.mrb[0].mxu0 %v1377
        %v1994 = vpop.f32.mrb[0].mxu0
        %v1995 = vadd.f32 %v1483, %v1994
        %v1996 = vpop.f32.mrb[0].mxu0
        %v1997 = vpop.f32.mrb[0].mxu0
        %v1998 = vadd.f32 %v1483, %v1997
        %v1999 = vpop.f32.mrb[0].mxu0
        %2000 = vmatprep.mubr.bf16.mxu0 %v1380
        %2001 = vmatmul.mubr.bf16.gmra.mrb[0].mxu0 %v1379
        %v2002 = vpop.f32.mrb[0].mxu0
        %v2003 = vadd.f32 %v1483, %v2002
        %v2004 = vpop.f32.mrb[0].mxu0
        %v2005 = vpop.f32.mrb[0].mxu0
        %v2006 = vadd.f32 %v1483, %v2005
        %v2007 = vpop.f32.mrb[0].mxu0
        %2008 = vmatprep.mubr.bf16.mxu0 %v1382
        %2009 = vmatmul.mubr.bf16.gmra.mrb[0].mxu0 %v1381
        %v2010 = vpop.f32.mrb[0].mxu0
        %v2011 = vadd.f32 %v1483, %v2010
        %v2012 = vpop.f32.mrb[0].mxu0
        %v2013 = vpop.f32.mrb[0].mxu0
        %v2014 = vadd.f32 %v1483, %v2013
        %v2015 = vpop.f32.mrb[0].mxu0
        %2016 = vmatprep.mubr.bf16.mxu0 %v1384
        %2017 = vmatmul.mubr.bf16.gmra.mrb[0].mxu0 %v1383
        %v2018 = vpop.f32.mrb[0].mxu0
        %v2019 = vadd.f32 %v1483, %v2018
        %v2020 = vpop.f32.mrb[0].mxu0
        %v2021 = vpop.f32.mrb[0].mxu0
        %v2022 = vadd.f32 %v1483, %v2021
        %v2023 = vpop.f32.mrb[0].mxu0
        %2024 = vmatprep.mubr.bf16.mxu0 %v1386
        %2025 = vmatmul.mubr.bf16.gmra.mrb[0].mxu0 %v1385
        %v2026 = vpop.f32.mrb[0].mxu0
        %v2027 = vadd.f32 %v1483, %v2026
        %v2028 = vpop.f32.mrb[0].mxu0
        %v2029 = vpop.f32.mrb[0].mxu0
        %v2030 = vadd.f32 %v1483, %v2029
        %v2031 = vpop.f32.mrb[0].mxu0
        %2032 = vmatprep.mubr.bf16.mxu0 %v1388
        %2033 = vmatmul.mubr.bf16.gmra.mrb[0].mxu0 %v1387
        %v2034 = vpop.f32.mrb[0].mxu0
        %v2035 = vadd.f32 %v1483, %v2034
        %v2036 = vpop.f32.mrb[0].mxu0
        %v2037 = vpop.f32.mrb[0].mxu0
        %v2038 = vadd.f32 %v1483, %v2037
        %v2039 = vpop.f32.mrb[0].mxu0
        %2040 = vmatprep.mubr.bf16.mxu0 %v1390
        %2041 = vmatmul.mubr.bf16.gmra.mrb[0].mxu0 %v1389
        %v2042 = vpop.f32.mrb[0].mxu0
        %v2043 = vadd.f32 %v1483, %v2042
        %v2044 = vpop.f32.mrb[0].mxu0
        %v2045 = vpop.f32.mrb[0].mxu0
        %v2046 = vadd.f32 %v1483, %v2045
        %v2047 = vpop.f32.mrb[0].mxu0
        %2048 = vmatprep.mubr.bf16.mxu0 %v1392
        %2049 = vmatmul.mubr.bf16.gmra.mrb[0].mxu0 %v1391
        %v2050 = vpop.f32.mrb[0].mxu0
        %v2051 = vadd.f32 %v1483, %v2050
        %v2052 = vpop.f32.mrb[0].mxu0
        %v2053 = vpop.f32.mrb[0].mxu0
        %v2054 = vadd.f32 %v1483, %v2053
        %v2055 = vpop.f32.mrb[0].mxu0
        %2056 = vmatprep.mubr.bf16.mxu0 %v1394
        %2057 = vmatmul.mubr.bf16.gmra.mrb[0].mxu0 %v1393
        %v2058 = vpop.f32.mrb[0].mxu0
        %v2059 = vadd.f32 %v1483, %v2058
        %v2060 = vpop.f32.mrb[0].mxu0
        %v2061 = vpop.f32.mrb[0].mxu0
        %v2062 = vadd.f32 %v1483, %v2061
        %v2063 = vpop.f32.mrb[0].mxu0
        %2064 = vmatprep.mubr.bf16.mxu0 %v1396
        %2065 = vmatmul.mubr.bf16.gmra.mrb[0].mxu0 %v1395
        %v2066 = vpop.f32.mrb[0].mxu0
        %v2067 = vadd.f32 %v1483, %v2066
        %v2068 = vpop.f32.mrb[0].mxu0
        %v2069 = vpop.f32.mrb[0].mxu0
        %v2070 = vadd.f32 %v1483, %v2069
        %v2071 = vpop.f32.mrb[0].mxu0
        %2072 = vmatprep.mubr.bf16.mxu0 %v1398
        %2073 = vmatmul.mubr.bf16.gmra.mrb[0].mxu0 %v1397
        %v2074 = vpop.f32.mrb[0].mxu0
        %v2075 = vadd.f32 %v1483, %v2074
        %v2076 = vpop.f32.mrb[0].mxu0
        %v2077 = vpop.f32.mrb[0].mxu0
        %v2078 = vadd.f32 %v1483, %v2077
        %v2079 = vpop.f32.mrb[0].mxu0
        %2080 = vmatprep.mubr.bf16.mxu0 %v1400
        %2081 = vmatmul.mubr.bf16.gmra.mrb[0].mxu0 %v1399
        %v2082 = vpop.f32.mrb[0].mxu0
        %v2083 = vadd.f32 %v1483, %v2082
        %v2084 = vpop.f32.mrb[0].mxu0
        %v2085 = vpop.f32.mrb[0].mxu0
        %v2086 = vadd.f32 %v1483, %v2085
        %v2087 = vpop.f32.mrb[0].mxu0
        %2088 = vmatprep.mubr.bf16.mxu0 %v1402
        %2089 = vmatmul.mubr.bf16.gmra.mrb[0].mxu0 %v1401
        %v2090 = vpop.f32.mrb[0].mxu0
        %v2091 = vadd.f32 %v1483, %v2090
        %v2092 = vpop.f32.mrb[0].mxu0
        %v2093 = vpop.f32.mrb[0].mxu0
        %v2094 = vadd.f32 %v1483, %v2093
        %v2095 = vpop.f32.mrb[0].mxu0
        %2096 = vmatprep.mubr.bf16.mxu0 %v1404
        %2097 = vmatmul.mubr.bf16.gmra.mrb[0].mxu0 %v1403
        %v2098 = vpop.f32.mrb[0].mxu0
        %v2099 = vadd.f32 %v1483, %v2098
        %v2100 = vpop.f32.mrb[0].mxu0
        %v2101 = vpop.f32.mrb[0].mxu0
        %v2102 = vadd.f32 %v1483, %v2101
        %v2103 = vpop.f32.mrb[0].mxu0
        %2104 = vmatprep.mubr.bf16.mxu0 %v1406
        %2105 = vmatmul.mubr.bf16.gmra.mrb[0].mxu0 %v1405
        %v2106 = vpop.f32.mrb[0].mxu0
        %v2107 = vadd.f32 %v1483, %v2106
        %v2108 = vpop.f32.mrb[0].mxu0
        %v2109 = vpop.f32.mrb[0].mxu0
        %v2110 = vpop.f32.mrb[0].mxu0
        %2111 = vdwg.mxu0
        %v2112 = vadd.f32 %v1778, %v1780
        %v2113 = vadd.f32 %v2112, %v1979
        %2114 = vadd.xlane.f32.xlu0 %v2113
        %v2115 = vpop.xlane.xlu0 %2114
        %v2116 = vadd.f32 %v1782, %v1784
        %v2117 = vadd.f32 %v2116, %v1982
        %2118 = vadd.xlane.f32.xlu0 %v2117
        %v2119 = vpop.xlane.xlu0 %2118
        %v2120 = vadd.f32 %v1788, %v1790
        %v2121 = vadd.f32 %v2120, %v1987
        %2122 = vadd.xlane.f32.xlu0 %v2121
        %v2123 = vpop.xlane.xlu0 %2122
        %v2124 = vadd.f32 %v1792, %v1794
        %v2125 = vadd.f32 %v2124, %v1990
        %2126 = vadd.xlane.f32.xlu0 %v2125
        %v2127 = vpop.xlane.xlu0 %2126
        %v2128 = vadd.f32 %v1798, %v1800
        %v2129 = vadd.f32 %v2128, %v1995
        %2130 = vadd.xlane.f32.xlu0 %v2129
        %v2131 = vpop.xlane.xlu0 %2130
        %v2132 = vadd.f32 %v1802, %v1804
        %v2133 = vadd.f32 %v2132, %v1998
        %2134 = vadd.xlane.f32.xlu0 %v2133
        %v2135 = vpop.xlane.xlu0 %2134
        %v2136 = vadd.f32 %v1808, %v1810
        %v2137 = vadd.f32 %v2136, %v2003
        %2138 = vadd.xlane.f32.xlu0 %v2137
        %v2139 = vpop.xlane.xlu0 %2138
        %v2140 = vadd.f32 %v1812, %v1814
        %v2141 = vadd.f32 %v2140, %v2006
        %2142 = vadd.xlane.f32.xlu0 %v2141
        %v2143 = vpop.xlane.xlu0 %2142
        %v2144 = vadd.f32 %v1818, %v1820
        %v2145 = vadd.f32 %v2144, %v2011
        %2146 = vadd.xlane.f32.xlu0 %v2145
        %v2147 = vpop.xlane.xlu0 %2146
        %v2148 = vadd.f32 %v1822, %v1824
        %v2149 = vadd.f32 %v2148, %v2014
        %2150 = vadd.xlane.f32.xlu0 %v2149
        %v2151 = vpop.xlane.xlu0 %2150
        %v2152 = vadd.f32 %v1828, %v1830
        %v2153 = vadd.f32 %v2152, %v2019
        %2154 = vadd.xlane.f32.xlu0 %v2153
        %v2155 = vpop.xlane.xlu0 %2154
        %v2156 = vadd.f32 %v1832, %v1834
        %v2157 = vadd.f32 %v2156, %v2022
        %2158 = vadd.xlane.f32.xlu0 %v2157
        %v2159 = vpop.xlane.xlu0 %2158
        %v2160 = vadd.f32 %v1838, %v1840
        %v2161 = vadd.f32 %v2160, %v2027
        %2162 = vadd.xlane.f32.xlu0 %v2161
        %v2163 = vpop.xlane.xlu0 %2162
        %v2164 = vadd.f32 %v1842, %v1844
        %v2165 = vadd.f32 %v2164, %v2030
        %2166 = vadd.xlane.f32.xlu0 %v2165
        %v2167 = vpop.xlane.xlu0 %2166
        %v2168 = vadd.f32 %v1848, %v1850
        %v2169 = vadd.f32 %v2168, %v2035
        %2170 = vadd.xlane.f32.xlu0 %v2169
        %v2171 = vpop.xlane.xlu0 %2170
        %v2172 = vadd.f32 %v1852, %v1854
        %v2173 = vadd.f32 %v2172, %v2038
        %2174 = vadd.xlane.f32.xlu0 %v2173
        %v2175 = vpop.xlane.xlu0 %2174
        %v2176 = vadd.f32 %v1858, %v1860
        %v2177 = vadd.f32 %v2176, %v2043
        %2178 = vadd.xlane.f32.xlu0 %v2177
        %v2179 = vpop.xlane.xlu0 %2178
        %v2180 = vadd.f32 %v1862, %v1864
        %v2181 = vadd.f32 %v2180, %v2046
        %2182 = vadd.xlane.f32.xlu0 %v2181
        %v2183 = vpop.xlane.xlu0 %2182
        %v2184 = vadd.f32 %v1868, %v1870
        %v2185 = vadd.f32 %v2184, %v2051
        %2186 = vadd.xlane.f32.xlu0 %v2185
        %v2187 = vpop.xlane.xlu0 %2186
        %v2188 = vadd.f32 %v1872, %v1874
        %v2189 = vadd.f32 %v2188, %v2054
        %2190 = vadd.xlane.f32.xlu0 %v2189
        %v2191 = vpop.xlane.xlu0 %2190
        %v2192 = vadd.f32 %v1878, %v1880
        %v2193 = vadd.f32 %v2192, %v2059
        %2194 = vadd.xlane.f32.xlu0 %v2193
        %v2195 = vpop.xlane.xlu0 %2194
        %v2196 = vadd.f32 %v1882, %v1884
        %v2197 = vadd.f32 %v2196, %v2062
        %2198 = vadd.xlane.f32.xlu0 %v2197
        %v2199 = vpop.xlane.xlu0 %2198
        %v2200 = vadd.f32 %v1888, %v1890
        %v2201 = vadd.f32 %v2200, %v2067
        %2202 = vadd.xlane.f32.xlu0 %v2201
        %v2203 = vpop.xlane.xlu0 %2202
        %v2204 = vadd.f32 %v1892, %v1894
        %v2205 = vadd.f32 %v2204, %v2070
        %2206 = vadd.xlane.f32.xlu0 %v2205
        %v2207 = vpop.xlane.xlu0 %2206
        %v2208 = vadd.f32 %v1898, %v1900
        %v2209 = vadd.f32 %v2208, %v2075
        %2210 = vadd.xlane.f32.xlu0 %v2209
        %v2211 = vpop.xlane.xlu0 %2210
        %v2212 = vadd.f32 %v1902, %v1904
        %v2213 = vadd.f32 %v2212, %v2078
        %2214 = vadd.xlane.f32.xlu0 %v2213
        %v2215 = vpop.xlane.xlu0 %2214
        %v2216 = vadd.f32 %v1908, %v1910
        %v2217 = vadd.f32 %v2216, %v2083
        %2218 = vadd.xlane.f32.xlu0 %v2217
        %v2219 = vpop.xlane.xlu0 %2218
        %v2220 = vadd.f32 %v1912, %v1914
        %v2221 = vadd.f32 %v2220, %v2086
        %2222 = vadd.xlane.f32.xlu0 %v2221
        %v2223 = vpop.xlane.xlu0 %2222
        %v2224 = vadd.f32 %v1918, %v1920
        %v2225 = vadd.f32 %v2224, %v2091
        %2226 = vadd.xlane.f32.xlu0 %v2225
        %v2227 = vpop.xlane.xlu0 %2226
        %v2228 = vadd.f32 %v1922, %v1924
        %v2229 = vadd.f32 %v2228, %v2094
        %2230 = vadd.xlane.f32.xlu0 %v2229
        %v2231 = vpop.xlane.xlu0 %2230
        %v2232 = vadd.f32 %v1928, %v1930
        %v2233 = vadd.f32 %v2232, %v2099
        %2234 = vadd.xlane.f32.xlu0 %v2233
        %v2235 = vpop.xlane.xlu0 %2234
        %v2236 = vadd.f32 %v1932, %v1934
        %v2237 = vadd.f32 %v2236, %v2102
        %2238 = vadd.xlane.f32.xlu0 %v2237
        %v2239 = vpop.xlane.xlu0 %2238
        %v2240 = vadd.f32 %v1938, %v1940
        %v2241 = vadd.f32 %v2240, %v2107
        %2242 = vadd.xlane.f32.xlu0 %v2241
        %v2243 = vpop.xlane.xlu0 %2242
        %v2244 = vmul.f32 %v2115, 0.0026041667
        %v2245 = vmul.f32 %v2119, 0.0026041667
        %v2246 = vmul.f32 %v2123, 0.0026041667
        %v2247 = vmul.f32 %v2127, 0.0026041667
        %v2248 = vmul.f32 %v2131, 0.0026041667
        %v2249 = vmul.f32 %v2135, 0.0026041667
        %v2250 = vmul.f32 %v2139, 0.0026041667
        %v2251 = vmul.f32 %v2143, 0.0026041667
        %v2252 = vmul.f32 %v2147, 0.0026041667
        %v2253 = vmul.f32 %v2151, 0.0026041667
        %v2254 = vmul.f32 %v2155, 0.0026041667
        %v2255 = vmul.f32 %v2159, 0.0026041667
        %v2256 = vmul.f32 %v2163, 0.0026041667
        %v2257 = vmul.f32 %v2167, 0.0026041667
        %v2258 = vmul.f32 %v2171, 0.0026041667
        %v2259 = vmul.f32 %v2175, 0.0026041667
        %v2260 = vmul.f32 %v2179, 0.0026041667
        %v2261 = vmul.f32 %v2183, 0.0026041667
        %v2262 = vmul.f32 %v2187, 0.0026041667
        %v2263 = vmul.f32 %v2191, 0.0026041667
        %v2264 = vmul.f32 %v2195, 0.0026041667
        %v2265 = vmul.f32 %v2199, 0.0026041667
        %v2266 = vmul.f32 %v2203, 0.0026041667
        %v2267 = vmul.f32 %v2207, 0.0026041667
        %v2268 = vmul.f32 %v2211, 0.0026041667
        %v2269 = vmul.f32 %v2215, 0.0026041667
        %v2270 = vmul.f32 %v2219, 0.0026041667
        %v2271 = vmul.f32 %v2223, 0.0026041667
        %v2272 = vmul.f32 %v2227, 0.0026041667
        %v2273 = vmul.f32 %v2231, 0.0026041667
        %v2274 = vmul.f32 %v2235, 0.0026041667
        %v2275 = vmul.f32 %v2239, 0.0026041667
        %v2276 = vmul.f32 %v2243, 0.0026041667
        %v2277 = vsub.f32 %v1778, %v2244
        %v2278 = vsub.f32 %v1780, %v2244
        %v2279 = vsub.f32 %v1979, %v2244
        %v2280 = vsub.f32 %v1782, %v2245
        %v2281 = vsub.f32 %v1784, %v2245
        %v2282 = vsub.f32 %v1982, %v2245
        %v2283 = vsub.f32 %v1788, %v2246
        %v2284 = vsub.f32 %v1790, %v2246
        %v2285 = vsub.f32 %v1987, %v2246
        %v2286 = vsub.f32 %v1792, %v2247
        %v2287 = vsub.f32 %v1794, %v2247
        %v2288 = vsub.f32 %v1990, %v2247
        %v2289 = vsub.f32 %v1798, %v2248
        %v2290 = vsub.f32 %v1800, %v2248
        %v2291 = vsub.f32 %v1995, %v2248
        %v2292 = vsub.f32 %v1802, %v2249
        %v2293 = vsub.f32 %v1804, %v2249
        %v2294 = vsub.f32 %v1998, %v2249
        %v2295 = vsub.f32 %v1808, %v2250
        %v2296 = vsub.f32 %v1810, %v2250
        %v2297 = vsub.f32 %v2003, %v2250
        %v2298 = vsub.f32 %v1812, %v2251
        %v2299 = vsub.f32 %v1814, %v2251
        %v2300 = vsub.f32 %v2006, %v2251
        %v2301 = vsub.f32 %v1818, %v2252
        %v2302 = vsub.f32 %v1820, %v2252
        %v2303 = vsub.f32 %v2011, %v2252
        %v2304 = vsub.f32 %v1822, %v2253
        %v2305 = vsub.f32 %v1824, %v2253
        %v2306 = vsub.f32 %v2014, %v2253
        %v2307 = vsub.f32 %v1828, %v2254
        %v2308 = vsub.f32 %v1830, %v2254
        %v2309 = vsub.f32 %v2019, %v2254
        %v2310 = vsub.f32 %v1832, %v2255
        %v2311 = vsub.f32 %v1834, %v2255
        %v2312 = vsub.f32 %v2022, %v2255
        %v2313 = vsub.f32 %v1838, %v2256
        %v2314 = vsub.f32 %v1840, %v2256
        %v2315 = vsub.f32 %v2027, %v2256
        %v2316 = vsub.f32 %v1842, %v2257
        %v2317 = vsub.f32 %v1844, %v2257
        %v2318 = vsub.f32 %v2030, %v2257
        %v2319 = vsub.f32 %v1848, %v2258
        %v2320 = vsub.f32 %v1850, %v2258
        %v2321 = vsub.f32 %v2035, %v2258
        %v2322 = vsub.f32 %v1852, %v2259
        %v2323 = vsub.f32 %v1854, %v2259
        %v2324 = vsub.f32 %v2038, %v2259
        %v2325 = vsub.f32 %v1858, %v2260
        %v2326 = vsub.f32 %v1860, %v2260
        %v2327 = vsub.f32 %v2043, %v2260
        %v2328 = vsub.f32 %v1862, %v2261
        %v2329 = vsub.f32 %v1864, %v2261
        %v2330 = vsub.f32 %v2046, %v2261
        %v2331 = vsub.f32 %v1868, %v2262
        %v2332 = vsub.f32 %v1870, %v2262
        %v2333 = vsub.f32 %v2051, %v2262
        %v2334 = vsub.f32 %v1872, %v2263
        %v2335 = vsub.f32 %v1874, %v2263
        %v2336 = vsub.f32 %v2054, %v2263
        %v2337 = vsub.f32 %v1878, %v2264
        %v2338 = vsub.f32 %v1880, %v2264
        %v2339 = vsub.f32 %v2059, %v2264
        %v2340 = vsub.f32 %v1882, %v2265
        %v2341 = vsub.f32 %v1884, %v2265
        %v2342 = vsub.f32 %v2062, %v2265
        %v2343 = vsub.f32 %v1888, %v2266
        %v2344 = vsub.f32 %v1890, %v2266
        %v2345 = vsub.f32 %v2067, %v2266
        %v2346 = vsub.f32 %v1892, %v2267
        %v2347 = vsub.f32 %v1894, %v2267
        %v2348 = vsub.f32 %v2070, %v2267
        %v2349 = vsub.f32 %v1898, %v2268
        %v2350 = vsub.f32 %v1900, %v2268
        %v2351 = vsub.f32 %v2075, %v2268
        %v2352 = vsub.f32 %v1902, %v2269
        %v2353 = vsub.f32 %v1904, %v2269
        %v2354 = vsub.f32 %v2078, %v2269
        %v2355 = vsub.f32 %v1908, %v2270
        %v2356 = vsub.f32 %v1910, %v2270
        %v2357 = vsub.f32 %v2083, %v2270
        %v2358 = vsub.f32 %v1912, %v2271
        %v2359 = vsub.f32 %v1914, %v2271
        %v2360 = vsub.f32 %v2086, %v2271
        %v2361 = vsub.f32 %v1918, %v2272
        %v2362 = vsub.f32 %v1920, %v2272
        %v2363 = vsub.f32 %v2091, %v2272
        %v2364 = vsub.f32 %v1922, %v2273
        %v2365 = vsub.f32 %v1924, %v2273
        %v2366 = vsub.f32 %v2094, %v2273
        %v2367 = vsub.f32 %v1928, %v2274
        %v2368 = vsub.f32 %v1930, %v2274
        %v2369 = vsub.f32 %v2099, %v2274
        %v2370 = vsub.f32 %v1932, %v2275
        %v2371 = vsub.f32 %v1934, %v2275
        %v2372 = vsub.f32 %v2102, %v2275
        %v2373 = vsub.f32 %v1938, %v2276
        %v2374 = vsub.f32 %v1940, %v2276
        %v2375 = vsub.f32 %v2107, %v2276
        %v2376 = vmul.f32 %v2277, %v2277
        %v2377 = vmul.f32 %v2278, %v2278
        %v2378 = vmul.f32 %v2279, %v2279
        %v2379 = vmul.f32 %v2280, %v2280
        %v2380 = vmul.f32 %v2281, %v2281
        %v2381 = vmul.f32 %v2282, %v2282
        %v2382 = vmul.f32 %v2283, %v2283
        %v2383 = vmul.f32 %v2284, %v2284
        %v2384 = vmul.f32 %v2285, %v2285
        %v2385 = vmul.f32 %v2286, %v2286
        %v2386 = vmul.f32 %v2287, %v2287
        %v2387 = vmul.f32 %v2288, %v2288
        %v2388 = vmul.f32 %v2289, %v2289
        %v2389 = vmul.f32 %v2290, %v2290
        %v2390 = vmul.f32 %v2291, %v2291
        %v2391 = vmul.f32 %v2292, %v2292
        %v2392 = vmul.f32 %v2293, %v2293
        %v2393 = vmul.f32 %v2294, %v2294
        %v2394 = vmul.f32 %v2295, %v2295
        %v2395 = vmul.f32 %v2296, %v2296
        %v2396 = vmul.f32 %v2297, %v2297
        %v2397 = vmul.f32 %v2298, %v2298
        %v2398 = vmul.f32 %v2299, %v2299
        %v2399 = vmul.f32 %v2300, %v2300
        %v2400 = vmul.f32 %v2301, %v2301
        %v2401 = vmul.f32 %v2302, %v2302
        %v2402 = vmul.f32 %v2303, %v2303
        %v2403 = vmul.f32 %v2304, %v2304
        %v2404 = vmul.f32 %v2305, %v2305
        %v2405 = vmul.f32 %v2306, %v2306
        %v2406 = vmul.f32 %v2307, %v2307
        %v2407 = vmul.f32 %v2308, %v2308
        %v2408 = vmul.f32 %v2309, %v2309
        %v2409 = vmul.f32 %v2310, %v2310
        %v2410 = vmul.f32 %v2311, %v2311
        %v2411 = vmul.f32 %v2312, %v2312
        %v2412 = vmul.f32 %v2313, %v2313
        %v2413 = vmul.f32 %v2314, %v2314
        %v2414 = vmul.f32 %v2315, %v2315
        %v2415 = vmul.f32 %v2316, %v2316
        %v2416 = vmul.f32 %v2317, %v2317
        %v2417 = vmul.f32 %v2318, %v2318
        %v2418 = vmul.f32 %v2319, %v2319
        %v2419 = vmul.f32 %v2320, %v2320
        %v2420 = vmul.f32 %v2321, %v2321
        %v2421 = vmul.f32 %v2322, %v2322
        %v2422 = vmul.f32 %v2323, %v2323
        %v2423 = vmul.f32 %v2324, %v2324
        %v2424 = vmul.f32 %v2325, %v2325
        %v2425 = vmul.f32 %v2326, %v2326
        %v2426 = vmul.f32 %v2327, %v2327
        %v2427 = vmul.f32 %v2328, %v2328
        %v2428 = vmul.f32 %v2329, %v2329
        %v2429 = vmul.f32 %v2330, %v2330
        %v2430 = vmul.f32 %v2331, %v2331
        %v2431 = vmul.f32 %v2332, %v2332
        %v2432 = vmul.f32 %v2333, %v2333
        %v2433 = vmul.f32 %v2334, %v2334
        %v2434 = vmul.f32 %v2335, %v2335
        %v2435 = vmul.f32 %v2336, %v2336
        %v2436 = vmul.f32 %v2337, %v2337
        %v2437 = vmul.f32 %v2338, %v2338
        %v2438 = vmul.f32 %v2339, %v2339
        %v2439 = vmul.f32 %v2340, %v2340
        %v2440 = vmul.f32 %v2341, %v2341
        %v2441 = vmul.f32 %v2342, %v2342
        %v2442 = vmul.f32 %v2343, %v2343
        %v2443 = vmul.f32 %v2344, %v2344
        %v2444 = vmul.f32 %v2345, %v2345
        %v2445 = vmul.f32 %v2346, %v2346
        %v2446 = vmul.f32 %v2347, %v2347
        %v2447 = vmul.f32 %v2348, %v2348
        %v2448 = vmul.f32 %v2349, %v2349
        %v2449 = vmul.f32 %v2350, %v2350
        %v2450 = vmul.f32 %v2351, %v2351
        %v2451 = vmul.f32 %v2352, %v2352
        %v2452 = vmul.f32 %v2353, %v2353
        %v2453 = vmul.f32 %v2354, %v2354
        %v2454 = vmul.f32 %v2355, %v2355
        %v2455 = vmul.f32 %v2356, %v2356
        %v2456 = vmul.f32 %v2357, %v2357
        %v2457 = vmul.f32 %v2358, %v2358
        %v2458 = vmul.f32 %v2359, %v2359
        %v2459 = vmul.f32 %v2360, %v2360
        %v2460 = vmul.f32 %v2361, %v2361
        %v2461 = vmul.f32 %v2362, %v2362
        %v2462 = vmul.f32 %v2363, %v2363
        %v2463 = vmul.f32 %v2364, %v2364
        %v2464 = vmul.f32 %v2365, %v2365
        %v2465 = vmul.f32 %v2366, %v2366
        %v2466 = vmul.f32 %v2367, %v2367
        %v2467 = vmul.f32 %v2368, %v2368
        %v2468 = vmul.f32 %v2369, %v2369
        %v2469 = vmul.f32 %v2370, %v2370
        %v2470 = vmul.f32 %v2371, %v2371
        %v2471 = vmul.f32 %v2372, %v2372
        %v2472 = vmul.f32 %v2373, %v2373
        %v2473 = vmul.f32 %v2374, %v2374
        %v2474 = vmul.f32 %v2375, %v2375
        %v2475 = vadd.f32 %v2376, %v2377
        %v2476 = vadd.f32 %v2475, %v2378
        %2477 = vadd.xlane.f32.xlu0 %v2476
        %v2478 = vpop.xlane.xlu0 %2477
        %v2479 = vadd.f32 %v2379, %v2380
        %v2480 = vadd.f32 %v2479, %v2381
        %2481 = vadd.xlane.f32.xlu0 %v2480
        %v2482 = vpop.xlane.xlu0 %2481
        %v2483 = vadd.f32 %v2382, %v2383
        %v2484 = vadd.f32 %v2483, %v2384
        %2485 = vadd.xlane.f32.xlu0 %v2484
        %v2486 = vpop.xlane.xlu0 %2485
        %v2487 = vadd.f32 %v2385, %v2386
        %v2488 = vadd.f32 %v2487, %v2387
        %2489 = vadd.xlane.f32.xlu0 %v2488
        %v2490 = vpop.xlane.xlu0 %2489
        %v2491 = vadd.f32 %v2388, %v2389
        %v2492 = vadd.f32 %v2491, %v2390
        %2493 = vadd.xlane.f32.xlu0 %v2492
        %v2494 = vpop.xlane.xlu0 %2493
        %v2495 = vadd.f32 %v2391, %v2392
        %v2496 = vadd.f32 %v2495, %v2393
        %2497 = vadd.xlane.f32.xlu0 %v2496
        %v2498 = vpop.xlane.xlu0 %2497
        %v2499 = vadd.f32 %v2394, %v2395
        %v2500 = vadd.f32 %v2499, %v2396
        %2501 = vadd.xlane.f32.xlu0 %v2500
        %v2502 = vpop.xlane.xlu0 %2501
        %v2503 = vadd.f32 %v2397, %v2398
        %v2504 = vadd.f32 %v2503, %v2399
        %2505 = vadd.xlane.f32.xlu0 %v2504
        %v2506 = vpop.xlane.xlu0 %2505
        %v2507 = vadd.f32 %v2400, %v2401
        %v2508 = vadd.f32 %v2507, %v2402
        %2509 = vadd.xlane.f32.xlu0 %v2508
        %v2510 = vpop.xlane.xlu0 %2509
        %v2511 = vadd.f32 %v2403, %v2404
        %v2512 = vadd.f32 %v2511, %v2405
        %2513 = vadd.xlane.f32.xlu0 %v2512
        %v2514 = vpop.xlane.xlu0 %2513
        %v2515 = vadd.f32 %v2406, %v2407
        %v2516 = vadd.f32 %v2515, %v2408
        %2517 = vadd.xlane.f32.xlu0 %v2516
        %v2518 = vpop.xlane.xlu0 %2517
        %v2519 = vadd.f32 %v2409, %v2410
        %v2520 = vadd.f32 %v2519, %v2411
        %2521 = vadd.xlane.f32.xlu0 %v2520
        %v2522 = vpop.xlane.xlu0 %2521
        %v2523 = vadd.f32 %v2412, %v2413
        %v2524 = vadd.f32 %v2523, %v2414
        %2525 = vadd.xlane.f32.xlu0 %v2524
        %v2526 = vpop.xlane.xlu0 %2525
        %v2527 = vadd.f32 %v2415, %v2416
        %v2528 = vadd.f32 %v2527, %v2417
        %2529 = vadd.xlane.f32.xlu0 %v2528
        %v2530 = vpop.xlane.xlu0 %2529
        %v2531 = vadd.f32 %v2418, %v2419
        %v2532 = vadd.f32 %v2531, %v2420
        %2533 = vadd.xlane.f32.xlu0 %v2532
        %v2534 = vpop.xlane.xlu0 %2533
        %v2535 = vadd.f32 %v2421, %v2422
        %v2536 = vadd.f32 %v2535, %v2423
        %2537 = vadd.xlane.f32.xlu0 %v2536
        %v2538 = vpop.xlane.xlu0 %2537
        %v2539 = vadd.f32 %v2424, %v2425
        %v2540 = vadd.f32 %v2539, %v2426
        %2541 = vadd.xlane.f32.xlu0 %v2540
        %v2542 = vpop.xlane.xlu0 %2541
        %v2543 = vadd.f32 %v2427, %v2428
        %v2544 = vadd.f32 %v2543, %v2429
        %2545 = vadd.xlane.f32.xlu0 %v2544
        %v2546 = vpop.xlane.xlu0 %2545
        %v2547 = vadd.f32 %v2430, %v2431
        %v2548 = vadd.f32 %v2547, %v2432
        %2549 = vadd.xlane.f32.xlu0 %v2548
        %v2550 = vpop.xlane.xlu0 %2549
        %v2551 = vadd.f32 %v2433, %v2434
        %v2552 = vadd.f32 %v2551, %v2435
        %2553 = vadd.xlane.f32.xlu0 %v2552
        %v2554 = vpop.xlane.xlu0 %2553
        %v2555 = vadd.f32 %v2436, %v2437
        %v2556 = vadd.f32 %v2555, %v2438
        %2557 = vadd.xlane.f32.xlu0 %v2556
        %v2558 = vpop.xlane.xlu0 %2557
        %v2559 = vadd.f32 %v2439, %v2440
        %v2560 = vadd.f32 %v2559, %v2441
        %2561 = vadd.xlane.f32.xlu0 %v2560
        %v2562 = vpop.xlane.xlu0 %2561
        %v2563 = vadd.f32 %v2442, %v2443
        %v2564 = vadd.f32 %v2563, %v2444
        %2565 = vadd.xlane.f32.xlu0 %v2564
        %v2566 = vpop.xlane.xlu0 %2565
        %v2567 = vadd.f32 %v2445, %v2446
        %v2568 = vadd.f32 %v2567, %v2447
        %2569 = vadd.xlane.f32.xlu0 %v2568
        %v2570 = vpop.xlane.xlu0 %2569
        %v2571 = vadd.f32 %v2448, %v2449
        %v2572 = vadd.f32 %v2571, %v2450
        %2573 = vadd.xlane.f32.xlu0 %v2572
        %v2574 = vpop.xlane.xlu0 %2573
        %v2575 = vadd.f32 %v2451, %v2452
        %v2576 = vadd.f32 %v2575, %v2453
        %2577 = vadd.xlane.f32.xlu0 %v2576
        %v2578 = vpop.xlane.xlu0 %2577
        %v2579 = vadd.f32 %v2454, %v2455
        %v2580 = vadd.f32 %v2579, %v2456
        %2581 = vadd.xlane.f32.xlu0 %v2580
        %v2582 = vpop.xlane.xlu0 %2581
        %v2583 = vadd.f32 %v2457, %v2458
        %v2584 = vadd.f32 %v2583, %v2459
        %2585 = vadd.xlane.f32.xlu0 %v2584
        %v2586 = vpop.xlane.xlu0 %2585
        %v2587 = vadd.f32 %v2460, %v2461
        %v2588 = vadd.f32 %v2587, %v2462
        %2589 = vadd.xlane.f32.xlu0 %v2588
        %v2590 = vpop.xlane.xlu0 %2589
        %v2591 = vadd.f32 %v2463, %v2464
        %v2592 = vadd.f32 %v2591, %v2465
        %2593 = vadd.xlane.f32.xlu0 %v2592
        %v2594 = vpop.xlane.xlu0 %2593
        %v2595 = vadd.f32 %v2466, %v2467
        %v2596 = vadd.f32 %v2595, %v2468
        %2597 = vadd.xlane.f32.xlu0 %v2596
        %v2598 = vpop.xlane.xlu0 %2597
        %v2599 = vadd.f32 %v2469, %v2470
        %v2600 = vadd.f32 %v2599, %v2471
        %2601 = vadd.xlane.f32.xlu0 %v2600
        %v2602 = vpop.xlane.xlu0 %2601
        %v2603 = vadd.f32 %v2472, %v2473
        %v2604 = vadd.f32 %v2603, %v2474
        %2605 = vadd.xlane.f32.xlu0 %v2604
        %v2606 = vpop.xlane.xlu0 %2605
        %v2607 = vmul.f32 %v2478, 0.0026041667
        %v2608 = vmul.f32 %v2482, 0.0026041667
        %v2609 = vmul.f32 %v2486, 0.0026041667
        %v2610 = vmul.f32 %v2490, 0.0026041667
        %v2611 = vmul.f32 %v2494, 0.0026041667
        %v2612 = vmul.f32 %v2498, 0.0026041667
        %v2613 = vmul.f32 %v2502, 0.0026041667
        %v2614 = vmul.f32 %v2506, 0.0026041667
        %v2615 = vmul.f32 %v2510, 0.0026041667
        %v2616 = vmul.f32 %v2514, 0.0026041667
        %v2617 = vmul.f32 %v2518, 0.0026041667
        %v2618 = vmul.f32 %v2522, 0.0026041667
        %v2619 = vmul.f32 %v2526, 0.0026041667
        %v2620 = vmul.f32 %v2530, 0.0026041667
        %v2621 = vmul.f32 %v2534, 0.0026041667
        %v2622 = vmul.f32 %v2538, 0.0026041667
        %v2623 = vmul.f32 %v2542, 0.0026041667
        %v2624 = vmul.f32 %v2546, 0.0026041667
        %v2625 = vmul.f32 %v2550, 0.0026041667
        %v2626 = vmul.f32 %v2554, 0.0026041667
        %v2627 = vmul.f32 %v2558, 0.0026041667
        %v2628 = vmul.f32 %v2562, 0.0026041667
        %v2629 = vmul.f32 %v2566, 0.0026041667
        %v2630 = vmul.f32 %v2570, 0.0026041667
        %v2631 = vmul.f32 %v2574, 0.0026041667
        %v2632 = vmul.f32 %v2578, 0.0026041667
        %v2633 = vmul.f32 %v2582, 0.0026041667
        %v2634 = vmul.f32 %v2586, 0.0026041667
        %v2635 = vmul.f32 %v2590, 0.0026041667
        %v2636 = vmul.f32 %v2594, 0.0026041667
        %v2637 = vmul.f32 %v2598, 0.0026041667
        %v2638 = vmul.f32 %v2602, 0.0026041667
        %v2639 = vmul.f32 %v2606, 0.0026041667
        %v2640 = vadd.f32 %v2607, 1e-05
        %v2641 = vadd.f32 %v2608, 1e-05
        %v2642 = vadd.f32 %v2609, 1e-05
        %v2643 = vadd.f32 %v2610, 1e-05
        %v2644 = vadd.f32 %v2611, 1e-05
        %v2645 = vadd.f32 %v2612, 1e-05
        %v2646 = vadd.f32 %v2613, 1e-05
        %v2647 = vadd.f32 %v2614, 1e-05
        %v2648 = vadd.f32 %v2615, 1e-05
        %v2649 = vadd.f32 %v2616, 1e-05
        %v2650 = vadd.f32 %v2617, 1e-05
        %v2651 = vadd.f32 %v2618, 1e-05
        %v2652 = vadd.f32 %v2619, 1e-05
        %v2653 = vadd.f32 %v2620, 1e-05
        %v2654 = vadd.f32 %v2621, 1e-05
        %v2655 = vadd.f32 %v2622, 1e-05
        %v2656 = vadd.f32 %v2623, 1e-05
        %v2657 = vadd.f32 %v2624, 1e-05
        %v2658 = vadd.f32 %v2625, 1e-05
        %v2659 = vadd.f32 %v2626, 1e-05
        %v2660 = vadd.f32 %v2627, 1e-05
        %v2661 = vadd.f32 %v2628, 1e-05
        %v2662 = vadd.f32 %v2629, 1e-05
        %v2663 = vadd.f32 %v2630, 1e-05
        %v2664 = vadd.f32 %v2631, 1e-05
        %v2665 = vadd.f32 %v2632, 1e-05
        %v2666 = vadd.f32 %v2633, 1e-05
        %v2667 = vadd.f32 %v2634, 1e-05
        %v2668 = vadd.f32 %v2635, 1e-05
        %v2669 = vadd.f32 %v2636, 1e-05
        %v2670 = vadd.f32 %v2637, 1e-05
        %v2671 = vadd.f32 %v2638, 1e-05
        %v2672 = vadd.f32 %v2639, 1e-05
        %v2673 = vrsqrt.pop %v2640
        %v2674 = vrsqrt.pop %v2641
        %v2675 = vrsqrt.pop %v2642
        %v2676 = vrsqrt.pop %v2643
        %v2677 = vrsqrt.pop %v2644
        %v2678 = vrsqrt.pop %v2645
        %v2679 = vrsqrt.pop %v2646
        %v2680 = vrsqrt.pop %v2647
        %v2681 = vrsqrt.pop %v2648
        %v2682 = vrsqrt.pop %v2649
        %v2683 = vrsqrt.pop %v2650
        %v2684 = vrsqrt.pop %v2651
        %v2685 = vrsqrt.pop %v2652
        %v2686 = vrsqrt.pop %v2653
        %v2687 = vrsqrt.pop %v2654
        %v2688 = vrsqrt.pop %v2655
        %v2689 = vrsqrt.pop %v2656
        %v2690 = vrsqrt.pop %v2657
        %v2691 = vrsqrt.pop %v2658
        %v2692 = vrsqrt.pop %v2659
        %v2693 = vrsqrt.pop %v2660
        %v2694 = vrsqrt.pop %v2661
        %v2695 = vrsqrt.pop %v2662
        %v2696 = vrsqrt.pop %v2663
        %v2697 = vrsqrt.pop %v2664
        %v2698 = vrsqrt.pop %v2665
        %v2699 = vrsqrt.pop %v2666
        %v2700 = vrsqrt.pop %v2667
        %v2701 = vrsqrt.pop %v2668
        %v2702 = vrsqrt.pop %v2669
        %v2703 = vrsqrt.pop %v2670
        %v2704 = vrsqrt.pop %v2671
        %v2705 = vrsqrt.pop %v2672
        %v2706 = vmul.f32 %v2277, %v2673
        %v2707 = vmul.f32 %v2278, %v2673
        %v2708 = vmul.f32 %v2279, %v2673
        %v2709 = vmul.f32 %v2280, %v2674
        %v2710 = vmul.f32 %v2281, %v2674
        %v2711 = vmul.f32 %v2282, %v2674
        %v2712 = vmul.f32 %v2283, %v2675
        %v2713 = vmul.f32 %v2284, %v2675
        %v2714 = vmul.f32 %v2285, %v2675
        %v2715 = vmul.f32 %v2286, %v2676
        %v2716 = vmul.f32 %v2287, %v2676
        %v2717 = vmul.f32 %v2288, %v2676
        %v2718 = vmul.f32 %v2289, %v2677
        %v2719 = vmul.f32 %v2290, %v2677
        %v2720 = vmul.f32 %v2291, %v2677
        %v2721 = vmul.f32 %v2292, %v2678
        %v2722 = vmul.f32 %v2293, %v2678
        %v2723 = vmul.f32 %v2294, %v2678
        %v2724 = vmul.f32 %v2295, %v2679
        %v2725 = vmul.f32 %v2296, %v2679
        %v2726 = vmul.f32 %v2297, %v2679
        %v2727 = vmul.f32 %v2298, %v2680
        %v2728 = vmul.f32 %v2299, %v2680
        %v2729 = vmul.f32 %v2300, %v2680
        %v2730 = vmul.f32 %v2301, %v2681
        %v2731 = vmul.f32 %v2302, %v2681
        %v2732 = vmul.f32 %v2303, %v2681
        %v2733 = vmul.f32 %v2304, %v2682
        %v2734 = vmul.f32 %v2305, %v2682
        %v2735 = vmul.f32 %v2306, %v2682
        %v2736 = vmul.f32 %v2307, %v2683
        %v2737 = vmul.f32 %v2308, %v2683
        %v2738 = vmul.f32 %v2309, %v2683
        %v2739 = vmul.f32 %v2310, %v2684
        %v2740 = vmul.f32 %v2311, %v2684
        %v2741 = vmul.f32 %v2312, %v2684
        %v2742 = vmul.f32 %v2313, %v2685
        %v2743 = vmul.f32 %v2314, %v2685
        %v2744 = vmul.f32 %v2315, %v2685
        %v2745 = vmul.f32 %v2316, %v2686
        %v2746 = vmul.f32 %v2317, %v2686
        %v2747 = vmul.f32 %v2318, %v2686
        %v2748 = vmul.f32 %v2319, %v2687
        %v2749 = vmul.f32 %v2320, %v2687
        %v2750 = vmul.f32 %v2321, %v2687
        %v2751 = vmul.f32 %v2322, %v2688
        %v2752 = vmul.f32 %v2323, %v2688
        %v2753 = vmul.f32 %v2324, %v2688
        %v2754 = vmul.f32 %v2325, %v2689
        %v2755 = vmul.f32 %v2326, %v2689
        %v2756 = vmul.f32 %v2327, %v2689
        %v2757 = vmul.f32 %v2328, %v2690
        %v2758 = vmul.f32 %v2329, %v2690
        %v2759 = vmul.f32 %v2330, %v2690
        %v2760 = vmul.f32 %v2331, %v2691
        %v2761 = vmul.f32 %v2332, %v2691
        %v2762 = vmul.f32 %v2333, %v2691
        %v2763 = vmul.f32 %v2334, %v2692
        %v2764 = vmul.f32 %v2335, %v2692
        %v2765 = vmul.f32 %v2336, %v2692
        %v2766 = vmul.f32 %v2337, %v2693
        %v2767 = vmul.f32 %v2338, %v2693
        %v2768 = vmul.f32 %v2339, %v2693
        %v2769 = vmul.f32 %v2340, %v2694
        %v2770 = vmul.f32 %v2341, %v2694
        %v2771 = vmul.f32 %v2342, %v2694
        %v2772 = vmul.f32 %v2343, %v2695
        %v2773 = vmul.f32 %v2344, %v2695
        %v2774 = vmul.f32 %v2345, %v2695
        %v2775 = vmul.f32 %v2346, %v2696
        %v2776 = vmul.f32 %v2347, %v2696
        %v2777 = vmul.f32 %v2348, %v2696
        %v2778 = vmul.f32 %v2349, %v2697
        %v2779 = vmul.f32 %v2350, %v2697
        %v2780 = vmul.f32 %v2351, %v2697
        %v2781 = vmul.f32 %v2352, %v2698
        %v2782 = vmul.f32 %v2353, %v2698
        %v2783 = vmul.f32 %v2354, %v2698
        %v2784 = vmul.f32 %v2355, %v2699
        %v2785 = vmul.f32 %v2356, %v2699
        %v2786 = vmul.f32 %v2357, %v2699
        %v2787 = vmul.f32 %v2358, %v2700
        %v2788 = vmul.f32 %v2359, %v2700
        %v2789 = vmul.f32 %v2360, %v2700
        %v2790 = vmul.f32 %v2361, %v2701
        %v2791 = vmul.f32 %v2362, %v2701
        %v2792 = vmul.f32 %v2363, %v2701
        %v2793 = vmul.f32 %v2364, %v2702
        %v2794 = vmul.f32 %v2365, %v2702
        %v2795 = vmul.f32 %v2366, %v2702
        %v2796 = vmul.f32 %v2367, %v2703
        %v2797 = vmul.f32 %v2368, %v2703
        %v2798 = vmul.f32 %v2369, %v2703
        %v2799 = vmul.f32 %v2370, %v2704
        %v2800 = vmul.f32 %v2371, %v2704
        %v2801 = vmul.f32 %v2372, %v2704
        %v2802 = vmul.f32 %v2373, %v2705
        %v2803 = vmul.f32 %v2374, %v2705
        %v2804 = vmul.f32 %v2375, %v2705
        %v2806 = vlaneseq
        %v2807 = vshrl.u32 %v2806, 7
        %v2808 = vsub.s32 0, %v2807
        %v2809 = vrot.slane %v336, %v2808
        %v2810 = vlaneseq
        %v2811 = vshrl.u32 %v2810, 7
        %v2812 = vsub.s32 1, %v2811
        %v2813 = vrot.slane %v336, %v2812
        %v2814 = vlaneseq
        %v2815 = vshrl.u32 %v2814, 7
        %v2816 = vsub.s32 2, %v2815
        %v2817 = vrot.slane %v336, %v2816
        %v2821 = vmul.f32 %v2706, %v2809
        %v2822 = vmul.f32 %v2707, %v2813
        %v2823 = vmul.f32 %v2708, %v2817
        %v2824 = vmul.f32 %v2709, %v2809
        %v2825 = vmul.f32 %v2710, %v2813
        %v2826 = vmul.f32 %v2711, %v2817
        %v2827 = vmul.f32 %v2712, %v2809
        %v2828 = vmul.f32 %v2713, %v2813
        %v2829 = vmul.f32 %v2714, %v2817
        %v2830 = vmul.f32 %v2715, %v2809
        %v2831 = vmul.f32 %v2716, %v2813
        %v2832 = vmul.f32 %v2717, %v2817
        %v2833 = vmul.f32 %v2718, %v2809
        %v2834 = vmul.f32 %v2719, %v2813
        %v2835 = vmul.f32 %v2720, %v2817
        %v2836 = vmul.f32 %v2721, %v2809
        %v2837 = vmul.f32 %v2722, %v2813
        %v2838 = vmul.f32 %v2723, %v2817
        %v2839 = vmul.f32 %v2724, %v2809
        %v2840 = vmul.f32 %v2725, %v2813
        %v2841 = vmul.f32 %v2726, %v2817
        %v2842 = vmul.f32 %v2727, %v2809
        %v2843 = vmul.f32 %v2728, %v2813
        %v2844 = vmul.f32 %v2729, %v2817
        %v2845 = vmul.f32 %v2730, %v2809
        %v2846 = vmul.f32 %v2731, %v2813
        %v2847 = vmul.f32 %v2732, %v2817
        %v2848 = vmul.f32 %v2733, %v2809
        %v2849 = vmul.f32 %v2734, %v2813
        %v2850 = vmul.f32 %v2735, %v2817
        %v2851 = vmul.f32 %v2736, %v2809
        %v2852 = vmul.f32 %v2737, %v2813
        %v2853 = vmul.f32 %v2738, %v2817
        %v2854 = vmul.f32 %v2739, %v2809
        %v2855 = vmul.f32 %v2740, %v2813
        %v2856 = vmul.f32 %v2741, %v2817
        %v2857 = vmul.f32 %v2742, %v2809
        %v2858 = vmul.f32 %v2743, %v2813
        %v2859 = vmul.f32 %v2744, %v2817
        %v2860 = vmul.f32 %v2745, %v2809
        %v2861 = vmul.f32 %v2746, %v2813
        %v2862 = vmul.f32 %v2747, %v2817
        %v2863 = vmul.f32 %v2748, %v2809
        %v2864 = vmul.f32 %v2749, %v2813
        %v2865 = vmul.f32 %v2750, %v2817
        %v2866 = vmul.f32 %v2751, %v2809
        %v2867 = vmul.f32 %v2752, %v2813
        %v2868 = vmul.f32 %v2753, %v2817
        %v2869 = vmul.f32 %v2754, %v2809
        %v2870 = vmul.f32 %v2755, %v2813
        %v2871 = vmul.f32 %v2756, %v2817
        %v2872 = vmul.f32 %v2757, %v2809
        %v2873 = vmul.f32 %v2758, %v2813
        %v2874 = vmul.f32 %v2759, %v2817
        %v2875 = vmul.f32 %v2760, %v2809
        %v2876 = vmul.f32 %v2761, %v2813
        %v2877 = vmul.f32 %v2762, %v2817
        %v2878 = vmul.f32 %v2763, %v2809
        %v2879 = vmul.f32 %v2764, %v2813
        %v2880 = vmul.f32 %v2765, %v2817
        %v2881 = vmul.f32 %v2766, %v2809
        %v2882 = vmul.f32 %v2767, %v2813
        %v2883 = vmul.f32 %v2768, %v2817
        %v2884 = vmul.f32 %v2769, %v2809
        %v2885 = vmul.f32 %v2770, %v2813
        %v2886 = vmul.f32 %v2771, %v2817
        %v2887 = vmul.f32 %v2772, %v2809
        %v2888 = vmul.f32 %v2773, %v2813
        %v2889 = vmul.f32 %v2774, %v2817
        %v2890 = vmul.f32 %v2775, %v2809
        %v2891 = vmul.f32 %v2776, %v2813
        %v2892 = vmul.f32 %v2777, %v2817
        %v2893 = vmul.f32 %v2778, %v2809
        %v2894 = vmul.f32 %v2779, %v2813
        %v2895 = vmul.f32 %v2780, %v2817
        %v2896 = vmul.f32 %v2781, %v2809
        %v2897 = vmul.f32 %v2782, %v2813
        %v2898 = vmul.f32 %v2783, %v2817
        %v2899 = vmul.f32 %v2784, %v2809
        %v2900 = vmul.f32 %v2785, %v2813
        %v2901 = vmul.f32 %v2786, %v2817
        %v2902 = vmul.f32 %v2787, %v2809
        %v2903 = vmul.f32 %v2788, %v2813
        %v2904 = vmul.f32 %v2789, %v2817
        %v2905 = vmul.f32 %v2790, %v2809
        %v2906 = vmul.f32 %v2791, %v2813
        %v2907 = vmul.f32 %v2792, %v2817
        %v2908 = vmul.f32 %v2793, %v2809
        %v2909 = vmul.f32 %v2794, %v2813
        %v2910 = vmul.f32 %v2795, %v2817
        %v2911 = vmul.f32 %v2796, %v2809
        %v2912 = vmul.f32 %v2797, %v2813
        %v2913 = vmul.f32 %v2798, %v2817
        %v2914 = vmul.f32 %v2799, %v2809
        %v2915 = vmul.f32 %v2800, %v2813
        %v2916 = vmul.f32 %v2801, %v2817
        %v2917 = vmul.f32 %v2802, %v2809
        %v2918 = vmul.f32 %v2803, %v2813
        %v2919 = vmul.f32 %v2804, %v2817
        %v2921 = vlaneseq
        %v2922 = vshrl.u32 %v2921, 7
        %v2923 = vsub.s32 0, %v2922
        %v2924 = vrot.slane %v338, %v2923
        %v2925 = vlaneseq
        %v2926 = vshrl.u32 %v2925, 7
        %v2927 = vsub.s32 1, %v2926
        %v2928 = vrot.slane %v338, %v2927
        %v2929 = vlaneseq
        %v2930 = vshrl.u32 %v2929, 7
        %v2931 = vsub.s32 2, %v2930
        %v2932 = vrot.slane %v338, %v2931
        %v2936 = vadd.f32 %v2821, %v2924
        %v2937 = vadd.f32 %v2822, %v2928
        %v2938 = vadd.f32 %v2823, %v2932
        %v2939 = vadd.f32 %v2824, %v2924
        %v2940 = vadd.f32 %v2825, %v2928
        %v2941 = vadd.f32 %v2826, %v2932
        %v2942 = vadd.f32 %v2827, %v2924
        %v2943 = vadd.f32 %v2828, %v2928
        %v2944 = vadd.f32 %v2829, %v2932
        %v2945 = vadd.f32 %v2830, %v2924
        %v2946 = vadd.f32 %v2831, %v2928
        %v2947 = vadd.f32 %v2832, %v2932
        %v2948 = vadd.f32 %v2833, %v2924
        %v2949 = vadd.f32 %v2834, %v2928
        %v2950 = vadd.f32 %v2835, %v2932
        %v2951 = vadd.f32 %v2836, %v2924
        %v2952 = vadd.f32 %v2837, %v2928
        %v2953 = vadd.f32 %v2838, %v2932
        %v2954 = vadd.f32 %v2839, %v2924
        %v2955 = vadd.f32 %v2840, %v2928
        %v2956 = vadd.f32 %v2841, %v2932
        %v2957 = vadd.f32 %v2842, %v2924
        %v2958 = vadd.f32 %v2843, %v2928
        %v2959 = vadd.f32 %v2844, %v2932
        %v2960 = vadd.f32 %v2845, %v2924
        %v2961 = vadd.f32 %v2846, %v2928
        %v2962 = vadd.f32 %v2847, %v2932
        %v2963 = vadd.f32 %v2848, %v2924
        %v2964 = vadd.f32 %v2849, %v2928
        %v2965 = vadd.f32 %v2850, %v2932
        %v2966 = vadd.f32 %v2851, %v2924
        %v2967 = vadd.f32 %v2852, %v2928
        %v2968 = vadd.f32 %v2853, %v2932
        %v2969 = vadd.f32 %v2854, %v2924
        %v2970 = vadd.f32 %v2855, %v2928
        %v2971 = vadd.f32 %v2856, %v2932
        %v2972 = vadd.f32 %v2857, %v2924
        %v2973 = vadd.f32 %v2858, %v2928
        %v2974 = vadd.f32 %v2859, %v2932
        %v2975 = vadd.f32 %v2860, %v2924
        %v2976 = vadd.f32 %v2861, %v2928
        %v2977 = vadd.f32 %v2862, %v2932
        %v2978 = vadd.f32 %v2863, %v2924
        %v2979 = vadd.f32 %v2864, %v2928
        %v2980 = vadd.f32 %v2865, %v2932
        %v2981 = vadd.f32 %v2866, %v2924
        %v2982 = vadd.f32 %v2867, %v2928
        %v2983 = vadd.f32 %v2868, %v2932
        %v2984 = vadd.f32 %v2869, %v2924
        %v2985 = vadd.f32 %v2870, %v2928
        %v2986 = vadd.f32 %v2871, %v2932
        %v2987 = vadd.f32 %v2872, %v2924
        %v2988 = vadd.f32 %v2873, %v2928
        %v2989 = vadd.f32 %v2874, %v2932
        %v2990 = vadd.f32 %v2875, %v2924
        %v2991 = vadd.f32 %v2876, %v2928
        %v2992 = vadd.f32 %v2877, %v2932
        %v2993 = vadd.f32 %v2878, %v2924
        %v2994 = vadd.f32 %v2879, %v2928
        %v2995 = vadd.f32 %v2880, %v2932
        %v2996 = vadd.f32 %v2881, %v2924
        %v2997 = vadd.f32 %v2882, %v2928
        %v2998 = vadd.f32 %v2883, %v2932
        %v2999 = vadd.f32 %v2884, %v2924
        %v3000 = vadd.f32 %v2885, %v2928
        %v3001 = vadd.f32 %v2886, %v2932
        %v3002 = vadd.f32 %v2887, %v2924
        %v3003 = vadd.f32 %v2888, %v2928
        %v3004 = vadd.f32 %v2889, %v2932
        %v3005 = vadd.f32 %v2890, %v2924
        %v3006 = vadd.f32 %v2891, %v2928
        %v3007 = vadd.f32 %v2892, %v2932
        %v3008 = vadd.f32 %v2893, %v2924
        %v3009 = vadd.f32 %v2894, %v2928
        %v3010 = vadd.f32 %v2895, %v2932
        %v3011 = vadd.f32 %v2896, %v2924
        %v3012 = vadd.f32 %v2897, %v2928
        %v3013 = vadd.f32 %v2898, %v2932
        %v3014 = vadd.f32 %v2899, %v2924
        %v3015 = vadd.f32 %v2900, %v2928
        %v3016 = vadd.f32 %v2901, %v2932
        %v3017 = vadd.f32 %v2902, %v2924
        %v3018 = vadd.f32 %v2903, %v2928
        %v3019 = vadd.f32 %v2904, %v2932
        %v3020 = vadd.f32 %v2905, %v2924
        %v3021 = vadd.f32 %v2906, %v2928
        %v3022 = vadd.f32 %v2907, %v2932
        %v3023 = vadd.f32 %v2908, %v2924
        %v3024 = vadd.f32 %v2909, %v2928
        %v3025 = vadd.f32 %v2910, %v2932
        %v3026 = vadd.f32 %v2911, %v2924
        %v3027 = vadd.f32 %v2912, %v2928
        %v3028 = vadd.f32 %v2913, %v2932
        %v3029 = vadd.f32 %v2914, %v2924
        %v3030 = vadd.f32 %v2915, %v2928
        %v3031 = vadd.f32 %v2916, %v2932
        %v3032 = vadd.f32 %v2917, %v2924
        %v3033 = vadd.f32 %v2918, %v2928
        %v3034 = vadd.f32 %v2919, %v2932
        %v3035 = vpack.c.bf16 %v2939, %v2936
        %v3036 = vpack.c.bf16 %v2940, %v2937
        %v3037 = vpack.c.bf16 %v2941, %v2938
        %v3038 = vpack.c.bf16 %v2945, %v2942
        %v3039 = vpack.c.bf16 %v2946, %v2943
        %v3040 = vpack.c.bf16 %v2947, %v2944
        %v3041 = vpack.c.bf16 %v2951, %v2948
        %v3042 = vpack.c.bf16 %v2952, %v2949
        %v3043 = vpack.c.bf16 %v2953, %v2950
        %v3044 = vpack.c.bf16 %v2957, %v2954
        %v3045 = vpack.c.bf16 %v2958, %v2955
        %v3046 = vpack.c.bf16 %v2959, %v2956
        %v3047 = vpack.c.bf16 %v2963, %v2960
        %v3048 = vpack.c.bf16 %v2964, %v2961
        %v3049 = vpack.c.bf16 %v2965, %v2962
        %v3050 = vpack.c.bf16 %v2969, %v2966
        %v3051 = vpack.c.bf16 %v2970, %v2967
        %v3052 = vpack.c.bf16 %v2971, %v2968
        %v3053 = vpack.c.bf16 %v2975, %v2972
        %v3054 = vpack.c.bf16 %v2976, %v2973
        %v3055 = vpack.c.bf16 %v2977, %v2974
        %v3056 = vpack.c.bf16 %v2981, %v2978
        %v3057 = vpack.c.bf16 %v2982, %v2979
        %v3058 = vpack.c.bf16 %v2983, %v2980
        %v3059 = vpack.c.bf16 %v2987, %v2984
        %v3060 = vpack.c.bf16 %v2988, %v2985
        %v3061 = vpack.c.bf16 %v2989, %v2986
        %v3062 = vpack.c.bf16 %v2993, %v2990
        %v3063 = vpack.c.bf16 %v2994, %v2991
        %v3064 = vpack.c.bf16 %v2995, %v2992
        %v3065 = vpack.c.bf16 %v2999, %v2996
        %v3066 = vpack.c.bf16 %v3000, %v2997
        %v3067 = vpack.c.bf16 %v3001, %v2998
        %v3068 = vpack.c.bf16 %v3005, %v3002
        %v3069 = vpack.c.bf16 %v3006, %v3003
        %v3070 = vpack.c.bf16 %v3007, %v3004
        %v3071 = vpack.c.bf16 %v3011, %v3008
        %v3072 = vpack.c.bf16 %v3012, %v3009
        %v3073 = vpack.c.bf16 %v3013, %v3010
        %v3074 = vpack.c.bf16 %v3017, %v3014
        %v3075 = vpack.c.bf16 %v3018, %v3015
        %v3076 = vpack.c.bf16 %v3019, %v3016
        %v3077 = vpack.c.bf16 %v3023, %v3020
        %v3078 = vpack.c.bf16 %v3024, %v3021
        %v3079 = vpack.c.bf16 %v3025, %v3022
        %v3080 = vpack.c.bf16 %v3029, %v3026
        %v3081 = vpack.c.bf16 %v3030, %v3027
        %v3082 = vpack.c.bf16 %v3031, %v3028
        %v3083 = vpack.c.bf16 %v3032, %v3032
        %v3084 = vpack.c.bf16 %v3033, %v3033
        %v3085 = vpack.c.bf16 %v3034, %v3034
        %v3137 = vunpack.c.l.b16 %v3035
        %v3138 = vunpack.c.l.b16 %v3036
        %v3139 = vunpack.c.l.b16 %v3037
        %v3140 = vunpack.c.h.b16 %v3035
        %v3141 = vunpack.c.h.b16 %v3036
        %v3142 = vunpack.c.h.b16 %v3037
        %v3143 = vunpack.c.l.b16 %v3038
        %v3144 = vunpack.c.l.b16 %v3039
        %v3145 = vunpack.c.l.b16 %v3040
        %v3146 = vunpack.c.h.b16 %v3038
        %v3147 = vunpack.c.h.b16 %v3039
        %v3148 = vunpack.c.h.b16 %v3040
        %v3149 = vunpack.c.l.b16 %v3041
        %v3150 = vunpack.c.l.b16 %v3042
        %v3151 = vunpack.c.l.b16 %v3043
        %v3152 = vunpack.c.h.b16 %v3041
        %v3153 = vunpack.c.h.b16 %v3042
        %v3154 = vunpack.c.h.b16 %v3043
        %v3155 = vunpack.c.l.b16 %v3044
        %v3156 = vunpack.c.l.b16 %v3045
        %v3157 = vunpack.c.l.b16 %v3046
        %v3158 = vunpack.c.h.b16 %v3044
        %v3159 = vunpack.c.h.b16 %v3045
        %v3160 = vunpack.c.h.b16 %v3046
        %v3161 = vunpack.c.l.b16 %v3047
        %v3162 = vunpack.c.l.b16 %v3048
        %v3163 = vunpack.c.l.b16 %v3049
        %v3164 = vunpack.c.h.b16 %v3047
        %v3165 = vunpack.c.h.b16 %v3048
        %v3166 = vunpack.c.h.b16 %v3049
        %v3167 = vunpack.c.l.b16 %v3050
        %v3168 = vunpack.c.l.b16 %v3051
        %v3169 = vunpack.c.l.b16 %v3052
        %v3170 = vunpack.c.h.b16 %v3050
        %v3171 = vunpack.c.h.b16 %v3051
        %v3172 = vunpack.c.h.b16 %v3052
        %v3173 = vunpack.c.l.b16 %v3053
        %v3174 = vunpack.c.l.b16 %v3054
        %v3175 = vunpack.c.l.b16 %v3055
        %v3176 = vunpack.c.h.b16 %v3053
        %v3177 = vunpack.c.h.b16 %v3054
        %v3178 = vunpack.c.h.b16 %v3055
        %v3179 = vunpack.c.l.b16 %v3056
        %v3180 = vunpack.c.l.b16 %v3057
        %v3181 = vunpack.c.l.b16 %v3058
        %v3182 = vunpack.c.h.b16 %v3056
        %v3183 = vunpack.c.h.b16 %v3057
        %v3184 = vunpack.c.h.b16 %v3058
        %v3185 = vunpack.c.l.b16 %v3059
        %v3186 = vunpack.c.l.b16 %v3060
        %v3187 = vunpack.c.l.b16 %v3061
        %v3188 = vunpack.c.h.b16 %v3059
        %v3189 = vunpack.c.h.b16 %v3060
        %v3190 = vunpack.c.h.b16 %v3061
        %v3191 = vunpack.c.l.b16 %v3062
        %v3192 = vunpack.c.l.b16 %v3063
        %v3193 = vunpack.c.l.b16 %v3064
        %v3194 = vunpack.c.h.b16 %v3062
        %v3195 = vunpack.c.h.b16 %v3063
        %v3196 = vunpack.c.h.b16 %v3064
        %v3197 = vunpack.c.l.b16 %v3065
        %v3198 = vunpack.c.l.b16 %v3066
        %v3199 = vunpack.c.l.b16 %v3067
        %v3200 = vunpack.c.h.b16 %v3065
        %v3201 = vunpack.c.h.b16 %v3066
        %v3202 = vunpack.c.h.b16 %v3067
        %v3203 = vunpack.c.l.b16 %v3068
        %v3204 = vunpack.c.l.b16 %v3069
        %v3205 = vunpack.c.l.b16 %v3070
        %v3206 = vunpack.c.h.b16 %v3068
        %v3207 = vunpack.c.h.b16 %v3069
        %v3208 = vunpack.c.h.b16 %v3070
        %v3209 = vunpack.c.l.b16 %v3071
        %v3210 = vunpack.c.l.b16 %v3072
        %v3211 = vunpack.c.l.b16 %v3073
        %v3212 = vunpack.c.h.b16 %v3071
        %v3213 = vunpack.c.h.b16 %v3072
        %v3214 = vunpack.c.h.b16 %v3073
        %v3215 = vunpack.c.l.b16 %v3074
        %v3216 = vunpack.c.l.b16 %v3075
        %v3217 = vunpack.c.l.b16 %v3076
        %v3218 = vunpack.c.h.b16 %v3074
        %v3219 = vunpack.c.h.b16 %v3075
        %v3220 = vunpack.c.h.b16 %v3076
        %v3221 = vunpack.c.l.b16 %v3077
        %v3222 = vunpack.c.l.b16 %v3078
        %v3223 = vunpack.c.l.b16 %v3079
        %v3224 = vunpack.c.h.b16 %v3077
        %v3225 = vunpack.c.h.b16 %v3078
        %v3226 = vunpack.c.h.b16 %v3079
        %v3227 = vunpack.c.l.b16 %v3080
        %v3228 = vunpack.c.l.b16 %v3081
        %v3229 = vunpack.c.l.b16 %v3082
        %v3230 = vunpack.c.h.b16 %v3080
        %v3231 = vunpack.c.h.b16 %v3081
        %v3232 = vunpack.c.h.b16 %v3082
        %v3233 = vunpack.c.l.b16 %v3083
        %v3234 = vunpack.c.l.b16 %v3084
        %v3235 = vunpack.c.l.b16 %v3085
        %v3236 = vpack.c.b16 %v3138, %v3137
        %v3237 = vpack.c.b16 %v3139, %v3139
        %v3238 = vpack.c.b16 %v3141, %v3140
        %v3239 = vpack.c.b16 %v3142, %v3142
        %v3240 = vpack.c.b16 %v3144, %v3143
        %v3241 = vpack.c.b16 %v3145, %v3145
        %v3242 = vpack.c.b16 %v3147, %v3146
        %v3243 = vpack.c.b16 %v3148, %v3148
        %v3244 = vpack.c.b16 %v3150, %v3149
        %v3245 = vpack.c.b16 %v3151, %v3151
        %v3246 = vpack.c.b16 %v3153, %v3152
        %v3247 = vpack.c.b16 %v3154, %v3154
        %v3248 = vpack.c.b16 %v3156, %v3155
        %v3249 = vpack.c.b16 %v3157, %v3157
        %v3250 = vpack.c.b16 %v3159, %v3158
        %v3251 = vpack.c.b16 %v3160, %v3160
        %v3252 = vpack.c.b16 %v3162, %v3161
        %v3253 = vpack.c.b16 %v3163, %v3163
        %v3254 = vpack.c.b16 %v3165, %v3164
        %v3255 = vpack.c.b16 %v3166, %v3166
        %v3256 = vpack.c.b16 %v3168, %v3167
        %v3257 = vpack.c.b16 %v3169, %v3169
        %v3258 = vpack.c.b16 %v3171, %v3170
        %v3259 = vpack.c.b16 %v3172, %v3172
        %v3260 = vpack.c.b16 %v3174, %v3173
        %v3261 = vpack.c.b16 %v3175, %v3175
        %v3262 = vpack.c.b16 %v3177, %v3176
        %v3263 = vpack.c.b16 %v3178, %v3178
        %v3264 = vpack.c.b16 %v3180, %v3179
        %v3265 = vpack.c.b16 %v3181, %v3181
        %v3266 = vpack.c.b16 %v3183, %v3182
        %v3267 = vpack.c.b16 %v3184, %v3184
        %v3268 = vpack.c.b16 %v3186, %v3185
        %v3269 = vpack.c.b16 %v3187, %v3187
        %v3270 = vpack.c.b16 %v3189, %v3188
        %v3271 = vpack.c.b16 %v3190, %v3190
        %v3272 = vpack.c.b16 %v3192, %v3191
        %v3273 = vpack.c.b16 %v3193, %v3193
        %v3274 = vpack.c.b16 %v3195, %v3194
        %v3275 = vpack.c.b16 %v3196, %v3196
        %v3276 = vpack.c.b16 %v3198, %v3197
        %v3277 = vpack.c.b16 %v3199, %v3199
        %v3278 = vpack.c.b16 %v3201, %v3200
        %v3279 = vpack.c.b16 %v3202, %v3202
        %v3280 = vpack.c.b16 %v3204, %v3203
        %v3281 = vpack.c.b16 %v3205, %v3205
        %v3282 = vpack.c.b16 %v3207, %v3206
        %v3283 = vpack.c.b16 %v3208, %v3208
        %v3284 = vpack.c.b16 %v3210, %v3209
        %v3285 = vpack.c.b16 %v3211, %v3211
        %v3286 = vpack.c.b16 %v3213, %v3212
        %v3287 = vpack.c.b16 %v3214, %v3214
        %v3288 = vpack.c.b16 %v3216, %v3215
        %v3289 = vpack.c.b16 %v3217, %v3217
        %v3290 = vpack.c.b16 %v3219, %v3218
        %v3291 = vpack.c.b16 %v3220, %v3220
        %v3292 = vpack.c.b16 %v3222, %v3221
        %v3293 = vpack.c.b16 %v3223, %v3223
        %v3294 = vpack.c.b16 %v3225, %v3224
        %v3295 = vpack.c.b16 %v3226, %v3226
        %v3296 = vpack.c.b16 %v3228, %v3227
        %v3297 = vpack.c.b16 %v3229, %v3229
        %v3298 = vpack.c.b16 %v3231, %v3230
        %v3299 = vpack.c.b16 %v3232, %v3232
        %v3300 = vpack.c.b16 %v3234, %v3233
        %v3301 = vpack.c.b16 %v3235, %v3235
        %3368 = vst [vmem:[%s252] sm:$0xff] %v3236
        %3369 = vst [vmem:[%s252 + $0x8] sm:$0xf] %v3237
        %3370 = vst [vmem:[%s252 + $0xc] sm:$0xff] %v3238
        %3371 = vst [vmem:[%s252 + $0x14] sm:$0xf] %v3239
        %3372 = vst [vmem:[%s252 + $0x18] sm:$0xff] %v3240
        %3373 = vst [vmem:[%s252 + $0x20] sm:$0xf] %v3241
        %3374 = vst [vmem:[%s252 + $0x24] sm:$0xff] %v3242
        %3375 = vst [vmem:[%s252 + $0x2c] sm:$0xf] %v3243
        %3376 = vst [vmem:[%s252 + $0x30] sm:$0xff] %v3244
        %3377 = vst [vmem:[%s252 + $0x38] sm:$0xf] %v3245
        %3378 = vst [vmem:[%s252 + $0x3c] sm:$0xff] %v3246
        %3379 = vst [vmem:[%s252 + $0x44] sm:$0xf] %v3247
        %3380 = vst [vmem:[%s252 + $0x48] sm:$0xff] %v3248
        %3381 = vst [vmem:[%s252 + $0x50] sm:$0xf] %v3249
        %3382 = vst [vmem:[%s252 + $0x54] sm:$0xff] %v3250
        %3383 = vst [vmem:[%s252 + $0x5c] sm:$0xf] %v3251
        %3384 = vst [vmem:[%s252 + $0x60] sm:$0xff] %v3252
        %3385 = vst [vmem:[%s252 + $0x68] sm:$0xf] %v3253
        %3386 = vst [vmem:[%s252 + $0x6c] sm:$0xff] %v3254
        %3387 = vst [vmem:[%s252 + $0x74] sm:$0xf] %v3255
        %3388 = vst [vmem:[%s252 + $0x78] sm:$0xff] %v3256
        %3389 = vst [vmem:[%s252 + $0x80] sm:$0xf] %v3257
        %3390 = vst [vmem:[%s252 + $0x84] sm:$0xff] %v3258
        %3391 = vst [vmem:[%s252 + $0x8c] sm:$0xf] %v3259
        %3392 = vst [vmem:[%s252 + $0x90] sm:$0xff] %v3260
        %3393 = vst [vmem:[%s252 + $0x98] sm:$0xf] %v3261
        %3394 = vst [vmem:[%s252 + $0x9c] sm:$0xff] %v3262
        %3395 = vst [vmem:[%s252 + $0xa4] sm:$0xf] %v3263
        %3396 = vst [vmem:[%s252 + $0xa8] sm:$0xff] %v3264
        %3397 = vst [vmem:[%s252 + $0xb0] sm:$0xf] %v3265
        %3398 = vst [vmem:[%s252 + $0xb4] sm:$0xff] %v3266
        %3399 = vst [vmem:[%s252 + $0xbc] sm:$0xf] %v3267
        %3400 = vst [vmem:[%s252 + $0xc0] sm:$0xff] %v3268
        %3401 = vst [vmem:[%s252 + $0xc8] sm:$0xf] %v3269
        %3402 = vst [vmem:[%s252 + $0xcc] sm:$0xff] %v3270
        %3403 = vst [vmem:[%s252 + $0xd4] sm:$0xf] %v3271
        %3404 = vst [vmem:[%s252 + $0xd8] sm:$0xff] %v3272
        %3405 = vst [vmem:[%s252 + $0xe0] sm:$0xf] %v3273
        %3406 = vst [vmem:[%s252 + $0xe4] sm:$0xff] %v3274
        %3407 = vst [vmem:[%s252 + $0xec] sm:$0xf] %v3275
        %3408 = vst [vmem:[%s252 + $0xf0] sm:$0xff] %v3276
        %3409 = vst [vmem:[%s252 + $0xf8] sm:$0xf] %v3277
        %3410 = vst [vmem:[%s252 + $0xfc] sm:$0xff] %v3278
        %3411 = vst [vmem:[%s252 + $0x104] sm:$0xf] %v3279
        %3412 = vst [vmem:[%s252 + $0x108] sm:$0xff] %v3280
        %3413 = vst [vmem:[%s252 + $0x110] sm:$0xf] %v3281
        %3414 = vst [vmem:[%s252 + $0x114] sm:$0xff] %v3282
        %3415 = vst [vmem:[%s252 + $0x11c] sm:$0xf] %v3283
        %3416 = vst [vmem:[%s252 + $0x120] sm:$0xff] %v3284
        %3417 = vst [vmem:[%s252 + $0x128] sm:$0xf] %v3285
        %3418 = vst [vmem:[%s252 + $0x12c] sm:$0xff] %v3286
        %3419 = vst [vmem:[%s252 + $0x134] sm:$0xf] %v3287
        %3420 = vst [vmem:[%s252 + $0x138] sm:$0xff] %v3288
        %3421 = vst [vmem:[%s252 + $0x140] sm:$0xf] %v3289
        %3422 = vst [vmem:[%s252 + $0x144] sm:$0xff] %v3290
        %3423 = vst [vmem:[%s252 + $0x14c] sm:$0xf] %v3291
        %3424 = vst [vmem:[%s252 + $0x150] sm:$0xff] %v3292
        %3425 = vst [vmem:[%s252 + $0x158] sm:$0xf] %v3293
        %3426 = vst [vmem:[%s252 + $0x15c] sm:$0xff] %v3294
        %3427 = vst [vmem:[%s252 + $0x164] sm:$0xf] %v3295
        %3428 = vst [vmem:[%s252 + $0x168] sm:$0xff] %v3296
        %3429 = vst [vmem:[%s252 + $0x170] sm:$0xf] %v3297
        %3430 = vst [vmem:[%s252 + $0x174] sm:$0xff] %v3298
        %3431 = vst [vmem:[%s252 + $0x17c] sm:$0xf] %v3299
        %3432 = vst [vmem:[%s252 + $0x180] sm:$0xff] %v3300
        %3433 = vst [vmem:[%s252 + $0x188] sm:$0xf] %v3301
        %s3434 = sand.u32 %s119, 1
        %s3435 = scalar_lea.sflag [#allocation4], %s3434
        %s3436 = sand.u32 %s119, 1
        %s3437 = smul.addr %s3436, 396
        %s3438 = scalar_lea.vmem [#allocation8], %s3437
        // Predicated region
        $region49: #{context_isolation_forward.1} parent=35 // pred_check
          %p3439 = pneg %p129
        $region50: #{context_isolation_forward.1} parent=35 // pred_check_branch
          %3441 = sbr.rel (%p3439) target = $region52
        $region51: #{context_isolation_forward.1} parent=35 // pred_region
          %s3442 = smul.u32 33, %s22
          %s3443 = ssub.s32 65, %s3442
          %p3444 = scmp.lt.s32.totalorder %s3443, 33
          %s3445 = scalar_select %p3444, %s3443, 33
          %s3446 = smul.u32 64, %s3445
          %s3447 = smul.u32 %s3446, 3
          %s3449 = ssub.s32 6336, %s3447
          %3450 = vsyncadd %s3435, %s3449
          %p3451 = scmp.ne.s32.totalorder 0, %s3447
          %s3452 = smul.addr %s3442, 3
          %s3453 = smul.addr %s3452, 64
          %s3454 = scalar_lea.hbm %s4, %s3453
          %s3455 = smul.u32 12, %s3445
          %s3456 = sshll.u32 %s3438, 4
          %s3457 = int_to_ptr.vmem [resolvable:$true] %s3456
          %s3458 = sshll.u32 %s3455, 4
          %3462 = dma.vmem_to_hbm [thread:$0]  (%p3451), %s3457, %s3458, %s3454, %s3435, 192, 192, 12
        $region52: #{context_isolation_forward.1} parent=35 // pred_fallthru
          _
      $region36: #{context_isolation_forward.1} parent=5 // pred_fallthru
        _
      %p3463 = scmp.le.s32.totalorder 2, %s17
      // Predicated region
      $region53: #{context_isolation_forward.1} parent=5 // pred_check
        %p3464 = pneg %p3463
      $region54: #{context_isolation_forward.1} parent=5 // pred_check_branch
        %3466 = sbr.rel (%p3464) target = $region56
      $region55: #{context_isolation_forward.1} parent=5 // pred_region
        %s3467 = ssub.s32 %s17, 2
        // Predicated region
        $region57: #{context_isolation_forward.1} parent=55 // pred_check
          %p3468 = pneg %p135
        $region58: #{context_isolation_forward.1} parent=55 // pred_check_branch
          %3470 = sbr.rel (%p3468) target = $region60
        $region59: #{context_isolation_forward.1} parent=55 // pred_region
          %s3471 = sand.u32 %s120, 1
          %s3472 = scalar_lea.sflag [#allocation4], %s3471
          %s3473 = sand.u32 %s120, 1
          %s3474 = smul.addr %s3473, 396
          %s3475 = scalar_lea.vmem [#allocation8], %s3474
          %3476 = dma.done %s3472, 6336
        $region60: #{context_isolation_forward.1} parent=55 // pred_fallthru
          _
      $region56: #{context_isolation_forward.1} parent=5 // pred_fallthru
        _
    $region6: #{context_isolation_forward.1} parent=1 // loop_footer
      %s21 = sadd.s32 1, %s17
    $region7: #{context_isolation_forward.1} parent=1 // loop_footer_branch
      %16 = sbr.rel target = $region3
    $region8: #{context_isolation_forward.1} parent=1 // loop_exit
      _
    %3477 = vsyncpa [#allocation3], 1
    %s3478 = scalar_lea.sflag [#allocation3], 1
    %3479 = vsyncpa %s3478, 1
    %3480 = vsyncpa [#allocation6], 1
    %3481 = vsyncpa [#allocation4], 1
    %s3482 = scalar_lea.sflag [#allocation4], 1
    %3483 = vsyncpa %s3482, 1

</llo_original>
